<compile_context>
chip_gen: v7x
topology: tpu7x:2x2x1
jax: 0.10.0
libtpu: 0.0.40
codegen_flags: <defaults>
</compile_context>

<pallas_src>
import functools

import jax
import jax.numpy as jnp
from jax.experimental import pallas as pl
from jax.experimental.pallas import tpu as pltpu


# ----------------------------------------------------------------------------
# Parameter preparation (run ONCE at model load, not per forward call).
# ----------------------------------------------------------------------------
def fold_bn(gamma, beta, mean, var, eps=1e-5):
    """Inference BatchNorm folded to per-channel scale/bias (f32)."""
    scale = gamma / jnp.sqrt(var + eps)
    bias = beta - mean * scale
    return scale, bias


def prepare_basic_block_params(params, eps=1e-5):
    """Pack im2col conv weights and folded BN params once at model load."""
    w1 = params["w1"]          # (3, 3, Cin,  Cmid)  HWIO
    w2 = params["w2"]          # (3, 3, Cmid, Cout)  HWIO
    kh, kw, cin, cmid = w1.shape
    cout = w2.shape[-1]
    assert (kh, kw) == (3, 3) and w2.shape[:2] == (3, 3)
    s1, b1 = fold_bn(params["bn1_gamma"], params["bn1_beta"],
                     params["bn1_mean"], params["bn1_var"], eps)
    s2, b2 = fold_bn(params["bn2_gamma"], params["bn2_beta"],
                     params["bn2_mean"], params["bn2_var"], eps)
    return {
        # im2col weight row index = (ky*3 + kx)*Cin + ci  — matches the tap
        # write order inside the kernel.
        "w1p": w1.reshape(9 * cin, cmid).astype(jnp.bfloat16),
        "w2p": w2.reshape(9 * cmid, cout).astype(jnp.bfloat16),
        "s1": s1.reshape(1, cmid).astype(jnp.float32),
        "b1": b1.reshape(1, cmid).astype(jnp.float32),
        "s2": s2.reshape(1, cout).astype(jnp.float32),
        "b2": b2.reshape(1, cout).astype(jnp.float32),
    }


def _pick_vmem_limit():
    """Generation-dependent scoped-VMEM limit (64 MiB physical on v7x)."""
    cap = 128 * 1024 * 1024
    try:
        cap = int(getattr(pltpu.get_tpu_info(), "vmem_capacity_bytes", cap))
    except Exception:
        pass
    return int(min(cap * 3 // 4, 96 * 1024 * 1024))


# ----------------------------------------------------------------------------
# In-kernel 3x3 SAME conv as one im2col matmul.
# ----------------------------------------------------------------------------
def _conv3x3_same_im2col(xin, w, pref, *, W, r_out):
    """xin : (r_out + 2*W, C) bf16, pixel-major (row*W + col); row 0 of xin is
             one image row ABOVE the first output row (the caller supplies
             zero rows at the image border).
       w   : (9*C, Cout) bf16 im2col weights.
       pref: (r_out, 9*C) bf16 VMEM scratch used to assemble the patches.
       Returns (r_out, Cout) f32.
    """
    C = xin.shape[-1]
    zrow = jnp.zeros((1, C), xin.dtype)
    # +-1 pixel overhang so every (ky, kx) tap is a static slice; the two
    # overhang pixels only ever feed column-masked (zero) positions.
    xp = jnp.concatenate([zrow, xin, zrow], axis=0)          # (r_out + 2W + 2, C)
    col = jax.lax.broadcasted_iota(jnp.int32, (r_out, 1), 0) % W
    left_edge = col == 0
    right_edge = col == (W - 1)
    ztap = jnp.zeros((r_out, C), xin.dtype)
    for ky in range(3):
        for kx in range(3):
            t = xp[ky * W + kx: ky * W + kx + r_out, :]
            if kx == 0:                      # tap needs column w-1: zero at w == 0
                t = jnp.where(left_edge, ztap, t)
            elif kx == 2:                    # tap needs column w+1: zero at w == W-1
                t = jnp.where(right_edge, ztap, t)
            idx = ky * 3 + kx
            pref[:, idx * C:(idx + 1) * C] = t
    # ONE MXU matmul: (r_out, 9*C) x (9*C, Cout), f32 accumulation.
    return jnp.dot(pref[...], w, preferred_element_type=jnp.float32)


# ----------------------------------------------------------------------------
# Fused kernel: one (image, H-strip) per grid step.
# ----------------------------------------------------------------------------
def _basic_block_kernel(x_hbm, w1_ref, w2_ref, s1_ref, b1_ref, s2_ref, b2_ref,
                        o_ref, xs, p1, p2, sem, *, TH, W, nstrips):
    """x_hbm : (N*H*W, Cin)  bf16, HBM (memory_space=pl.ANY), pixel-major
       w*    : (9*C, C')     bf16 packed im2col weights
       s*/b* : (1, C')       f32 folded BN
       o_ref : (1, TH*W, Cout) bf16 output block
       xs    : ((TH+4)*W, Cin)   bf16 VMEM scratch (strip + 2-row halo/side)
       p1    : ((TH+2)*W, 9*Cin) bf16 VMEM scratch (conv1 im2col patches)
       p2    : (TH*W, 9*Cmid)    bf16 VMEM scratch (conv2 im2col patches)
    """
    n = pl.program_id(0)
    i = pl.program_id(1)

    body = TH * W                 # strip pixels
    halo = 2 * W                  # 2 image rows of halo pixels per side
    r_in = body + 2 * halo        # xs pixels
    r_mid = body + halo           # conv1 output pixels (strip + 1 row each side)

    base = (n * nstrips + i) * body        # first strip pixel in flat HBM x

    # ---- fetch strip (+ halos) into the VMEM scratch -------------------------
    cp_body = pltpu.make_async_copy(x_hbm.at[pl.ds(base, body)],
                                    xs.at[pl.ds(halo, body)], sem.at[0])
    cp_body.start()

    @pl.when(i > 0)
    def _():
        c = pltpu.make_async_copy(x_hbm.at[pl.ds(base - halo, halo)],
                                  xs.at[pl.ds(0, halo)], sem.at[1])
        c.start()
        c.wait()

    @pl.when(i == 0)
    def _():
        xs[0:halo, :] = jnp.zeros((halo, xs.shape[1]), xs.dtype)

    @pl.when(i < nstrips - 1)
    def _():
        c = pltpu.make_async_copy(x_hbm.at[pl.ds(base + body, halo)],
                                  xs.at[pl.ds(halo + body, halo)], sem.at[2])
        c.start()
        c.wait()

    @pl.when(i == nstrips - 1)
    def _():
        xs[halo + body:r_in, :] = jnp.zeros((halo, xs.shape[1]), xs.dtype)

    cp_body.wait()

    x_all = xs[...]                                          # (r_in, Cin) bf16

    # ---- conv1 + bn1 + relu on TH+2 image rows (strip + 1-row halo/side) -----
    y1 = _conv3x3_same_im2col(x_all, w1_ref[...], p1, W=W, r_out=r_mid)
    y1 = jnp.maximum(y1 * s1_ref[...] + b1_ref[...], 0.0)
    # conv2's SAME padding needs literal zeros at image rows -1 / H; the halo
    # rows recomputed there are only valid for interior strips.
    pix = jax.lax.broadcasted_iota(jnp.int32, (r_mid, 1), 0)
    pad_rows = ((i == 0) & (pix < W)) | ((i == nstrips - 1) & (pix >= r_mid - W))
    y1 = jnp.where(pad_rows, jnp.zeros_like(y1), y1)
    y1 = y1.astype(jnp.bfloat16)                             # single cast for conv2

    # ---- conv2 + bn2 + identity shortcut + relu on the TH strip rows ---------
    y2 = _conv3x3_same_im2col(y1, w2_ref[...], p2, W=W, r_out=body)
    ident = x_all[halo:halo + body, :].astype(jnp.float32)   # promote only here
    y2 = jnp.maximum(y2 * s2_ref[...] + b2_ref[...] + ident, 0.0)

    o_ref[...] = y2.reshape(o_ref.shape).astype(o_ref.dtype)


# ----------------------------------------------------------------------------
# Wrapper
# ----------------------------------------------------------------------------
def basic_block_forward(x_nhwc, loss, packed, *, strip_rows=8):
    """Fused BasicBlock.forward_without_mask (stride=1, downsample=None).

    x_nhwc: (N, H, W, Cin).  Returns (out (N, H, W, Cout) bf16, 0 + loss).
    The model stays NHWC-resident; a torch-style NCHW caller converts once at
    the model boundary.
    """
    N, H, W, Cin = x_nhwc.shape
    Cmid = packed["w1p"].shape[1]
    Cout = packed["w2p"].shape[1]
    assert packed["w1p"].shape[0] == 9 * Cin
    assert packed["w2p"].shape[0] == 9 * Cmid
    assert Cin == Cout, "identity shortcut (downsample=None) requires Cin == Cout"

    TH = strip_rows if (2 <= strip_rows <= H and H % strip_rows == 0) else H
    nstrips = H // TH
    assert (TH * W) % 8 == 0, "strip pixel count must be sublane aligned"

    # (N,H,W,C) -> (N*H*W, C) is a free reshape of a contiguous NHWC array.
    x = x_nhwc.astype(jnp.bfloat16).reshape(N * H * W, Cin)

    kernel = functools.partial(_basic_block_kernel, TH=TH, W=W, nstrips=nstrips)

    # True MACs (no band zeros); bytes include the halo re-fetch per strip.
    flops = 2 * N * H * W * 9 * (Cin * Cmid + Cmid * Cout)
    bytes_accessed = (
        2 * N * nstrips * (TH + 4) * W * Cin        # bf16 strip reads (+halo)
        + 2 * N * H * W * Cout                      # bf16 output writes
        + 2 * (9 * Cin * Cmid + 9 * Cmid * Cout)    # bf16 packed weights
        + 4 * 2 * (Cmid + Cout))                    # f32 folded BN scale/bias

    out = pl.pallas_call(
        kernel,
        out_shape=jax.ShapeDtypeStruct((N, H * W, Cout), jnp.bfloat16),
        grid_spec=pltpu.PrefetchScalarGridSpec(
            num_scalar_prefetch=0,
            grid=(N, nstrips),
            in_specs=[
                pl.BlockSpec(memory_space=pl.ANY),            # x: manual halo DMA
                pl.BlockSpec((9 * Cin, Cmid), lambda n, i: (0, 0)),
                pl.BlockSpec((9 * Cmid, Cout), lambda n, i: (0, 0)),
                pl.BlockSpec((1, Cmid), lambda n, i: (0, 0)),
                pl.BlockSpec((1, Cmid), lambda n, i: (0, 0)),
                pl.BlockSpec((1, Cout), lambda n, i: (0, 0)),
                pl.BlockSpec((1, Cout), lambda n, i: (0, 0)),
            ],
            out_specs=pl.BlockSpec((1, TH * W, Cout), lambda n, i: (n, i, 0)),
            scratch_shapes=[
                pltpu.VMEM(((TH + 4) * W, Cin), jnp.bfloat16),       # strip + halo
                pltpu.VMEM(((TH + 2) * W, 9 * Cin), jnp.bfloat16),   # conv1 patches
                pltpu.VMEM((TH * W, 9 * Cmid), jnp.bfloat16),        # conv2 patches
                pltpu.SemaphoreType.DMA((3,)),
            ],
        ),
        compiler_params=pltpu.CompilerParams(
            dimension_semantics=("parallel", "parallel"),
            vmem_limit_bytes=_pick_vmem_limit()),
        cost_estimate=pl.CostEstimate(flops=flops, transcendentals=0,
                                      bytes_accessed=bytes_accessed),
    )(x, packed["w1p"], packed["w2p"],
      packed["s1"], packed["b1"], packed["s2"], packed["b2"])

    return out.reshape(N, H, W, Cout), 0.0 + loss


# ----------------------------------------------------------------------------
# Pure-JAX reference (lax conv), mirroring the kernel's dtype strategy.
# ----------------------------------------------------------------------------
def _reference(x_nhwc, loss, params):
    dn = ("NHWC", "HWIO", "NHWC")
    x = x_nhwc.astype(jnp.bfloat16)
    w1 = params["w1"].astype(jnp.bfloat16)
    w2 = params["w2"].astype(jnp.bfloat16)
    s1, b1 = fold_bn(params["bn1_gamma"], params["bn1_beta"],
                     params["bn1_mean"], params["bn1_var"])
    s2, b2 = fold_bn(params["bn2_gamma"], params["bn2_beta"],
                     params["bn2_mean"], params["bn2_var"])
    c1 = jax.lax.conv_general_dilated(x, w1, (1, 1), "SAME",
                                      dimension_numbers=dn,
                                      preferred_element_type=jnp.float32)
    y1 = jnp.maximum(c1 * s1 + b1, 0.0).astype(jnp.bfloat16)
    c2 = jax.lax.conv_general_dilated(y1, w2, (1, 1), "SAME",
                                      dimension_numbers=dn,
                                      preferred_element_type=jnp.float32)
    y2 = jnp.maximum(c2 * s2 + b2 + x.astype(jnp.float32), 0.0)
    return y2.astype(jnp.bfloat16), 0.0 + loss


if __name__ == "__main__":
    key = jax.random.PRNGKey(0)
    N, Cin, H, W = 2, 4, 16, 16
    planes = 4  # expansion=1; identity shortcut requires planes == inplanes

    ks = jax.random.split(key, 8)
    # The torch module is NCHW; a real deployment keeps the whole model NHWC,
    # so this layout change happens once at the model boundary, not per block.
    x_nchw = jax.random.normal(ks[0], (N, Cin, H, W), jnp.float32)
    x_nhwc = jnp.transpose(x_nchw, (0, 2, 3, 1))
    loss = jnp.float32(0.25)

    params = {
        # conv weights kept in HWIO (a torch OIHW weight is permuted once at load)
        "w1": 0.1 * jax.random.normal(ks[1], (3, 3, Cin, planes), jnp.float32),
        "w2": 0.1 * jax.random.normal(ks[2], (3, 3, planes, planes), jnp.float32),
        "bn1_gamma": 1.0 + 0.1 * jax.random.normal(ks[3], (planes,), jnp.float32),
        "bn1_beta": 0.1 * jax.random.normal(ks[4], (planes,), jnp.float32),
        "bn1_mean": 0.05 * jax.random.normal(ks[5], (planes,), jnp.float32),
        "bn1_var": jnp.abs(1.0 + 0.1 * jax.random.normal(ks[6], (planes,), jnp.float32)),
        "bn2_gamma": jnp.ones((planes,), jnp.float32),
        "bn2_beta": jnp.zeros((planes,), jnp.float32),
        "bn2_mean": jnp.zeros((planes,), jnp.float32),
        "bn2_var": jnp.abs(1.0 + 0.1 * jax.random.normal(ks[7], (planes,), jnp.float32)),
    }

    # Packed weights / folded BN are built once at model load.
    packed = prepare_basic_block_params(params)

    fwd = jax.jit(basic_block_forward)
    out, loss_out = fwd(x_nhwc, loss, packed)
    out = jax.block_until_ready(out)

    ref_out, ref_loss = _reference(x_nhwc, loss, params)
    assert out.shape == ref_out.shape
    assert jnp.allclose(out.astype(jnp.float32), ref_out.astype(jnp.float32),
                        atol=2e-2, rtol=2e-2), "mismatch vs reference"
    assert jnp.allclose(loss_out, ref_loss)

    print("KERNEL_OK")
</pallas_src>

<mosaic_0001>
module attributes {stable_mosaic.version = 11 : i64} {
  func.func @_basic_block_kernel(%arg0: i32, %arg1: i32, %arg2: memref<512x4xbf16, #tpu.memory_space<any>>, %arg3: memref<36x4xbf16, #tpu.memory_space<vmem>>, %arg4: memref<36x4xbf16, #tpu.memory_space<vmem>>, %arg5: memref<1x4xf32, #tpu.memory_space<vmem>>, %arg6: memref<1x4xf32, #tpu.memory_space<vmem>>, %arg7: memref<1x4xf32, #tpu.memory_space<vmem>>, %arg8: memref<1x4xf32, #tpu.memory_space<vmem>>, %arg9: memref<1x128x4xbf16, #tpu.memory_space<vmem>>, %arg10: memref<192x4xbf16, #tpu.memory_space<vmem>>, %arg11: memref<160x36xbf16, #tpu.memory_space<vmem>>, %arg12: memref<128x36xbf16, #tpu.memory_space<vmem>>, %arg13: memref<3x!tpu.dma_semaphore, #tpu.memory_space<semaphore_mem>>) attributes {dimension_semantics = [#tpu.dimension_semantics<parallel>, #tpu.dimension_semantics<parallel>], iteration_bounds = array<i64: 2, 2>, scalar_prefetch = 0 : i64, scratch_operands = 4 : i64, tpu.core_type = #tpu.core_type<tc>, window_params = [{}, {pipeline_mode = #tpu.pipeline_mode<synchronous>, transform_indices = @transform_1, window_bounds = array<i64: 36, 4>}, {pipeline_mode = #tpu.pipeline_mode<synchronous>, transform_indices = @transform_2, window_bounds = array<i64: 36, 4>}, {pipeline_mode = #tpu.pipeline_mode<synchronous>, transform_indices = @transform_3, window_bounds = array<i64: 1, 4>}, {pipeline_mode = #tpu.pipeline_mode<synchronous>, transform_indices = @transform_4, window_bounds = array<i64: 1, 4>}, {pipeline_mode = #tpu.pipeline_mode<synchronous>, transform_indices = @transform_5, window_bounds = array<i64: 1, 4>}, {pipeline_mode = #tpu.pipeline_mode<synchronous>, transform_indices = @transform_6, window_bounds = array<i64: 1, 4>}, {transform_indices = @transform_7, window_bounds = array<i64: 1, 128, 4>}]} {
    %c2_i32 = arith.constant 2 : i32
    %0 = arith.muli %arg0, %c2_i32 : i32
    %1 = arith.addi %0, %arg1 : i32
    %c128_i32 = arith.constant 128 : i32
    %2 = arith.muli %1, %c128_i32 : i32
    %c0_i32 = arith.constant 0 : i32
    %c0_i32_0 = arith.constant 0 : i32
    %3 = tpu.memref_slice %arg2[%2, %c0_i32_0] : memref<512x4xbf16, #tpu.memory_space<any>> -> memref<128x4xbf16, #tpu.memory_space<any>>
    %c32_i32 = arith.constant 32 : i32
    %c0_i32_1 = arith.constant 0 : i32
    %4 = tpu.memref_slice %arg10[%c32_i32, %c0_i32_1] : memref<192x4xbf16, #tpu.memory_space<vmem>> -> memref<128x4xbf16, #tpu.memory_space<vmem>>
    %5 = tpu.memref_slice %arg13[%c0_i32] : memref<3x!tpu.dma_semaphore, #tpu.memory_space<semaphore_mem>> -> memref<1x!tpu.dma_semaphore, #tpu.memory_space<semaphore_mem>>
    %6 = tpu.memref_squeeze %5 : memref<1x!tpu.dma_semaphore, #tpu.memory_space<semaphore_mem>> -> memref<!tpu.dma_semaphore, #tpu.memory_space<semaphore_mem>>
    tpu.enqueue_dma source(%3 : memref<128x4xbf16, #tpu.memory_space<any>>) target(%4 : memref<128x4xbf16, #tpu.memory_space<vmem>>) target_semaphore(%6 : memref<!tpu.dma_semaphore, #tpu.memory_space<semaphore_mem>>)
    %c0_i32_2 = arith.constant 0 : i32
    %7 = arith.cmpi sgt, %arg1, %c0_i32_2 : i32
    %8 = arith.extui %7 : i1 to i32
    %c0_i32_3 = arith.constant 0 : i32
    %9 = arith.cmpi ne, %8, %c0_i32_3 : i32
    scf.if %9 {
      %c32_i32_86 = arith.constant 32 : i32
      %189 = arith.subi %2, %c32_i32_86 : i32
      %c1_i32_87 = arith.constant 1 : i32
      %c0_i32_88 = arith.constant 0 : i32
      %190 = tpu.memref_slice %arg2[%189, %c0_i32_88] : memref<512x4xbf16, #tpu.memory_space<any>> -> memref<32x4xbf16, #tpu.memory_space<any>>
      %c0_i32_89 = arith.constant 0 : i32
      %c0_i32_90 = arith.constant 0 : i32
      %191 = tpu.memref_slice %arg10[%c0_i32_89, %c0_i32_90] : memref<192x4xbf16, #tpu.memory_space<vmem>> -> memref<32x4xbf16, #tpu.memory_space<vmem>>
      %192 = tpu.memref_slice %arg13[%c1_i32_87] : memref<3x!tpu.dma_semaphore, #tpu.memory_space<semaphore_mem>> -> memref<1x!tpu.dma_semaphore, #tpu.memory_space<semaphore_mem>>
      %193 = tpu.memref_squeeze %192 : memref<1x!tpu.dma_semaphore, #tpu.memory_space<semaphore_mem>> -> memref<!tpu.dma_semaphore, #tpu.memory_space<semaphore_mem>>
      tpu.enqueue_dma source(%190 : memref<32x4xbf16, #tpu.memory_space<any>>) target(%191 : memref<32x4xbf16, #tpu.memory_space<vmem>>) target_semaphore(%193 : memref<!tpu.dma_semaphore, #tpu.memory_space<semaphore_mem>>)
      %c1_i32_91 = arith.constant 1 : i32
      %c0_i32_92 = arith.constant 0 : i32
      %194 = tpu.memref_slice %arg2[%189, %c0_i32_92] : memref<512x4xbf16, #tpu.memory_space<any>> -> memref<32x4xbf16, #tpu.memory_space<any>>
      %c0_i32_93 = arith.constant 0 : i32
      %c0_i32_94 = arith.constant 0 : i32
      %195 = tpu.memref_slice %arg10[%c0_i32_93, %c0_i32_94] : memref<192x4xbf16, #tpu.memory_space<vmem>> -> memref<32x4xbf16, #tpu.memory_space<vmem>>
      %196 = tpu.memref_slice %arg13[%c1_i32_91] : memref<3x!tpu.dma_semaphore, #tpu.memory_space<semaphore_mem>> -> memref<1x!tpu.dma_semaphore, #tpu.memory_space<semaphore_mem>>
      %197 = tpu.memref_squeeze %196 : memref<1x!tpu.dma_semaphore, #tpu.memory_space<semaphore_mem>> -> memref<!tpu.dma_semaphore, #tpu.memory_space<semaphore_mem>>
      tpu.wait_dma2 semaphore(%197 : memref<!tpu.dma_semaphore, #tpu.memory_space<semaphore_mem>>) src(%194 : memref<32x4xbf16, #tpu.memory_space<any>>) dst(%195 : memref<32x4xbf16, #tpu.memory_space<vmem>>)
    } else {
    }
    %c0_i32_4 = arith.constant 0 : i32
    %10 = arith.cmpi eq, %arg1, %c0_i32_4 : i32
    %11 = arith.extui %10 : i1 to i32
    %c0_i32_5 = arith.constant 0 : i32
    %12 = arith.cmpi ne, %11, %c0_i32_5 : i32
    scf.if %12 {
      %cst_86 = arith.constant 0.000000e+00 : bf16
      %189 = vector.broadcast %cst_86 : bf16 to vector<32x4xbf16>
      %c0_87 = arith.constant 0 : index
      %c0_88 = arith.constant 0 : index
      %190 = vector.load %arg10[%c0_87, %c0_88] : memref<192x4xbf16, #tpu.memory_space<vmem>>, vector<32x4xbf16>
      tpu.vector_store %arg10[%c0_87, %c0_88], %189 {strides = array<i32>} : memref<192x4xbf16, #tpu.memory_space<vmem>>, vector<32x4xbf16>,
    } else {
    }
    %c1_i32 = arith.constant 1 : i32
    %13 = arith.cmpi slt, %arg1, %c1_i32 : i32
    %14 = arith.extui %13 : i1 to i32
    %c0_i32_6 = arith.constant 0 : i32
    %15 = arith.cmpi ne, %14, %c0_i32_6 : i32
    scf.if %15 {
      %c128_i32_86 = arith.constant 128 : i32
      %189 = arith.addi %2, %c128_i32_86 : i32
      %c2_i32_87 = arith.constant 2 : i32
      %c0_i32_88 = arith.constant 0 : i32
      %190 = tpu.memref_slice %arg2[%189, %c0_i32_88] : memref<512x4xbf16, #tpu.memory_space<any>> -> memref<32x4xbf16, #tpu.memory_space<any>>
      %c160_i32 = arith.constant 160 : i32
      %c0_i32_89 = arith.constant 0 : i32
      %191 = tpu.memref_slice %arg10[%c160_i32, %c0_i32_89] : memref<192x4xbf16, #tpu.memory_space<vmem>> -> memref<32x4xbf16, #tpu.memory_space<vmem>>
      %192 = tpu.memref_slice %arg13[%c2_i32_87] : memref<3x!tpu.dma_semaphore, #tpu.memory_space<semaphore_mem>> -> memref<1x!tpu.dma_semaphore, #tpu.memory_space<semaphore_mem>>
      %193 = tpu.memref_squeeze %192 : memref<1x!tpu.dma_semaphore, #tpu.memory_space<semaphore_mem>> -> memref<!tpu.dma_semaphore, #tpu.memory_space<semaphore_mem>>
      tpu.enqueue_dma source(%190 : memref<32x4xbf16, #tpu.memory_space<any>>) target(%191 : memref<32x4xbf16, #tpu.memory_space<vmem>>) target_semaphore(%193 : memref<!tpu.dma_semaphore, #tpu.memory_space<semaphore_mem>>)
      %c2_i32_90 = arith.constant 2 : i32
      %c0_i32_91 = arith.constant 0 : i32
      %194 = tpu.memref_slice %arg2[%189, %c0_i32_91] : memref<512x4xbf16, #tpu.memory_space<any>> -> memref<32x4xbf16, #tpu.memory_space<any>>
      %c160_i32_92 = arith.constant 160 : i32
      %c0_i32_93 = arith.constant 0 : i32
      %195 = tpu.memref_slice %arg10[%c160_i32_92, %c0_i32_93] : memref<192x4xbf16, #tpu.memory_space<vmem>> -> memref<32x4xbf16, #tpu.memory_space<vmem>>
      %196 = tpu.memref_slice %arg13[%c2_i32_90] : memref<3x!tpu.dma_semaphore, #tpu.memory_space<semaphore_mem>> -> memref<1x!tpu.dma_semaphore, #tpu.memory_space<semaphore_mem>>
      %197 = tpu.memref_squeeze %196 : memref<1x!tpu.dma_semaphore, #tpu.memory_space<semaphore_mem>> -> memref<!tpu.dma_semaphore, #tpu.memory_space<semaphore_mem>>
      tpu.wait_dma2 semaphore(%197 : memref<!tpu.dma_semaphore, #tpu.memory_space<semaphore_mem>>) src(%194 : memref<32x4xbf16, #tpu.memory_space<any>>) dst(%195 : memref<32x4xbf16, #tpu.memory_space<vmem>>)
    } else {
    }
    %c1_i32_7 = arith.constant 1 : i32
    %16 = arith.cmpi eq, %arg1, %c1_i32_7 : i32
    %17 = arith.extui %16 : i1 to i32
    %c0_i32_8 = arith.constant 0 : i32
    %18 = arith.cmpi ne, %17, %c0_i32_8 : i32
    scf.if %18 {
      %cst_86 = arith.constant 0.000000e+00 : bf16
      %189 = vector.broadcast %cst_86 : bf16 to vector<32x4xbf16>
      %c160 = arith.constant 160 : index
      %c0_87 = arith.constant 0 : index
      %190 = vector.load %arg10[%c160, %c0_87] : memref<192x4xbf16, #tpu.memory_space<vmem>>, vector<32x4xbf16>
      tpu.vector_store %arg10[%c160, %c0_87], %189 {strides = array<i32>} : memref<192x4xbf16, #tpu.memory_space<vmem>>, vector<32x4xbf16>,
    } else {
    }
    %c0_i32_9 = arith.constant 0 : i32
    %c0_i32_10 = arith.constant 0 : i32
    %19 = tpu.memref_slice %arg2[%2, %c0_i32_10] : memref<512x4xbf16, #tpu.memory_space<any>> -> memref<128x4xbf16, #tpu.memory_space<any>>
    %c32_i32_11 = arith.constant 32 : i32
    %c0_i32_12 = arith.constant 0 : i32
    %20 = tpu.memref_slice %arg10[%c32_i32_11, %c0_i32_12] : memref<192x4xbf16, #tpu.memory_space<vmem>> -> memref<128x4xbf16, #tpu.memory_space<vmem>>
    %21 = tpu.memref_slice %arg13[%c0_i32_9] : memref<3x!tpu.dma_semaphore, #tpu.memory_space<semaphore_mem>> -> memref<1x!tpu.dma_semaphore, #tpu.memory_space<semaphore_mem>>
    %22 = tpu.memref_squeeze %21 : memref<1x!tpu.dma_semaphore, #tpu.memory_space<semaphore_mem>> -> memref<!tpu.dma_semaphore, #tpu.memory_space<semaphore_mem>>
    tpu.wait_dma2 semaphore(%22 : memref<!tpu.dma_semaphore, #tpu.memory_space<semaphore_mem>>) src(%19 : memref<128x4xbf16, #tpu.memory_space<any>>) dst(%20 : memref<128x4xbf16, #tpu.memory_space<vmem>>)
    %c0 = arith.constant 0 : index
    %c0_13 = arith.constant 0 : index
    %23 = vector.load %arg10[%c0, %c0_13] : memref<192x4xbf16, #tpu.memory_space<vmem>>, vector<192x4xbf16>
    %c0_14 = arith.constant 0 : index
    %c0_15 = arith.constant 0 : index
    %24 = vector.load %arg3[%c0_14, %c0_15] : memref<36x4xbf16, #tpu.memory_space<vmem>>, vector<36x4xbf16>
    %cst = arith.constant 0.000000e+00 : bf16
    %25 = vector.broadcast %cst : bf16 to vector<1x4xbf16>
    %26 = tpu.concatenate %25, %23, %25 in 0 : vector<1x4xbf16>, vector<192x4xbf16>, vector<1x4xbf16> -> vector<194x4xbf16>
    %27 = tpu.iota {dimensions = array<i32: 0>} : vector<160x1xi32>
    %c16_i32 = arith.constant 16 : i32
    %c0_i32_16 = arith.constant 0 : i32
    %28 = arith.cmpi eq, %c16_i32, %c0_i32_16 : i32
    %c1_i32_17 = arith.constant 1 : i32
    %29 = arith.select %28, %c1_i32_17, %c16_i32 : i32
    %30 = vector.broadcast %29 : i32 to vector<160x1xi32>
    %31 = arith.remsi %27, %30 : vector<160x1xi32>
    %c0_i32_18 = arith.constant 0 : i32
    %32 = vector.broadcast %c0_i32_18 : i32 to vector<160x1xi32>
    %33 = arith.cmpi ne, %31, %32 : vector<160x1xi32>
    %c0_i32_19 = arith.constant 0 : i32
    %34 = vector.broadcast %c0_i32_19 : i32 to vector<160x1xi32>
    %35 = arith.cmpi slt, %31, %34 : vector<160x1xi32>
    %c0_i32_20 = arith.constant 0 : i32
    %36 = arith.cmpi slt, %29, %c0_i32_20 : i32
    %37 = vector.broadcast %36 : i1 to vector<160x1xi1>
    %38 = vector.broadcast %37 : vector<160x1xi1> to vector<160x1xi1>
    %39 = arith.xori %35, %38 : vector<160x1xi1>
    %40 = arith.andi %39, %33 : vector<160x1xi1>
    %41 = vector.broadcast %29 : i32 to vector<160x1xi32>
    %42 = arith.addi %31, %41 : vector<160x1xi32>
    %43 = arith.select %40, %42, %31 : vector<160x1xi1>, vector<160x1xi32>
    %c0_i32_21 = arith.constant 0 : i32
    %44 = vector.broadcast %c0_i32_21 : i32 to vector<160x1xi32>
    %45 = arith.cmpi eq, %43, %44 : vector<160x1xi32>
    %c15_i32 = arith.constant 15 : i32
    %46 = vector.broadcast %c15_i32 : i32 to vector<160x1xi32>
    %47 = arith.cmpi eq, %43, %46 : vector<160x1xi32>
    %cst_22 = arith.constant 0.000000e+00 : bf16
    %48 = vector.broadcast %cst_22 : bf16 to vector<160x4xbf16>
    %49 = vector.extract_strided_slice %26 {offsets = [0, 0], sizes = [160, 4], strides = [1, 1]} : vector<194x4xbf16> to vector<160x4xbf16>
    %50 = vector.shape_cast %45 : vector<160x1xi1> to vector<160x1xi1>
    %51 = vector.broadcast %50 : vector<160x1xi1> to vector<160x4xi1>
    %52 = arith.select %51, %48, %49 : vector<160x4xi1>, vector<160x4xbf16>
    %c0_23 = arith.constant 0 : index
    %c0_24 = arith.constant 0 : index
    %53 = vector.load %arg11[%c0_23, %c0_24] : memref<160x36xbf16, #tpu.memory_space<vmem>>, vector<160x4xbf16>
    tpu.vector_store %arg11[%c0_23, %c0_24], %52 {strides = array<i32>} : memref<160x36xbf16, #tpu.memory_space<vmem>>, vector<160x4xbf16>,
    %54 = vector.extract_strided_slice %26 {offsets = [1, 0], sizes = [160, 4], strides = [1, 1]} : vector<194x4xbf16> to vector<160x4xbf16>
    %c0_25 = arith.constant 0 : index
    %c4 = arith.constant 4 : index
    %55 = vector.load %arg11[%c0_25, %c4] : memref<160x36xbf16, #tpu.memory_space<vmem>>, vector<160x4xbf16>
    tpu.vector_store %arg11[%c0_25, %c4], %54 {strides = array<i32>} : memref<160x36xbf16, #tpu.memory_space<vmem>>, vector<160x4xbf16>,
    %56 = vector.extract_strided_slice %26 {offsets = [2, 0], sizes = [160, 4], strides = [1, 1]} : vector<194x4xbf16> to vector<160x4xbf16>
    %57 = vector.shape_cast %47 : vector<160x1xi1> to vector<160x1xi1>
    %58 = vector.broadcast %57 : vector<160x1xi1> to vector<160x4xi1>
    %59 = arith.select %58, %48, %56 : vector<160x4xi1>, vector<160x4xbf16>
    %c0_26 = arith.constant 0 : index
    %c8 = arith.constant 8 : index
    %60 = vector.load %arg11[%c0_26, %c8] : memref<160x36xbf16, #tpu.memory_space<vmem>>, vector<160x4xbf16>
    tpu.vector_store %arg11[%c0_26, %c8], %59 {strides = array<i32>} : memref<160x36xbf16, #tpu.memory_space<vmem>>, vector<160x4xbf16>,
    %61 = vector.extract_strided_slice %26 {offsets = [16, 0], sizes = [160, 4], strides = [1, 1]} : vector<194x4xbf16> to vector<160x4xbf16>
    %62 = vector.shape_cast %45 : vector<160x1xi1> to vector<160x1xi1>
    %63 = vector.broadcast %62 : vector<160x1xi1> to vector<160x4xi1>
    %64 = arith.select %63, %48, %61 : vector<160x4xi1>, vector<160x4xbf16>
    %c0_27 = arith.constant 0 : index
    %c12 = arith.constant 12 : index
    %65 = vector.load %arg11[%c0_27, %c12] : memref<160x36xbf16, #tpu.memory_space<vmem>>, vector<160x4xbf16>
    tpu.vector_store %arg11[%c0_27, %c12], %64 {strides = array<i32>} : memref<160x36xbf16, #tpu.memory_space<vmem>>, vector<160x4xbf16>,
    %66 = vector.extract_strided_slice %26 {offsets = [17, 0], sizes = [160, 4], strides = [1, 1]} : vector<194x4xbf16> to vector<160x4xbf16>
    %c0_28 = arith.constant 0 : index
    %c16 = arith.constant 16 : index
    %67 = vector.load %arg11[%c0_28, %c16] : memref<160x36xbf16, #tpu.memory_space<vmem>>, vector<160x4xbf16>
    tpu.vector_store %arg11[%c0_28, %c16], %66 {strides = array<i32>} : memref<160x36xbf16, #tpu.memory_space<vmem>>, vector<160x4xbf16>,
    %68 = vector.extract_strided_slice %26 {offsets = [18, 0], sizes = [160, 4], strides = [1, 1]} : vector<194x4xbf16> to vector<160x4xbf16>
    %69 = vector.shape_cast %47 : vector<160x1xi1> to vector<160x1xi1>
    %70 = vector.broadcast %69 : vector<160x1xi1> to vector<160x4xi1>
    %71 = arith.select %70, %48, %68 : vector<160x4xi1>, vector<160x4xbf16>
    %c0_29 = arith.constant 0 : index
    %c20 = arith.constant 20 : index
    %72 = vector.load %arg11[%c0_29, %c20] : memref<160x36xbf16, #tpu.memory_space<vmem>>, vector<160x4xbf16>
    tpu.vector_store %arg11[%c0_29, %c20], %71 {strides = array<i32>} : memref<160x36xbf16, #tpu.memory_space<vmem>>, vector<160x4xbf16>,
    %73 = vector.extract_strided_slice %26 {offsets = [32, 0], sizes = [160, 4], strides = [1, 1]} : vector<194x4xbf16> to vector<160x4xbf16>
    %74 = vector.shape_cast %45 : vector<160x1xi1> to vector<160x1xi1>
    %75 = vector.broadcast %74 : vector<160x1xi1> to vector<160x4xi1>
    %76 = arith.select %75, %48, %73 : vector<160x4xi1>, vector<160x4xbf16>
    %c0_30 = arith.constant 0 : index
    %c24 = arith.constant 24 : index
    %77 = vector.load %arg11[%c0_30, %c24] : memref<160x36xbf16, #tpu.memory_space<vmem>>, vector<160x4xbf16>
    tpu.vector_store %arg11[%c0_30, %c24], %76 {strides = array<i32>} : memref<160x36xbf16, #tpu.memory_space<vmem>>, vector<160x4xbf16>,
    %78 = vector.extract_strided_slice %26 {offsets = [33, 0], sizes = [160, 4], strides = [1, 1]} : vector<194x4xbf16> to vector<160x4xbf16>
    %c0_31 = arith.constant 0 : index
    %c28 = arith.constant 28 : index
    %79 = vector.load %arg11[%c0_31, %c28] : memref<160x36xbf16, #tpu.memory_space<vmem>>, vector<160x4xbf16>
    tpu.vector_store %arg11[%c0_31, %c28], %78 {strides = array<i32>} : memref<160x36xbf16, #tpu.memory_space<vmem>>, vector<160x4xbf16>,
    %80 = vector.extract_strided_slice %26 {offsets = [34, 0], sizes = [160, 4], strides = [1, 1]} : vector<194x4xbf16> to vector<160x4xbf16>
    %81 = vector.shape_cast %47 : vector<160x1xi1> to vector<160x1xi1>
    %82 = vector.broadcast %81 : vector<160x1xi1> to vector<160x4xi1>
    %83 = arith.select %82, %48, %80 : vector<160x4xi1>, vector<160x4xbf16>
    %c0_32 = arith.constant 0 : index
    %c32 = arith.constant 32 : index
    %84 = vector.load %arg11[%c0_32, %c32] : memref<160x36xbf16, #tpu.memory_space<vmem>>, vector<160x4xbf16>
    tpu.vector_store %arg11[%c0_32, %c32], %83 {strides = array<i32>} : memref<160x36xbf16, #tpu.memory_space<vmem>>, vector<160x4xbf16>,
    %c0_33 = arith.constant 0 : index
    %c0_34 = arith.constant 0 : index
    %85 = vector.load %arg11[%c0_33, %c0_34] : memref<160x36xbf16, #tpu.memory_space<vmem>>, vector<160x36xbf16>
    %cst_35 = arith.constant dense<0.000000e+00> : vector<160x4xf32>
    %86 = tpu.matmul %85, %24, %cst_35 {dimension_numbers = #tpu.dot_dimension_numbers<[1], [0], [0], [1], [0, 0, 1, 1], [], []>} : vector<160x36xbf16>, vector<36x4xbf16>, vector<160x4xf32> -> vector<160x4xf32>
    %c0_36 = arith.constant 0 : index
    %c0_37 = arith.constant 0 : index
    %87 = vector.load %arg5[%c0_36, %c0_37] : memref<1x4xf32, #tpu.memory_space<vmem>>, vector<1x4xf32>
    %88 = vector.broadcast %87 : vector<1x4xf32> to vector<160x4xf32>
    %89 = arith.mulf %86, %88 : vector<160x4xf32>
    %c0_38 = arith.constant 0 : index
    %c0_39 = arith.constant 0 : index
    %90 = vector.load %arg6[%c0_38, %c0_39] : memref<1x4xf32, #tpu.memory_space<vmem>>, vector<1x4xf32>
    %91 = vector.broadcast %90 : vector<1x4xf32> to vector<160x4xf32>
    %92 = arith.addf %89, %91 : vector<160x4xf32>
    %cst_40 = arith.constant 0.000000e+00 : f32
    %93 = vector.broadcast %cst_40 : f32 to vector<160x4xf32>
    %94 = arith.maximumf %92, %93 : vector<160x4xf32>
    %95 = tpu.iota {dimensions = array<i32: 0>} : vector<160x1xi32>
    %c0_i32_41 = arith.constant 0 : i32
    %96 = arith.cmpi eq, %arg1, %c0_i32_41 : i32
    %c16_i32_42 = arith.constant 16 : i32
    %97 = vector.broadcast %c16_i32_42 : i32 to vector<160x1xi32>
    %98 = arith.cmpi slt, %95, %97 : vector<160x1xi32>
    %99 = vector.broadcast %96 : i1 to vector<160x1xi1>
    %100 = arith.andi %99, %98 : vector<160x1xi1>
    %c1_i32_43 = arith.constant 1 : i32
    %101 = arith.cmpi eq, %arg1, %c1_i32_43 : i32
    %c144_i32 = arith.constant 144 : i32
    %102 = vector.broadcast %c144_i32 : i32 to vector<160x1xi32>
    %103 = arith.cmpi sge, %95, %102 : vector<160x1xi32>
    %104 = vector.broadcast %101 : i1 to vector<160x1xi1>
    %105 = arith.andi %104, %103 : vector<160x1xi1>
    %106 = arith.ori %100, %105 : vector<160x1xi1>
    %cst_44 = arith.constant 0.000000e+00 : f32
    %107 = vector.broadcast %cst_44 : f32 to vector<160x4xf32>
    %108 = vector.shape_cast %106 : vector<160x1xi1> to vector<160x1xi1>
    %109 = vector.broadcast %108 : vector<160x1xi1> to vector<160x4xi1>
    %110 = arith.select %109, %107, %94 : vector<160x4xi1>, vector<160x4xf32>
    %111 = arith.truncf %110 : vector<160x4xf32> to vector<160x4xbf16>
    %c0_45 = arith.constant 0 : index
    %c0_46 = arith.constant 0 : index
    %112 = vector.load %arg4[%c0_45, %c0_46] : memref<36x4xbf16, #tpu.memory_space<vmem>>, vector<36x4xbf16>
    %cst_47 = arith.constant 0.000000e+00 : bf16
    %113 = vector.broadcast %cst_47 : bf16 to vector<1x4xbf16>
    %114 = tpu.concatenate %113, %111, %113 in 0 : vector<1x4xbf16>, vector<160x4xbf16>, vector<1x4xbf16> -> vector<162x4xbf16>
    %115 = tpu.iota {dimensions = array<i32: 0>} : vector<128x1xi32>
    %c16_i32_48 = arith.constant 16 : i32
    %c0_i32_49 = arith.constant 0 : i32
    %116 = arith.cmpi eq, %c16_i32_48, %c0_i32_49 : i32
    %c1_i32_50 = arith.constant 1 : i32
    %117 = arith.select %116, %c1_i32_50, %c16_i32_48 : i32
    %118 = vector.broadcast %117 : i32 to vector<128x1xi32>
    %119 = arith.remsi %115, %118 : vector<128x1xi32>
    %c0_i32_51 = arith.constant 0 : i32
    %120 = vector.broadcast %c0_i32_51 : i32 to vector<128x1xi32>
    %121 = arith.cmpi ne, %119, %120 : vector<128x1xi32>
    %c0_i32_52 = arith.constant 0 : i32
    %122 = vector.broadcast %c0_i32_52 : i32 to vector<128x1xi32>
    %123 = arith.cmpi slt, %119, %122 : vector<128x1xi32>
    %c0_i32_53 = arith.constant 0 : i32
    %124 = arith.cmpi slt, %117, %c0_i32_53 : i32
    %125 = vector.broadcast %124 : i1 to vector<128x1xi1>
    %126 = vector.broadcast %125 : vector<128x1xi1> to vector<128x1xi1>
    %127 = arith.xori %123, %126 : vector<128x1xi1>
    %128 = arith.andi %127, %121 : vector<128x1xi1>
    %129 = vector.broadcast %117 : i32 to vector<128x1xi32>
    %130 = arith.addi %119, %129 : vector<128x1xi32>
    %131 = arith.select %128, %130, %119 : vector<128x1xi1>, vector<128x1xi32>
    %c0_i32_54 = arith.constant 0 : i32
    %132 = vector.broadcast %c0_i32_54 : i32 to vector<128x1xi32>
    %133 = arith.cmpi eq, %131, %132 : vector<128x1xi32>
    %c15_i32_55 = arith.constant 15 : i32
    %134 = vector.broadcast %c15_i32_55 : i32 to vector<128x1xi32>
    %135 = arith.cmpi eq, %131, %134 : vector<128x1xi32>
    %cst_56 = arith.constant 0.000000e+00 : bf16
    %136 = vector.broadcast %cst_56 : bf16 to vector<128x4xbf16>
    %137 = vector.extract_strided_slice %114 {offsets = [0, 0], sizes = [128, 4], strides = [1, 1]} : vector<162x4xbf16> to vector<128x4xbf16>
    %138 = vector.shape_cast %133 : vector<128x1xi1> to vector<128x1xi1>
    %139 = vector.broadcast %138 : vector<128x1xi1> to vector<128x4xi1>
    %140 = arith.select %139, %136, %137 : vector<128x4xi1>, vector<128x4xbf16>
    %c0_57 = arith.constant 0 : index
    %c0_58 = arith.constant 0 : index
    %141 = vector.load %arg12[%c0_57, %c0_58] : memref<128x36xbf16, #tpu.memory_space<vmem>>, vector<128x4xbf16>
    tpu.vector_store %arg12[%c0_57, %c0_58], %140 {strides = array<i32>} : memref<128x36xbf16, #tpu.memory_space<vmem>>, vector<128x4xbf16>,
    %142 = vector.extract_strided_slice %114 {offsets = [1, 0], sizes = [128, 4], strides = [1, 1]} : vector<162x4xbf16> to vector<128x4xbf16>
    %c0_59 = arith.constant 0 : index
    %c4_60 = arith.constant 4 : index
    %143 = vector.load %arg12[%c0_59, %c4_60] : memref<128x36xbf16, #tpu.memory_space<vmem>>, vector<128x4xbf16>
    tpu.vector_store %arg12[%c0_59, %c4_60], %142 {strides = array<i32>} : memref<128x36xbf16, #tpu.memory_space<vmem>>, vector<128x4xbf16>,
    %144 = vector.extract_strided_slice %114 {offsets = [2, 0], sizes = [128, 4], strides = [1, 1]} : vector<162x4xbf16> to vector<128x4xbf16>
    %145 = vector.shape_cast %135 : vector<128x1xi1> to vector<128x1xi1>
    %146 = vector.broadcast %145 : vector<128x1xi1> to vector<128x4xi1>
    %147 = arith.select %146, %136, %144 : vector<128x4xi1>, vector<128x4xbf16>
    %c0_61 = arith.constant 0 : index
    %c8_62 = arith.constant 8 : index
    %148 = vector.load %arg12[%c0_61, %c8_62] : memref<128x36xbf16, #tpu.memory_space<vmem>>, vector<128x4xbf16>
    tpu.vector_store %arg12[%c0_61, %c8_62], %147 {strides = array<i32>} : memref<128x36xbf16, #tpu.memory_space<vmem>>, vector<128x4xbf16>,
    %149 = vector.extract_strided_slice %114 {offsets = [16, 0], sizes = [128, 4], strides = [1, 1]} : vector<162x4xbf16> to vector<128x4xbf16>
    %150 = vector.shape_cast %133 : vector<128x1xi1> to vector<128x1xi1>
    %151 = vector.broadcast %150 : vector<128x1xi1> to vector<128x4xi1>
    %152 = arith.select %151, %136, %149 : vector<128x4xi1>, vector<128x4xbf16>
    %c0_63 = arith.constant 0 : index
    %c12_64 = arith.constant 12 : index
    %153 = vector.load %arg12[%c0_63, %c12_64] : memref<128x36xbf16, #tpu.memory_space<vmem>>, vector<128x4xbf16>
    tpu.vector_store %arg12[%c0_63, %c12_64], %152 {strides = array<i32>} : memref<128x36xbf16, #tpu.memory_space<vmem>>, vector<128x4xbf16>,
    %154 = vector.extract_strided_slice %114 {offsets = [17, 0], sizes = [128, 4], strides = [1, 1]} : vector<162x4xbf16> to vector<128x4xbf16>
    %c0_65 = arith.constant 0 : index
    %c16_66 = arith.constant 16 : index
    %155 = vector.load %arg12[%c0_65, %c16_66] : memref<128x36xbf16, #tpu.memory_space<vmem>>, vector<128x4xbf16>
    tpu.vector_store %arg12[%c0_65, %c16_66], %154 {strides = array<i32>} : memref<128x36xbf16, #tpu.memory_space<vmem>>, vector<128x4xbf16>,
    %156 = vector.extract_strided_slice %114 {offsets = [18, 0], sizes = [128, 4], strides = [1, 1]} : vector<162x4xbf16> to vector<128x4xbf16>
    %157 = vector.shape_cast %135 : vector<128x1xi1> to vector<128x1xi1>
    %158 = vector.broadcast %157 : vector<128x1xi1> to vector<128x4xi1>
    %159 = arith.select %158, %136, %156 : vector<128x4xi1>, vector<128x4xbf16>
    %c0_67 = arith.constant 0 : index
    %c20_68 = arith.constant 20 : index
    %160 = vector.load %arg12[%c0_67, %c20_68] : memref<128x36xbf16, #tpu.memory_space<vmem>>, vector<128x4xbf16>
    tpu.vector_store %arg12[%c0_67, %c20_68], %159 {strides = array<i32>} : memref<128x36xbf16, #tpu.memory_space<vmem>>, vector<128x4xbf16>,
    %161 = vector.extract_strided_slice %114 {offsets = [32, 0], sizes = [128, 4], strides = [1, 1]} : vector<162x4xbf16> to vector<128x4xbf16>
    %162 = vector.shape_cast %133 : vector<128x1xi1> to vector<128x1xi1>
    %163 = vector.broadcast %162 : vector<128x1xi1> to vector<128x4xi1>
    %164 = arith.select %163, %136, %161 : vector<128x4xi1>, vector<128x4xbf16>
    %c0_69 = arith.constant 0 : index
    %c24_70 = arith.constant 24 : index
    %165 = vector.load %arg12[%c0_69, %c24_70] : memref<128x36xbf16, #tpu.memory_space<vmem>>, vector<128x4xbf16>
    tpu.vector_store %arg12[%c0_69, %c24_70], %164 {strides = array<i32>} : memref<128x36xbf16, #tpu.memory_space<vmem>>, vector<128x4xbf16>,
    %166 = vector.extract_strided_slice %114 {offsets = [33, 0], sizes = [128, 4], strides = [1, 1]} : vector<162x4xbf16> to vector<128x4xbf16>
    %c0_71 = arith.constant 0 : index
    %c28_72 = arith.constant 28 : index
    %167 = vector.load %arg12[%c0_71, %c28_72] : memref<128x36xbf16, #tpu.memory_space<vmem>>, vector<128x4xbf16>
    tpu.vector_store %arg12[%c0_71, %c28_72], %166 {strides = array<i32>} : memref<128x36xbf16, #tpu.memory_space<vmem>>, vector<128x4xbf16>,
    %168 = vector.extract_strided_slice %114 {offsets = [34, 0], sizes = [128, 4], strides = [1, 1]} : vector<162x4xbf16> to vector<128x4xbf16>
    %169 = vector.shape_cast %135 : vector<128x1xi1> to vector<128x1xi1>
    %170 = vector.broadcast %169 : vector<128x1xi1> to vector<128x4xi1>
    %171 = arith.select %170, %136, %168 : vector<128x4xi1>, vector<128x4xbf16>
    %c0_73 = arith.constant 0 : index
    %c32_74 = arith.constant 32 : index
    %172 = vector.load %arg12[%c0_73, %c32_74] : memref<128x36xbf16, #tpu.memory_space<vmem>>, vector<128x4xbf16>
    tpu.vector_store %arg12[%c0_73, %c32_74], %171 {strides = array<i32>} : memref<128x36xbf16, #tpu.memory_space<vmem>>, vector<128x4xbf16>,
    %c0_75 = arith.constant 0 : index
    %c0_76 = arith.constant 0 : index
    %173 = vector.load %arg12[%c0_75, %c0_76] : memref<128x36xbf16, #tpu.memory_space<vmem>>, vector<128x36xbf16>
    %cst_77 = arith.constant dense<0.000000e+00> : vector<128x4xf32>
    %174 = tpu.matmul %173, %112, %cst_77 {dimension_numbers = #tpu.dot_dimension_numbers<[1], [0], [0], [1], [0, 0, 1, 1], [], []>} : vector<128x36xbf16>, vector<36x4xbf16>, vector<128x4xf32> -> vector<128x4xf32>
    %175 = vector.extract_strided_slice %23 {offsets = [32, 0], sizes = [128, 4], strides = [1, 1]} : vector<192x4xbf16> to vector<128x4xbf16>
    %176 = arith.extf %175 : vector<128x4xbf16> to vector<128x4xf32>
    %c0_78 = arith.constant 0 : index
    %c0_79 = arith.constant 0 : index
    %177 = vector.load %arg7[%c0_78, %c0_79] : memref<1x4xf32, #tpu.memory_space<vmem>>, vector<1x4xf32>
    %178 = vector.broadcast %177 : vector<1x4xf32> to vector<128x4xf32>
    %179 = arith.mulf %174, %178 : vector<128x4xf32>
    %c0_80 = arith.constant 0 : index
    %c0_81 = arith.constant 0 : index
    %180 = vector.load %arg8[%c0_80, %c0_81] : memref<1x4xf32, #tpu.memory_space<vmem>>, vector<1x4xf32>
    %181 = vector.broadcast %180 : vector<1x4xf32> to vector<128x4xf32>
    %182 = arith.addf %179, %181 : vector<128x4xf32>
    %183 = arith.addf %182, %176 : vector<128x4xf32>
    %cst_82 = arith.constant 0.000000e+00 : f32
    %184 = vector.broadcast %cst_82 : f32 to vector<128x4xf32>
    %185 = arith.maximumf %183, %184 : vector<128x4xf32>
    %186 = vector.shape_cast %185 : vector<128x4xf32> to vector<1x128x4xf32>
    %187 = arith.truncf %186 : vector<1x128x4xf32> to vector<1x128x4xbf16>
    %c0_83 = arith.constant 0 : index
    %c0_84 = arith.constant 0 : index
    %c0_85 = arith.constant 0 : index
    %188 = vector.load %arg9[%c0_83, %c0_84, %c0_85] : memref<1x128x4xbf16, #tpu.memory_space<vmem>>, vector<1x128x4xbf16>
    tpu.vector_store %arg9[%c0_83, %c0_84, %c0_85], %187 {strides = array<i32>} : memref<1x128x4xbf16, #tpu.memory_space<vmem>>, vector<1x128x4xbf16>,
    return
  }
  func.func @transform_1(%arg0: i32, %arg1: i32) -> (i32, i32) {
    %c0_i32 = arith.constant 0 : i32
    %c0_i32_0 = arith.constant 0 : i32
    %c0_i32_1 = arith.constant 0 : i32
    return %c0_i32, %c0_i32_0 : i32, i32
  }
  func.func @transform_2(%arg0: i32, %arg1: i32) -> (i32, i32) {
    %c0_i32 = arith.constant 0 : i32
    %c0_i32_0 = arith.constant 0 : i32
    %c0_i32_1 = arith.constant 0 : i32
    return %c0_i32, %c0_i32_0 : i32, i32
  }
  func.func @transform_3(%arg0: i32, %arg1: i32) -> (i32, i32) {
    %c0_i32 = arith.constant 0 : i32
    %c0_i32_0 = arith.constant 0 : i32
    %c0_i32_1 = arith.constant 0 : i32
    return %c0_i32, %c0_i32_0 : i32, i32
  }
  func.func @transform_4(%arg0: i32, %arg1: i32) -> (i32, i32) {
    %c0_i32 = arith.constant 0 : i32
    %c0_i32_0 = arith.constant 0 : i32
    %c0_i32_1 = arith.constant 0 : i32
    return %c0_i32, %c0_i32_0 : i32, i32
  }
  func.func @transform_5(%arg0: i32, %arg1: i32) -> (i32, i32) {
    %c0_i32 = arith.constant 0 : i32
    %c0_i32_0 = arith.constant 0 : i32
    %c0_i32_1 = arith.constant 0 : i32
    return %c0_i32, %c0_i32_0 : i32, i32
  }
  func.func @transform_6(%arg0: i32, %arg1: i32) -> (i32, i32) {
    %c0_i32 = arith.constant 0 : i32
    %c0_i32_0 = arith.constant 0 : i32
    %c0_i32_1 = arith.constant 0 : i32
    return %c0_i32, %c0_i32_0 : i32, i32
  }
  func.func @transform_7(%arg0: i32, %arg1: i32) -> (i32, i32, i32) {
    %c0_i32 = arith.constant 0 : i32
    %c0_i32_0 = arith.constant 0 : i32
    return %arg0, %arg1, %c0_i32 : i32, i32, i32
  }
}

</mosaic_0001>

<llo_original>
// kernel: basic_block_forward.1
$region0: #{basic_block_forward.1}
  #allocation0 [shape = 'u32[]', space=smem, size = 0x4, offset = 0x4, fixed_abs, tag = 'smem constant byte address 0x4 - core index']
  #allocation1 [shape = 'u32[144,128]{1,0:T(1,128)}', space=vmem, size = 0x12000, scoped, tag = 'internal scratch']
  #allocation2 [shape = 'bf16[192,4]{1,0:T(16,128)(2,1)}', space=vmem, size = 0xc000, scoped, tag = 'scratch operand']
  #allocation3 [shape = 'bf16[160,36]{1,0:T(16,128)(2,1)}', space=vmem, size = 0xa000, scoped, tag = 'scratch operand']
  #allocation4 [shape = 'bf16[128,36]{1,0:T(16,128)(2,1)}', space=vmem, size = 0x8000, scoped, tag = 'scratch operand']
  #allocation5 [shape = 's32[3]{0}', space=sflag, size = 0xc, scoped, tag = 'scratch operand']
  #allocation18 [shape = 's32[]', space=sflag, size = 0x4, offset = 0, fixed_abs, tag = 'sflag constant byte address 0x0 - dummy sync flag']
  #allocation19 [shape = 's32[]', space=sflag, size = 0x4, offset = 0, fixed_abs, tag = 'sflag constant byte address 0x0 - dummy sync flag']
  #allocation20 [shape = 'u32[]', space=smem, size = 0x4, offset = 0x44, fixed_abs, tag = 'smem constant byte address 0x44 - assertion arg 0']
  #allocation21 [shape = 'u32[]', space=smem, size = 0x4, offset = 0x48, fixed_abs, tag = 'smem constant byte address 0x48 - assertion arg 1']
  #allocation22 [shape = 's32[]', space=sflag, size = 0x4, offset = 0, fixed_abs, tag = 'sflag constant byte address 0x0 - dummy sync flag']
  #allocation23 [shape = 's32[]', space=sflag, size = 0x4, offset = 0, fixed_abs, tag = 'sflag constant byte address 0x0 - dummy sync flag']
  #allocation24 [shape = 's32[]', space=sflag, size = 0x4, offset = 0, fixed_abs, tag = 'sflag constant byte address 0x0 - dummy sync flag']
  #allocation25 [shape = 's32[]', space=sflag, size = 0x4, offset = 0, fixed_abs, tag = 'sflag constant byte address 0x0 - dummy sync flag']
  %s0 = inlined_call_operand.hbm [shape: bf16[512,4], index: 0, kind: input, shape index: {}]
  %s1 = inlined_call_operand.hbm [shape: bf16[36,4], index: 1, kind: input, shape index: {}]
  %s2 = inlined_call_operand.hbm [shape: bf16[36,4], index: 2, kind: input, shape index: {}]
  %s3 = inlined_call_operand.hbm [shape: f32[1,4], index: 3, kind: input, shape index: {}]
  %s4 = inlined_call_operand.hbm [shape: f32[1,4], index: 4, kind: input, shape index: {}]
  %s5 = inlined_call_operand.hbm [shape: f32[1,4], index: 5, kind: input, shape index: {}]
  %s6 = inlined_call_operand.hbm [shape: f32[1,4], index: 6, kind: input, shape index: {}]
  %s7 = inlined_call_operand.hbm [shape: bf16[2,256,4], index: 7, kind: output, shape index: {}]
  %s8 = sld [smem:[#allocation0]]
  $region109: #{basic_block_forward.1} parent=0
    _
  %s10 = ssub.s32 1, %s8
  %s11 = scalar_select 0, %s10, %s8
  $region1: #{basic_block_forward.1} parent=0
    #allocation6 [shape = 'u8[10240]{0}', space=vmem, size = 0x2800, scoped, tag = 'input window, operand 1, single buffered']
    #allocation7 [shape = 's32[2]{0}', space=sflag, size = 0x8, scoped, tag = 'scoped memory for basic_block_forward.1']
    #allocation8 [shape = 's32[2]{0}', space=sflag, size = 0x8, scoped, tag = 'scoped memory for basic_block_forward.1']
    #allocation9 [shape = 'u8[10240]{0}', space=vmem, size = 0x2800, scoped, tag = 'input window, operand 2, single buffered']
    #allocation10 [shape = 's32[1]{0}', space=sflag, size = 0x4, scoped, tag = 'scoped memory for basic_block_forward.1']
    #allocation11 [shape = 'u8[512]{0}', space=vmem, size = 0x400, scoped, tag = 'input window, operand 3, single buffered']
    #allocation12 [shape = 'u8[512]{0}', space=vmem, size = 0x400, scoped, tag = 'input window, operand 4, single buffered']
    #allocation13 [shape = 's32[1]{0}', space=sflag, size = 0x4, scoped, tag = 'scoped memory for basic_block_forward.1']
    #allocation14 [shape = 'u8[512]{0}', space=vmem, size = 0x400, scoped, tag = 'input window, operand 5, single buffered']
    #allocation15 [shape = 'u8[512]{0}', space=vmem, size = 0x400, scoped, tag = 'input window, operand 6, single buffered']
    #allocation16 [shape = 's32[1]{0}', space=sflag, size = 0x4, scoped, tag = 'scoped memory for basic_block_forward.1']
    #allocation17 [shape = 'u8[65536]{0}', space=vmem, size = 0x10000, scoped, tag = 'output window, operand 0']
    %12 = vsyncpa [#allocation7], 0
    %13 = vsyncpa [#allocation10], 0
    %14 = vsyncpa [#allocation13], 0
    %15 = vsyncpa [#allocation16], 0
    %16 = vsyncpa [#allocation8], 0
    %s17 = scalar_lea.sflag [#allocation8], 1
    %18 = vsyncpa %s17, 0
    loop: start=0, step=1, limit=6
    $region2: #{basic_block_forward.1} parent=1 // loop_pre_header
      _
    $region3: #{basic_block_forward.1} parent=1 // loop_header
      %s20 = sphi 0, %s24
      %p21 = scmp.ge.s32.totalorder %s20, 6
      %s27 = sphi 0, %s39
      %s28 = sphi 0, %s35
      %s29 = sphi 0, %s27
      %s30 = sphi 0, %s28
      %s31 = sphi 0, %s29
      %s32 = sphi 0, %s30
      %s40 = sphi 0, %s40
      %s42 = sphi 0, %s40
      %s43 = sphi 0, %s42
      %s57 = sphi 0, %s43
      %s61 = sphi 0, %s61
      %s63 = sphi 0, %s61
      %s64 = sphi 0, %s63
      %s78 = sphi 0, %s64
      %s82 = sphi 0, %s82
      %s84 = sphi 0, %s82
      %s85 = sphi 0, %s84
      %s99 = sphi 0, %s85
      %s103 = sphi 0, %s103
      %s105 = sphi 0, %s103
      %s106 = sphi 0, %s105
      %s120 = sphi 0, %s106
      %s124 = sphi 0, %s124
      %s126 = sphi 0, %s124
      %s127 = sphi 0, %s126
      %s141 = sphi 0, %s127
      %s145 = sphi 0, %s145
      %s147 = sphi 0, %s145
      %s148 = sphi 0, %s147
      %s162 = sphi 0, %s148
      %s170 = sphi 0, %s172
      %s173 = sphi 0, %s170
      %s174 = sphi 0, %s173
      %s190 = sphi 0, %s174
    $region4: #{basic_block_forward.1} parent=1 // loop_header_branch
      %23 = sbr.rel (%p21) target = $region8
    $region5: #{basic_block_forward.1} parent=1 // loop_body
      %s25 = ssub.s32 %s20, 1
      %s26 = ssub.s32 %s20, 2
      %s33 = sadd.s32 1, %s28
      %p34 = scmp.ge.s32.totalorder %s33, 2
      %s35 = scalar_select %p34, 0, %s33
      %s36 = sadd.s32 1, %s27
      %s37 = scalar_select %p34, %s36, %s27
      %p38 = scmp.ge.s32.totalorder %s37, 2
      %s39 = scalar_select %p38, 0, %s37
      %s41 = sadd.s32 %s40, 1
      %p44 = scmp.eq.s32.totalorder %s20, 3
      %p45 = scmp.ne.s32.totalorder %s40, %s42
      %p46 = scmp.eq.s32.totalorder %s20, 0
      %p47 = por %p45, %p46
      %p48 = scmp.ne.s32.totalorder %s40, %s42
      %p49 = scmp.eq.s32.totalorder %s25, 3
      %p50 = por %p48, %p49
      %p51 = scmp.ne.s32.totalorder %s42, %s43
      %p52 = scmp.eq.s32.totalorder %s25, 0
      %p53 = por %p51, %p52
      %p54 = scmp.ne.s32.totalorder %s42, %s43
      %p55 = scmp.eq.s32.totalorder %s26, 3
      %p56 = por %p54, %p55
      %p58 = scmp.ne.s32.totalorder %s43, %s57
      %p59 = scmp.eq.s32.totalorder %s26, 0
      %p60 = por %p58, %p59
      %s62 = sadd.s32 %s61, 1
      %p65 = scmp.eq.s32.totalorder %s20, 3
      %p66 = scmp.ne.s32.totalorder %s61, %s63
      %p67 = scmp.eq.s32.totalorder %s20, 0
      %p68 = por %p66, %p67
      %p69 = scmp.ne.s32.totalorder %s61, %s63
      %p70 = scmp.eq.s32.totalorder %s25, 3
      %p71 = por %p69, %p70
      %p72 = scmp.ne.s32.totalorder %s63, %s64
      %p73 = scmp.eq.s32.totalorder %s25, 0
      %p74 = por %p72, %p73
      %p75 = scmp.ne.s32.totalorder %s63, %s64
      %p76 = scmp.eq.s32.totalorder %s26, 3
      %p77 = por %p75, %p76
      %p79 = scmp.ne.s32.totalorder %s64, %s78
      %p80 = scmp.eq.s32.totalorder %s26, 0
      %p81 = por %p79, %p80
      %s83 = sadd.s32 %s82, 1
      %p86 = scmp.eq.s32.totalorder %s20, 3
      %p87 = scmp.ne.s32.totalorder %s82, %s84
      %p88 = scmp.eq.s32.totalorder %s20, 0
      %p89 = por %p87, %p88
      %p90 = scmp.ne.s32.totalorder %s82, %s84
      %p91 = scmp.eq.s32.totalorder %s25, 3
      %p92 = por %p90, %p91
      %p93 = scmp.ne.s32.totalorder %s84, %s85
      %p94 = scmp.eq.s32.totalorder %s25, 0
      %p95 = por %p93, %p94
      %p96 = scmp.ne.s32.totalorder %s84, %s85
      %p97 = scmp.eq.s32.totalorder %s26, 3
      %p98 = por %p96, %p97
      %p100 = scmp.ne.s32.totalorder %s85, %s99
      %p101 = scmp.eq.s32.totalorder %s26, 0
      %p102 = por %p100, %p101
      %s104 = sadd.s32 %s103, 1
      %p107 = scmp.eq.s32.totalorder %s20, 3
      %p108 = scmp.ne.s32.totalorder %s103, %s105
      %p109 = scmp.eq.s32.totalorder %s20, 0
      %p110 = por %p108, %p109
      %p111 = scmp.ne.s32.totalorder %s103, %s105
      %p112 = scmp.eq.s32.totalorder %s25, 3
      %p113 = por %p111, %p112
      %p114 = scmp.ne.s32.totalorder %s105, %s106
      %p115 = scmp.eq.s32.totalorder %s25, 0
      %p116 = por %p114, %p115
      %p117 = scmp.ne.s32.totalorder %s105, %s106
      %p118 = scmp.eq.s32.totalorder %s26, 3
      %p119 = por %p117, %p118
      %p121 = scmp.ne.s32.totalorder %s106, %s120
      %p122 = scmp.eq.s32.totalorder %s26, 0
      %p123 = por %p121, %p122
      %s125 = sadd.s32 %s124, 1
      %p128 = scmp.eq.s32.totalorder %s20, 3
      %p129 = scmp.ne.s32.totalorder %s124, %s126
      %p130 = scmp.eq.s32.totalorder %s20, 0
      %p131 = por %p129, %p130
      %p132 = scmp.ne.s32.totalorder %s124, %s126
      %p133 = scmp.eq.s32.totalorder %s25, 3
      %p134 = por %p132, %p133
      %p135 = scmp.ne.s32.totalorder %s126, %s127
      %p136 = scmp.eq.s32.totalorder %s25, 0
      %p137 = por %p135, %p136
      %p138 = scmp.ne.s32.totalorder %s126, %s127
      %p139 = scmp.eq.s32.totalorder %s26, 3
      %p140 = por %p138, %p139
      %p142 = scmp.ne.s32.totalorder %s127, %s141
      %p143 = scmp.eq.s32.totalorder %s26, 0
      %p144 = por %p142, %p143
      %s146 = sadd.s32 %s145, 1
      %p149 = scmp.eq.s32.totalorder %s20, 3
      %p150 = scmp.ne.s32.totalorder %s145, %s147
      %p151 = scmp.eq.s32.totalorder %s20, 0
      %p152 = por %p150, %p151
      %p153 = scmp.ne.s32.totalorder %s145, %s147
      %p154 = scmp.eq.s32.totalorder %s25, 3
      %p155 = por %p153, %p154
      %p156 = scmp.ne.s32.totalorder %s147, %s148
      %p157 = scmp.eq.s32.totalorder %s25, 0
      %p158 = por %p156, %p157
      %p159 = scmp.ne.s32.totalorder %s147, %s148
      %p160 = scmp.eq.s32.totalorder %s26, 3
      %p161 = por %p159, %p160
      %p163 = scmp.ne.s32.totalorder %s148, %s162
      %p164 = scmp.eq.s32.totalorder %s26, 0
      %p165 = por %p163, %p164
      %s166 = ssub.s32 %s27, %s39
      %s167 = ssub.s32 %s28, %s35
      %s168 = sor.u32 %s166, %s167
      %p169 = scmp.eq.s32.totalorder %s168, 0
      %s171 = sadd.s32 %s170, 1
      %s172 = scalar_select %p169, %s170, %s171
      %p175 = pneg %p169
      %p176 = scmp.eq.s32.totalorder %s20, 3
      %p177 = por %p175, %p176
      %p178 = scmp.ne.s32.totalorder %s170, %s173
      %p179 = scmp.eq.s32.totalorder %s20, 0
      %p180 = por %p178, %p179
      %p181 = scmp.ne.s32.totalorder %s170, %s173
      %p182 = scmp.eq.s32.totalorder %s25, 3
      %p183 = por %p181, %p182
      %p184 = scmp.ne.s32.totalorder %s173, %s174
      %p185 = scmp.eq.s32.totalorder %s25, 0
      %p186 = por %p184, %p185
      %p187 = scmp.ne.s32.totalorder %s173, %s174
      %p188 = scmp.eq.s32.totalorder %s26, 3
      %p189 = por %p187, %p188
      %p191 = scmp.ne.s32.totalorder %s174, %s190
      %p192 = scmp.eq.s32.totalorder %s26, 0
      %p193 = por %p191, %p192
      %p194 = scmp.le.s32.totalorder 1, %s20
      %p195 = scmp.lt.s32.totalorder %s20, 5
      %p196 = pnand %p194, %p195
      %p197 = pneg %p196
      // Predicated region
      $region9: #{basic_block_forward.1} parent=5 // pred_check
        _
      $region10: #{basic_block_forward.1} parent=5 // pred_check_branch
        %199 = sbr.rel (%p196) target = $region12
      $region11: #{basic_block_forward.1} parent=5 // pred_region
        %s200 = ssub.s32 %s20, 1
        // Predicated region
        $region13: #{basic_block_forward.1} parent=11 // pred_check
          %p201 = pneg %p53
        $region14: #{basic_block_forward.1} parent=11 // pred_check_branch
          %203 = sbr.rel (%p201) target = $region16
        $region15: #{basic_block_forward.1} parent=11 // pred_region
          %s205 = ssub.s32 320, 320
          %206 = vsyncadd [#allocation7], %s205
          %s207 = sshll.u32 [#allocation6], 4
          %s208 = int_to_ptr.vmem [resolvable:$true] %s207
          %213 = dma.hbm_to_vmem [thread:$0]  %s1, 320, %s208, [#allocation7], 64, 64, 4
        $region16: #{basic_block_forward.1} parent=11 // pred_fallthru
          _
        // Predicated region
        $region17: #{basic_block_forward.1} parent=11 // pred_check
          %p214 = pneg %p74
        $region18: #{basic_block_forward.1} parent=11 // pred_check_branch
          %216 = sbr.rel (%p214) target = $region20
        $region19: #{basic_block_forward.1} parent=11 // pred_region
          %s218 = ssub.s32 320, 320
          %219 = vsyncadd [#allocation10], %s218
          %s220 = sshll.u32 [#allocation9], 4
          %s221 = int_to_ptr.vmem [resolvable:$true] %s220
          %226 = dma.hbm_to_vmem [thread:$0]  %s2, 320, %s221, [#allocation10], 64, 64, 4
        $region20: #{basic_block_forward.1} parent=11 // pred_fallthru
          _
        // Predicated region
        $region21: #{basic_block_forward.1} parent=11 // pred_check
          %p227 = pneg %p95
        $region22: #{basic_block_forward.1} parent=11 // pred_check_branch
          %229 = sbr.rel (%p227) target = $region24
        $region23: #{basic_block_forward.1} parent=11 // pred_region
          %s231 = ssub.s32 16, 16
          %232 = vsyncadd [#allocation10], %s231
          %s234 = sshll.u32 [#allocation11], 4
          %s235 = int_to_ptr.vmem [resolvable:$true] %s234
          %237 = dma.hbm_to_vmem [thread:$0]  %s3, 16, %s235, [#allocation10]
        $region24: #{basic_block_forward.1} parent=11 // pred_fallthru
          _
        // Predicated region
        $region25: #{basic_block_forward.1} parent=11 // pred_check
          %p238 = pneg %p116
        $region26: #{basic_block_forward.1} parent=11 // pred_check_branch
          %240 = sbr.rel (%p238) target = $region28
        $region27: #{basic_block_forward.1} parent=11 // pred_region
          %s242 = ssub.s32 16, 16
          %243 = vsyncadd [#allocation13], %s242
          %s245 = sshll.u32 [#allocation12], 4
          %s246 = int_to_ptr.vmem [resolvable:$true] %s245
          %248 = dma.hbm_to_vmem [thread:$0]  %s4, 16, %s246, [#allocation13]
        $region28: #{basic_block_forward.1} parent=11 // pred_fallthru
          _
        // Predicated region
        $region29: #{basic_block_forward.1} parent=11 // pred_check
          %p249 = pneg %p137
        $region30: #{basic_block_forward.1} parent=11 // pred_check_branch
          %251 = sbr.rel (%p249) target = $region32
        $region31: #{basic_block_forward.1} parent=11 // pred_region
          %s253 = ssub.s32 16, 16
          %254 = vsyncadd [#allocation13], %s253
          %s256 = sshll.u32 [#allocation14], 4
          %s257 = int_to_ptr.vmem [resolvable:$true] %s256
          %259 = dma.hbm_to_vmem [thread:$0]  %s5, 16, %s257, [#allocation13]
        $region32: #{basic_block_forward.1} parent=11 // pred_fallthru
          _
        // Predicated region
        $region33: #{basic_block_forward.1} parent=11 // pred_check
          %p260 = pneg %p158
        $region34: #{basic_block_forward.1} parent=11 // pred_check_branch
          %262 = sbr.rel (%p260) target = $region36
        $region35: #{basic_block_forward.1} parent=11 // pred_region
          %s264 = ssub.s32 16, 16
          %265 = vsyncadd [#allocation16], %s264
          %s267 = sshll.u32 [#allocation15], 4
          %s268 = int_to_ptr.vmem [resolvable:$true] %s267
          %270 = dma.hbm_to_vmem [thread:$0]  %s6, 16, %s268, [#allocation16]
        $region36: #{basic_block_forward.1} parent=11 // pred_fallthru
          _
      $region12: #{basic_block_forward.1} parent=5 // pred_fallthru
        _
      %p271 = scmp.lt.s32.totalorder %s20, 4
      // Predicated region
      $region37: #{basic_block_forward.1} parent=5 // pred_check
        %p272 = pneg %p271
      $region38: #{basic_block_forward.1} parent=5 // pred_check_branch
        %274 = sbr.rel (%p272) target = $region40
      $region39: #{basic_block_forward.1} parent=5 // pred_region
        _
      $region40: #{basic_block_forward.1} parent=5 // pred_fallthru
        _
      %p275 = scmp.le.s32.totalorder 1, %s20
      %p276 = scmp.lt.s32.totalorder %s20, 5
      %p277 = pnand %p275, %p276
      %p278 = pneg %p277
      // Predicated region
      $region41: #{basic_block_forward.1} parent=5 // pred_check
        _
      $region42: #{basic_block_forward.1} parent=5 // pred_check_branch
        %280 = sbr.rel (%p277) target = $region44
      $region43: #{basic_block_forward.1} parent=5 // pred_region
        %s281 = ssub.s32 %s20, 1
        // Predicated region
        $region45: #{basic_block_forward.1} parent=43 // pred_check
          %p282 = pneg %p53
        $region46: #{basic_block_forward.1} parent=43 // pred_check_branch
          %284 = sbr.rel (%p282) target = $region48
        $region47: #{basic_block_forward.1} parent=43 // pred_region
          %285 = dma.done [#allocation7], 320
        $region48: #{basic_block_forward.1} parent=43 // pred_fallthru
          _
        // Predicated region
        $region49: #{basic_block_forward.1} parent=43 // pred_check
          %p286 = pneg %p74
        $region50: #{basic_block_forward.1} parent=43 // pred_check_branch
          %288 = sbr.rel (%p286) target = $region52
        $region51: #{basic_block_forward.1} parent=43 // pred_region
          %289 = dma.done [#allocation10], 320
        $region52: #{basic_block_forward.1} parent=43 // pred_fallthru
          _
        // Predicated region
        $region53: #{basic_block_forward.1} parent=43 // pred_check
          %p290 = pneg %p95
        $region54: #{basic_block_forward.1} parent=43 // pred_check_branch
          %292 = sbr.rel (%p290) target = $region56
        $region55: #{basic_block_forward.1} parent=43 // pred_region
          %293 = dma.done [#allocation10], 16
        $region56: #{basic_block_forward.1} parent=43 // pred_fallthru
          _
        // Predicated region
        $region57: #{basic_block_forward.1} parent=43 // pred_check
          %p294 = pneg %p116
        $region58: #{basic_block_forward.1} parent=43 // pred_check_branch
          %296 = sbr.rel (%p294) target = $region60
        $region59: #{basic_block_forward.1} parent=43 // pred_region
          %297 = dma.done [#allocation13], 16
        $region60: #{basic_block_forward.1} parent=43 // pred_fallthru
          _
        // Predicated region
        $region61: #{basic_block_forward.1} parent=43 // pred_check
          %p298 = pneg %p137
        $region62: #{basic_block_forward.1} parent=43 // pred_check_branch
          %300 = sbr.rel (%p298) target = $region64
        $region63: #{basic_block_forward.1} parent=43 // pred_region
          %301 = dma.done [#allocation13], 16
        $region64: #{basic_block_forward.1} parent=43 // pred_fallthru
          _
        // Predicated region
        $region65: #{basic_block_forward.1} parent=43 // pred_check
          %p302 = pneg %p158
        $region66: #{basic_block_forward.1} parent=43 // pred_check_branch
          %304 = sbr.rel (%p302) target = $region68
        $region67: #{basic_block_forward.1} parent=43 // pred_region
          %305 = dma.done [#allocation16], 16
        $region68: #{basic_block_forward.1} parent=43 // pred_fallthru
          _
        %p306 = pneg %p53
        %p307 = pneg %p50
        %p308 = pneg %p74
        %p309 = pneg %p71
        %p310 = pneg %p95
        %p311 = pneg %p92
        %p312 = pneg %p116
        %p313 = pneg %p113
        %p314 = pneg %p137
        %p315 = pneg %p134
        %p316 = pneg %p158
        %p317 = pneg %p155
        %p318 = pneg %p186
        %p319 = pneg %p183
        %s320 = sand.u32 %s173, 1
        %s321 = scalar_lea.sflag [#allocation8], %s320
        %s322 = sand.u32 %s173, 1
        %s323 = smul.addr %s322, 64
        %s324 = scalar_lea.vmem [#allocation17], %s323
        %s325 = smul.u32 16, %s30
        %s329 = smul.u32 %s29, 2
        %s330 = sadd.s32 %s329, %s30
        %s331 = smul.u32 %s330, 128
        %s332 = sshra.s32 %s331, 3
        %s333 = sand.u32 %s331, 7
        %s334 = smul.addr %s332, 64
        %s335 = scalar_lea.hbm %s0, %s334
        %s336 = scalar_lea.vmem [#allocation2], 16
        // Predicated region
        $region69: #{basic_block_forward.1} parent=43 // pred_check
          _
        $region70: #{basic_block_forward.1} parent=43 // pred_check_branch
          %338 = sbr.rel target = $region72
        $region71: #{basic_block_forward.1} parent=43 // pred_region
          %339 = sst [smem:[#allocation20]] [#allocation19]
          %340 = sst [smem:[#allocation21]] [#allocation18]
        $region72: #{basic_block_forward.1} parent=43 // pred_fallthru
          _
        %342 = shalt.err (0)
        %s344 = sshll.u32 %s336, 4
        %s345 = int_to_ptr.vmem [resolvable:$true] %s344
        %347 = dma.hbm_to_vmem [thread:$0]  %s335, 1024, %s345, [#allocation5]
        %p348 = scmp.gt.s32.totalorder %s30, 0
        // Predicated region
        $region73: #{basic_block_forward.1} parent=43 // pred_check
          %p349 = pneg %p348
        $region74: #{basic_block_forward.1} parent=43 // pred_check_branch
          %351 = sbr.rel (%p349) target = $region76
        $region75: #{basic_block_forward.1} parent=43 // pred_region
          %s352 = ssub.s32 %s331, 32
          %s353 = sshra.s32 %s352, 3
          %s354 = sand.u32 %s352, 7
          %s355 = smul.addr %s353, 64
          %s356 = scalar_lea.hbm %s0, %s355
          %s357 = scalar_lea.sflag [#allocation5], 1
          // Predicated region
          $region77: #{basic_block_forward.1} parent=75 // pred_check
            _
          $region78: #{basic_block_forward.1} parent=75 // pred_check_branch
            %359 = sbr.rel target = $region80
          $region79: #{basic_block_forward.1} parent=75 // pred_region
            %360 = sst [smem:[#allocation20]] [#allocation23]
            %361 = sst [smem:[#allocation21]] [#allocation22]
          $region80: #{basic_block_forward.1} parent=75 // pred_fallthru
            _
          %363 = shalt.err (0)
          %s365 = sshll.u32 [#allocation2], 4
          %s366 = int_to_ptr.vmem [resolvable:$true] %s365
          %368 = dma.hbm_to_vmem [thread:$0]  %s356, 256, %s366, %s357
          %s369 = smul.u32 4, 4
          %s370 = smul.u32 %s369, 1
          %s371 = sshll.u32 %s370, 4
          %372 = dma.done %s357, %s371
        $region76: #{basic_block_forward.1} parent=43 // pred_fallthru
          _
        %p373 = scmp.eq.s32.totalorder %s30, 0
        // Predicated region
        $region81: #{basic_block_forward.1} parent=43 // pred_check
          %p374 = pneg %p373
        $region82: #{basic_block_forward.1} parent=43 // pred_check_branch
          %376 = sbr.rel (%p374) target = $region84
        $region83: #{basic_block_forward.1} parent=43 // pred_region
          %vm377 = vcmask 31744
          %378 = vst.msk [vmem:[#allocation2] sm:$0xff] %vm377, 0
          %379 = vst.msk [vmem:[#allocation2 + $0x8] sm:$0xff] %vm377, 0
        $region84: #{basic_block_forward.1} parent=43 // pred_fallthru
          _
        %p380 = scmp.lt.s32.totalorder %s30, 1
        // Predicated region
        $region85: #{basic_block_forward.1} parent=43 // pred_check
          %p381 = pneg %p380
        $region86: #{basic_block_forward.1} parent=43 // pred_check_branch
          %383 = sbr.rel (%p381) target = $region88
        $region87: #{basic_block_forward.1} parent=43 // pred_region
          %s384 = sadd.s32 %s331, 128
          %s385 = sshra.s32 %s384, 3
          %s386 = sand.u32 %s384, 7
          %s387 = smul.addr %s385, 64
          %s388 = scalar_lea.hbm %s0, %s387
          %s389 = scalar_lea.vmem [#allocation2], 80
          %s390 = scalar_lea.sflag [#allocation5], 2
          // Predicated region
          $region89: #{basic_block_forward.1} parent=87 // pred_check
            _
          $region90: #{basic_block_forward.1} parent=87 // pred_check_branch
            %392 = sbr.rel target = $region92
          $region91: #{basic_block_forward.1} parent=87 // pred_region
            %393 = sst [smem:[#allocation20]] [#allocation25]
            %394 = sst [smem:[#allocation21]] [#allocation24]
          $region92: #{basic_block_forward.1} parent=87 // pred_fallthru
            _
          %396 = shalt.err (0)
          %s398 = sshll.u32 %s389, 4
          %s399 = int_to_ptr.vmem [resolvable:$true] %s398
          %401 = dma.hbm_to_vmem [thread:$0]  %s388, 256, %s399, %s390
          %s402 = smul.u32 4, 4
          %s403 = smul.u32 %s402, 1
          %s404 = sshll.u32 %s403, 4
          %405 = dma.done %s390, %s404
        $region88: #{basic_block_forward.1} parent=43 // pred_fallthru
          _
        %p406 = scmp.eq.s32.totalorder %s30, 1
        // Predicated region
        $region93: #{basic_block_forward.1} parent=43 // pred_check
          %p407 = pneg %p406
        $region94: #{basic_block_forward.1} parent=43 // pred_check_branch
          %409 = sbr.rel (%p407) target = $region96
        $region95: #{basic_block_forward.1} parent=43 // pred_region
          %vm410 = vcmask 31744
          %411 = vst.msk [vmem:[#allocation2 + $0x50] sm:$0xff] %vm410, 0
          %412 = vst.msk [vmem:[#allocation2 + $0x58] sm:$0xff] %vm410, 0
        $region96: #{basic_block_forward.1} parent=43 // pred_fallthru
          _
        %s413 = smul.u32 4, 16
        %s414 = smul.u32 %s413, 1
        %s415 = sshll.u32 %s414, 4
        %416 = dma.done [#allocation5], %s415
        %v417 = vld [vmem:[#allocation2] sm:$0xff]
        %v418 = vld [vmem:[#allocation2 + $0x8] sm:$0xff]
        %v419 = vld [vmem:[#allocation2 + $0x10] sm:$0xff]
        %v420 = vld [vmem:[#allocation2 + $0x18] sm:$0xff]
        %v421 = vld [vmem:[#allocation2 + $0x20] sm:$0xff]
        %v422 = vld [vmem:[#allocation2 + $0x28] sm:$0xff]
        %v423 = vld [vmem:[#allocation2 + $0x30] sm:$0xff]
        %v424 = vld [vmem:[#allocation2 + $0x38] sm:$0xff]
        %v425 = vld [vmem:[#allocation2 + $0x40] sm:$0xff]
        %v426 = vld [vmem:[#allocation2 + $0x48] sm:$0xff]
        %v427 = vld [vmem:[#allocation2 + $0x50] sm:$0xff]
        %v428 = vld [vmem:[#allocation2 + $0x58] sm:$0xff]
        %v429 = vld [vmem:[#allocation6] sm:$0xf]
        %v430 = vld [vmem:[#allocation6 + $0x4] sm:$0xf]
        %v431 = vld [vmem:[#allocation6 + $0x8] sm:$0xf]
        %v432 = vld [vmem:[#allocation6 + $0xc] sm:$0xf]
        %v433 = vld [vmem:[#allocation6 + $0x10] sm:$0x3]
        %vm434 = vsmask.f32 256
        %v436 = vshrl.u32 %v417, 16
        %v438 = vrot.slane %v436, 7
        %v439 = vshll.u32 %v417, 16
        %v441 = vor.u32 %v438, %v439
        %v443 = vshrl.u32 %v418, 16
        %v445 = vrot.slane %v443, 7
        %v446 = vshll.u32 %v418, 16
        %v448 = vor.u32 %v445, %v446
        %v449 = vsel %vm434, %v438, %v448
        %v451 = vshrl.u32 %v419, 16
        %v453 = vrot.slane %v451, 7
        %v454 = vshll.u32 %v419, 16
        %v456 = vor.u32 %v453, %v454
        %v457 = vsel %vm434, %v445, %v456
        %v459 = vshrl.u32 %v420, 16
        %v461 = vrot.slane %v459, 7
        %v462 = vshll.u32 %v420, 16
        %v464 = vor.u32 %v461, %v462
        %v465 = vsel %vm434, %v453, %v464
        %v467 = vshrl.u32 %v421, 16
        %v469 = vrot.slane %v467, 7
        %v470 = vshll.u32 %v421, 16
        %v472 = vor.u32 %v469, %v470
        %v473 = vsel %vm434, %v461, %v472
        %v475 = vshrl.u32 %v422, 16
        %v477 = vrot.slane %v475, 7
        %v478 = vshll.u32 %v422, 16
        %v480 = vor.u32 %v477, %v478
        %v481 = vsel %vm434, %v469, %v480
        %v483 = vshrl.u32 %v423, 16
        %v485 = vrot.slane %v483, 7
        %v486 = vshll.u32 %v423, 16
        %v488 = vor.u32 %v485, %v486
        %v489 = vsel %vm434, %v477, %v488
        %v491 = vshrl.u32 %v424, 16
        %v493 = vrot.slane %v491, 7
        %v494 = vshll.u32 %v424, 16
        %v496 = vor.u32 %v493, %v494
        %v497 = vsel %vm434, %v485, %v496
        %v499 = vshrl.u32 %v425, 16
        %v501 = vrot.slane %v499, 7
        %v502 = vshll.u32 %v425, 16
        %v504 = vor.u32 %v501, %v502
        %v505 = vsel %vm434, %v493, %v504
        %v507 = vshrl.u32 %v426, 16
        %v509 = vrot.slane %v507, 7
        %v510 = vshll.u32 %v426, 16
        %v512 = vor.u32 %v509, %v510
        %v513 = vsel %vm434, %v501, %v512
        %v515 = vshrl.u32 %v427, 16
        %v517 = vrot.slane %v515, 7
        %v518 = vshll.u32 %v427, 16
        %v520 = vor.u32 %v517, %v518
        %v521 = vsel %vm434, %v509, %v520
        %v523 = vshrl.u32 %v428, 16
        %v525 = vrot.slane %v523, 7
        %v526 = vshll.u32 %v428, 16
        %v528 = vor.u32 %v525, %v526
        %v529 = vsel %vm434, %v517, %v528
        %vm543 = vcmask 1040384
        %vm544 = vmand %vm543, %vm434
        %v545 = vsel %vm544, 0, %v441
        %v546 = vsel %vm544, %v525, 0
        %v547 = vlaneseq
        %v548 = vshrl.u32 %v547, 7
        %v549 = vadd.s32 %v548, 8
        %v550 = vadd.s32 %v548, 16
        %v551 = vadd.s32 %v548, 24
        %v552 = vadd.s32 %v548, 32
        %v553 = vadd.s32 %v548, 40
        %v554 = vadd.s32 %v548, 48
        %v555 = vadd.s32 %v548, 56
        %v556 = vadd.s32 %v548, 64
        %v557 = vadd.s32 %v548, 72
        %v558 = vadd.s32 %v548, 80
        %v559 = vadd.s32 %v548, 88
        %v560 = vadd.s32 %v548, 96
        %v561 = vadd.s32 %v548, 104
        %v562 = vadd.s32 %v548, 112
        %v563 = vadd.s32 %v548, 120
        %v564 = vadd.s32 %v548, 128
        %v565 = vadd.s32 %v548, 136
        %v566 = vadd.s32 %v548, 144
        %v567 = vadd.s32 %v548, 152
        %vm568 = vcmp.lt.s32.totalorder %v548, 0
        %v569 = vsub.s32 0, %v548
        %v570 = vsel %vm568, %v569, %v548
        %v571 = vshrl.u32 %v570, 4
        %v572 = vand.u32 %v570, 15
        %v573 = vsub.s32 0, %v572
        %v574 = vsel %vm568, %v573, %v572
        %vm575 = vcmp.lt.s32.totalorder %v549, 0
        %v576 = vsub.s32 0, %v549
        %v577 = vsel %vm575, %v576, %v549
        %v578 = vshrl.u32 %v577, 4
        %v579 = vand.u32 %v577, 15
        %v580 = vsub.s32 0, %v579
        %v581 = vsel %vm575, %v580, %v579
        %vm582 = vcmp.lt.s32.totalorder %v550, 0
        %v583 = vsub.s32 0, %v550
        %v584 = vsel %vm582, %v583, %v550
        %v585 = vshrl.u32 %v584, 4
        %v586 = vand.u32 %v584, 15
        %v587 = vsub.s32 0, %v586
        %v588 = vsel %vm582, %v587, %v586
        %vm589 = vcmp.lt.s32.totalorder %v551, 0
        %v590 = vsub.s32 0, %v551
        %v591 = vsel %vm589, %v590, %v551
        %v592 = vshrl.u32 %v591, 4
        %v593 = vand.u32 %v591, 15
        %v594 = vsub.s32 0, %v593
        %v595 = vsel %vm589, %v594, %v593
        %vm596 = vcmp.lt.s32.totalorder %v552, 0
        %v597 = vsub.s32 0, %v552
        %v598 = vsel %vm596, %v597, %v552
        %v599 = vshrl.u32 %v598, 4
        %v600 = vand.u32 %v598, 15
        %v601 = vsub.s32 0, %v600
        %v602 = vsel %vm596, %v601, %v600
        %vm603 = vcmp.lt.s32.totalorder %v553, 0
        %v604 = vsub.s32 0, %v553
        %v605 = vsel %vm603, %v604, %v553
        %v606 = vshrl.u32 %v605, 4
        %v607 = vand.u32 %v605, 15
        %v608 = vsub.s32 0, %v607
        %v609 = vsel %vm603, %v608, %v607
        %vm610 = vcmp.lt.s32.totalorder %v554, 0
        %v611 = vsub.s32 0, %v554
        %v612 = vsel %vm610, %v611, %v554
        %v613 = vshrl.u32 %v612, 4
        %v614 = vand.u32 %v612, 15
        %v615 = vsub.s32 0, %v614
        %v616 = vsel %vm610, %v615, %v614
        %vm617 = vcmp.lt.s32.totalorder %v555, 0
        %v618 = vsub.s32 0, %v555
        %v619 = vsel %vm617, %v618, %v555
        %v620 = vshrl.u32 %v619, 4
        %v621 = vand.u32 %v619, 15
        %v622 = vsub.s32 0, %v621
        %v623 = vsel %vm617, %v622, %v621
        %vm624 = vcmp.lt.s32.totalorder %v556, 0
        %v625 = vsub.s32 0, %v556
        %v626 = vsel %vm624, %v625, %v556
        %v627 = vshrl.u32 %v626, 4
        %v628 = vand.u32 %v626, 15
        %v629 = vsub.s32 0, %v628
        %v630 = vsel %vm624, %v629, %v628
        %vm631 = vcmp.lt.s32.totalorder %v557, 0
        %v632 = vsub.s32 0, %v557
        %v633 = vsel %vm631, %v632, %v557
        %v634 = vshrl.u32 %v633, 4
        %v635 = vand.u32 %v633, 15
        %v636 = vsub.s32 0, %v635
        %v637 = vsel %vm631, %v636, %v635
        %vm638 = vcmp.lt.s32.totalorder %v558, 0
        %v639 = vsub.s32 0, %v558
        %v640 = vsel %vm638, %v639, %v558
        %v641 = vshrl.u32 %v640, 4
        %v642 = vand.u32 %v640, 15
        %v643 = vsub.s32 0, %v642
        %v644 = vsel %vm638, %v643, %v642
        %vm645 = vcmp.lt.s32.totalorder %v559, 0
        %v646 = vsub.s32 0, %v559
        %v647 = vsel %vm645, %v646, %v559
        %v648 = vshrl.u32 %v647, 4
        %v649 = vand.u32 %v647, 15
        %v650 = vsub.s32 0, %v649
        %v651 = vsel %vm645, %v650, %v649
        %vm652 = vcmp.lt.s32.totalorder %v560, 0
        %v653 = vsub.s32 0, %v560
        %v654 = vsel %vm652, %v653, %v560
        %v655 = vshrl.u32 %v654, 4
        %v656 = vand.u32 %v654, 15
        %v657 = vsub.s32 0, %v656
        %v658 = vsel %vm652, %v657, %v656
        %vm659 = vcmp.lt.s32.totalorder %v561, 0
        %v660 = vsub.s32 0, %v561
        %v661 = vsel %vm659, %v660, %v561
        %v662 = vshrl.u32 %v661, 4
        %v663 = vand.u32 %v661, 15
        %v664 = vsub.s32 0, %v663
        %v665 = vsel %vm659, %v664, %v663
        %vm666 = vcmp.lt.s32.totalorder %v562, 0
        %v667 = vsub.s32 0, %v562
        %v668 = vsel %vm666, %v667, %v562
        %v669 = vshrl.u32 %v668, 4
        %v670 = vand.u32 %v668, 15
        %v671 = vsub.s32 0, %v670
        %v672 = vsel %vm666, %v671, %v670
        %vm673 = vcmp.lt.s32.totalorder %v563, 0
        %v674 = vsub.s32 0, %v563
        %v675 = vsel %vm673, %v674, %v563
        %v676 = vshrl.u32 %v675, 4
        %v677 = vand.u32 %v675, 15
        %v678 = vsub.s32 0, %v677
        %v679 = vsel %vm673, %v678, %v677
        %vm680 = vcmp.lt.s32.totalorder %v564, 0
        %v681 = vsub.s32 0, %v564
        %v682 = vsel %vm680, %v681, %v564
        %v683 = vshrl.u32 %v682, 4
        %v684 = vand.u32 %v682, 15
        %v685 = vsub.s32 0, %v684
        %v686 = vsel %vm680, %v685, %v684
        %vm687 = vcmp.lt.s32.totalorder %v565, 0
        %v688 = vsub.s32 0, %v565
        %v689 = vsel %vm687, %v688, %v565
        %v690 = vshrl.u32 %v689, 4
        %v691 = vand.u32 %v689, 15
        %v692 = vsub.s32 0, %v691
        %v693 = vsel %vm687, %v692, %v691
        %vm694 = vcmp.lt.s32.totalorder %v566, 0
        %v695 = vsub.s32 0, %v566
        %v696 = vsel %vm694, %v695, %v566
        %v697 = vshrl.u32 %v696, 4
        %v698 = vand.u32 %v696, 15
        %v699 = vsub.s32 0, %v698
        %v700 = vsel %vm694, %v699, %v698
        %vm701 = vcmp.lt.s32.totalorder %v567, 0
        %v702 = vsub.s32 0, %v567
        %v703 = vsel %vm701, %v702, %v567
        %v704 = vshrl.u32 %v703, 4
        %v705 = vand.u32 %v703, 15
        %v706 = vsub.s32 0, %v705
        %v707 = vsel %vm701, %v706, %v705
        %vm708 = vcmp.ne.s32.totalorder %v574, 0
        %vm709 = vcmp.ne.s32.totalorder %v581, 0
        %vm710 = vcmp.ne.s32.totalorder %v588, 0
        %vm711 = vcmp.ne.s32.totalorder %v595, 0
        %vm712 = vcmp.ne.s32.totalorder %v602, 0
        %vm713 = vcmp.ne.s32.totalorder %v609, 0
        %vm714 = vcmp.ne.s32.totalorder %v616, 0
        %vm715 = vcmp.ne.s32.totalorder %v623, 0
        %vm716 = vcmp.ne.s32.totalorder %v630, 0
        %vm717 = vcmp.ne.s32.totalorder %v637, 0
        %vm718 = vcmp.ne.s32.totalorder %v644, 0
        %vm719 = vcmp.ne.s32.totalorder %v651, 0
        %vm720 = vcmp.ne.s32.totalorder %v658, 0
        %vm721 = vcmp.ne.s32.totalorder %v665, 0
        %vm722 = vcmp.ne.s32.totalorder %v672, 0
        %vm723 = vcmp.ne.s32.totalorder %v679, 0
        %vm724 = vcmp.ne.s32.totalorder %v686, 0
        %vm725 = vcmp.ne.s32.totalorder %v693, 0
        %vm726 = vcmp.ne.s32.totalorder %v700, 0
        %vm727 = vcmp.ne.s32.totalorder %v707, 0
        %vm728 = vcmp.lt.s32.totalorder %v574, 0
        %vm729 = vcmp.lt.s32.totalorder %v581, 0
        %vm730 = vcmp.lt.s32.totalorder %v588, 0
        %vm731 = vcmp.lt.s32.totalorder %v595, 0
        %vm732 = vcmp.lt.s32.totalorder %v602, 0
        %vm733 = vcmp.lt.s32.totalorder %v609, 0
        %vm734 = vcmp.lt.s32.totalorder %v616, 0
        %vm735 = vcmp.lt.s32.totalorder %v623, 0
        %vm736 = vcmp.lt.s32.totalorder %v630, 0
        %vm737 = vcmp.lt.s32.totalorder %v637, 0
        %vm738 = vcmp.lt.s32.totalorder %v644, 0
        %vm739 = vcmp.lt.s32.totalorder %v651, 0
        %vm740 = vcmp.lt.s32.totalorder %v658, 0
        %vm741 = vcmp.lt.s32.totalorder %v665, 0
        %vm742 = vcmp.lt.s32.totalorder %v672, 0
        %vm743 = vcmp.lt.s32.totalorder %v679, 0
        %vm744 = vcmp.lt.s32.totalorder %v686, 0
        %vm745 = vcmp.lt.s32.totalorder %v693, 0
        %vm746 = vcmp.lt.s32.totalorder %v700, 0
        %vm747 = vcmp.lt.s32.totalorder %v707, 0
        %vm748 = vmand %vm728, %vm708
        %vm749 = vmand %vm729, %vm709
        %vm750 = vmand %vm730, %vm710
        %vm751 = vmand %vm731, %vm711
        %vm752 = vmand %vm732, %vm712
        %vm753 = vmand %vm733, %vm713
        %vm754 = vmand %vm734, %vm714
        %vm755 = vmand %vm735, %vm715
        %vm756 = vmand %vm736, %vm716
        %vm757 = vmand %vm737, %vm717
        %vm758 = vmand %vm738, %vm718
        %vm759 = vmand %vm739, %vm719
        %vm760 = vmand %vm740, %vm720
        %vm761 = vmand %vm741, %vm721
        %vm762 = vmand %vm742, %vm722
        %vm763 = vmand %vm743, %vm723
        %vm764 = vmand %vm744, %vm724
        %vm765 = vmand %vm745, %vm725
        %vm766 = vmand %vm746, %vm726
        %vm767 = vmand %vm747, %vm727
        %v768 = vadd.s32 %v574, 16
        %v769 = vadd.s32 %v581, 16
        %v770 = vadd.s32 %v588, 16
        %v771 = vadd.s32 %v595, 16
        %v772 = vadd.s32 %v602, 16
        %v773 = vadd.s32 %v609, 16
        %v774 = vadd.s32 %v616, 16
        %v775 = vadd.s32 %v623, 16
        %v776 = vadd.s32 %v630, 16
        %v777 = vadd.s32 %v637, 16
        %v778 = vadd.s32 %v644, 16
        %v779 = vadd.s32 %v651, 16
        %v780 = vadd.s32 %v658, 16
        %v781 = vadd.s32 %v665, 16
        %v782 = vadd.s32 %v672, 16
        %v783 = vadd.s32 %v679, 16
        %v784 = vadd.s32 %v686, 16
        %v785 = vadd.s32 %v693, 16
        %v786 = vadd.s32 %v700, 16
        %v787 = vadd.s32 %v707, 16
        %v788 = vsel %vm748, %v768, %v574
        %v789 = vsel %vm749, %v769, %v581
        %v790 = vsel %vm750, %v770, %v588
        %v791 = vsel %vm751, %v771, %v595
        %v792 = vsel %vm752, %v772, %v602
        %v793 = vsel %vm753, %v773, %v609
        %v794 = vsel %vm754, %v774, %v616
        %v795 = vsel %vm755, %v775, %v623
        %v796 = vsel %vm756, %v776, %v630
        %v797 = vsel %vm757, %v777, %v637
        %v798 = vsel %vm758, %v778, %v644
        %v799 = vsel %vm759, %v779, %v651
        %v800 = vsel %vm760, %v780, %v658
        %v801 = vsel %vm761, %v781, %v665
        %v802 = vsel %vm762, %v782, %v672
        %v803 = vsel %vm763, %v783, %v679
        %v804 = vsel %vm764, %v784, %v686
        %v805 = vsel %vm765, %v785, %v693
        %v806 = vsel %vm766, %v786, %v700
        %v807 = vsel %vm767, %v787, %v707
        %vm808 = vcmp.eq.s32.totalorder %v788, 0
        %vm809 = vcmp.eq.s32.totalorder %v789, 0
        %vm810 = vcmp.eq.s32.totalorder %v790, 0
        %vm811 = vcmp.eq.s32.totalorder %v791, 0
        %vm812 = vcmp.eq.s32.totalorder %v792, 0
        %vm813 = vcmp.eq.s32.totalorder %v793, 0
        %vm814 = vcmp.eq.s32.totalorder %v794, 0
        %vm815 = vcmp.eq.s32.totalorder %v795, 0
        %vm816 = vcmp.eq.s32.totalorder %v796, 0
        %vm817 = vcmp.eq.s32.totalorder %v797, 0
        %vm818 = vcmp.eq.s32.totalorder %v798, 0
        %vm819 = vcmp.eq.s32.totalorder %v799, 0
        %vm820 = vcmp.eq.s32.totalorder %v800, 0
        %vm821 = vcmp.eq.s32.totalorder %v801, 0
        %vm822 = vcmp.eq.s32.totalorder %v802, 0
        %vm823 = vcmp.eq.s32.totalorder %v803, 0
        %vm824 = vcmp.eq.s32.totalorder %v804, 0
        %vm825 = vcmp.eq.s32.totalorder %v805, 0
        %vm826 = vcmp.eq.s32.totalorder %v806, 0
        %vm827 = vcmp.eq.s32.totalorder %v807, 0
        %vm828 = vcmp.eq.s32.totalorder %v788, 15
        %vm829 = vcmp.eq.s32.totalorder %v789, 15
        %vm830 = vcmp.eq.s32.totalorder %v790, 15
        %vm831 = vcmp.eq.s32.totalorder %v791, 15
        %vm832 = vcmp.eq.s32.totalorder %v792, 15
        %vm833 = vcmp.eq.s32.totalorder %v793, 15
        %vm834 = vcmp.eq.s32.totalorder %v794, 15
        %vm835 = vcmp.eq.s32.totalorder %v795, 15
        %vm836 = vcmp.eq.s32.totalorder %v796, 15
        %vm837 = vcmp.eq.s32.totalorder %v797, 15
        %vm838 = vcmp.eq.s32.totalorder %v798, 15
        %vm839 = vcmp.eq.s32.totalorder %v799, 15
        %vm840 = vcmp.eq.s32.totalorder %v800, 15
        %vm841 = vcmp.eq.s32.totalorder %v801, 15
        %vm842 = vcmp.eq.s32.totalorder %v802, 15
        %vm843 = vcmp.eq.s32.totalorder %v803, 15
        %vm844 = vcmp.eq.s32.totalorder %v804, 15
        %vm845 = vcmp.eq.s32.totalorder %v805, 15
        %vm846 = vcmp.eq.s32.totalorder %v806, 15
        %vm847 = vcmp.eq.s32.totalorder %v807, 15
        %v848 = vsel %vm808, 1, 0
        %v849 = vsel %vm809, 1, 0
        %v850 = vsel %vm810, 1, 0
        %v851 = vsel %vm811, 1, 0
        %v852 = vsel %vm812, 1, 0
        %v853 = vsel %vm813, 1, 0
        %v854 = vsel %vm814, 1, 0
        %v855 = vsel %vm815, 1, 0
        %v856 = vsel %vm816, 1, 0
        %v857 = vsel %vm817, 1, 0
        %v858 = vsel %vm818, 1, 0
        %v859 = vsel %vm819, 1, 0
        %v860 = vsel %vm820, 1, 0
        %v861 = vsel %vm821, 1, 0
        %v862 = vsel %vm822, 1, 0
        %v863 = vsel %vm823, 1, 0
        %v864 = vsel %vm824, 1, 0
        %v865 = vsel %vm825, 1, 0
        %v866 = vsel %vm826, 1, 0
        %v867 = vsel %vm827, 1, 0
        %vm868 = vcmp.eq.s32.totalorder %v848, 1
        %vm869 = vcmp.eq.s32.totalorder %v849, 1
        %vm870 = vcmp.eq.s32.totalorder %v850, 1
        %vm871 = vcmp.eq.s32.totalorder %v851, 1
        %vm872 = vcmp.eq.s32.totalorder %v852, 1
        %vm873 = vcmp.eq.s32.totalorder %v853, 1
        %vm874 = vcmp.eq.s32.totalorder %v854, 1
        %vm875 = vcmp.eq.s32.totalorder %v855, 1
        %vm876 = vcmp.eq.s32.totalorder %v856, 1
        %vm877 = vcmp.eq.s32.totalorder %v857, 1
        %vm878 = vcmp.eq.s32.totalorder %v858, 1
        %vm879 = vcmp.eq.s32.totalorder %v859, 1
        %vm880 = vcmp.eq.s32.totalorder %v860, 1
        %vm881 = vcmp.eq.s32.totalorder %v861, 1
        %vm882 = vcmp.eq.s32.totalorder %v862, 1
        %vm883 = vcmp.eq.s32.totalorder %v863, 1
        %vm884 = vcmp.eq.s32.totalorder %v864, 1
        %vm885 = vcmp.eq.s32.totalorder %v865, 1
        %vm886 = vcmp.eq.s32.totalorder %v866, 1
        %vm887 = vcmp.eq.s32.totalorder %v867, 1
        %vm888 = vmpackc.low %vm868, %vm868
        %vm889 = vmpackc.low %vm869, %vm869
        %vm890 = vmpackc.low %vm870, %vm870
        %vm891 = vmpackc.low %vm871, %vm871
        %vm892 = vmpackc.low %vm872, %vm872
        %vm893 = vmpackc.low %vm873, %vm873
        %vm894 = vmpackc.low %vm874, %vm874
        %vm895 = vmpackc.low %vm875, %vm875
        %vm896 = vmpackc.low %vm876, %vm876
        %vm897 = vmpackc.low %vm877, %vm877
        %vm898 = vmpackc.low %vm878, %vm878
        %vm899 = vmpackc.low %vm879, %vm879
        %vm900 = vmpackc.low %vm880, %vm880
        %vm901 = vmpackc.low %vm881, %vm881
        %vm902 = vmpackc.low %vm882, %vm882
        %vm903 = vmpackc.low %vm883, %vm883
        %vm904 = vmpackc.low %vm884, %vm884
        %vm905 = vmpackc.low %vm885, %vm885
        %vm906 = vmpackc.low %vm886, %vm886
        %vm907 = vmpackc.low %vm887, %vm887
        %v908 = vsel %vm888, 65537, 0
        %v909 = vsel %vm889, 65537, 0
        %v910 = vsel %vm890, 65537, 0
        %v911 = vsel %vm891, 65537, 0
        %v912 = vsel %vm892, 65537, 0
        %v913 = vsel %vm893, 65537, 0
        %v914 = vsel %vm894, 65537, 0
        %v915 = vsel %vm895, 65537, 0
        %v916 = vsel %vm896, 65537, 0
        %v917 = vsel %vm897, 65537, 0
        %v918 = vsel %vm898, 65537, 0
        %v919 = vsel %vm899, 65537, 0
        %v920 = vsel %vm900, 65537, 0
        %v921 = vsel %vm901, 65537, 0
        %v922 = vsel %vm902, 65537, 0
        %v923 = vsel %vm903, 65537, 0
        %v924 = vsel %vm904, 65537, 0
        %v925 = vsel %vm905, 65537, 0
        %v926 = vsel %vm906, 65537, 0
        %v927 = vsel %vm907, 65537, 0
        %v928 = vunpack.c.l.b16 %v908
        %v929 = vunpack.c.l.b16 %v909
        %v930 = vunpack.c.l.b16 %v910
        %v931 = vunpack.c.l.b16 %v911
        %v932 = vunpack.c.l.b16 %v912
        %v933 = vunpack.c.l.b16 %v913
        %v934 = vunpack.c.l.b16 %v914
        %v935 = vunpack.c.l.b16 %v915
        %v936 = vunpack.c.l.b16 %v916
        %v937 = vunpack.c.l.b16 %v917
        %v938 = vunpack.c.l.b16 %v918
        %v939 = vunpack.c.l.b16 %v919
        %v940 = vunpack.c.l.b16 %v920
        %v941 = vunpack.c.l.b16 %v921
        %v942 = vunpack.c.l.b16 %v922
        %v943 = vunpack.c.l.b16 %v923
        %v944 = vunpack.c.l.b16 %v924
        %v945 = vunpack.c.l.b16 %v925
        %v946 = vunpack.c.l.b16 %v926
        %v947 = vunpack.c.l.b16 %v927
        %v948 = vpack.c.b16 %v929, %v928
        %v949 = vpack.c.b16 %v931, %v930
        %v950 = vpack.c.b16 %v933, %v932
        %v951 = vpack.c.b16 %v935, %v934
        %v952 = vpack.c.b16 %v937, %v936
        %v953 = vpack.c.b16 %v939, %v938
        %v954 = vpack.c.b16 %v941, %v940
        %v955 = vpack.c.b16 %v943, %v942
        %v956 = vpack.c.b16 %v945, %v944
        %v957 = vpack.c.b16 %v947, %v946
        %vm958 = vcmp.ne.s16.totalorder %v948, 0
        %vm959 = vcmp.ne.s16.totalorder %v949, 0
        %vm960 = vcmp.ne.s16.totalorder %v950, 0
        %vm961 = vcmp.ne.s16.totalorder %v951, 0
        %vm962 = vcmp.ne.s16.totalorder %v952, 0
        %vm963 = vcmp.ne.s16.totalorder %v953, 0
        %vm964 = vcmp.ne.s16.totalorder %v954, 0
        %vm965 = vcmp.ne.s16.totalorder %v955, 0
        %vm966 = vcmp.ne.s16.totalorder %v956, 0
        %vm967 = vcmp.ne.s16.totalorder %v957, 0
        %v968 = vsel %vm958, 0, %v545
        %v969 = vsel %vm959, 0, %v449
        %v970 = vsel %vm960, 0, %v457
        %v971 = vsel %vm961, 0, %v465
        %v972 = vsel %vm962, 0, %v473
        %v973 = vsel %vm963, 0, %v481
        %v974 = vsel %vm964, 0, %v489
        %v975 = vsel %vm965, 0, %v497
        %v976 = vsel %vm966, 0, %v505
        %v977 = vsel %vm967, 0, %v513
        %vm978 = vcmask 31744
        %979 = vst.msk [vmem:[#allocation3] sm:$0xff] %vm978, %v968
        %980 = vst.msk [vmem:[#allocation3 + $0x8] sm:$0xff] %vm978, %v969
        %981 = vst.msk [vmem:[#allocation3 + $0x10] sm:$0xff] %vm978, %v970
        %982 = vst.msk [vmem:[#allocation3 + $0x18] sm:$0xff] %vm978, %v971
        %983 = vst.msk [vmem:[#allocation3 + $0x20] sm:$0xff] %vm978, %v972
        %984 = vst.msk [vmem:[#allocation3 + $0x28] sm:$0xff] %vm978, %v973
        %985 = vst.msk [vmem:[#allocation3 + $0x30] sm:$0xff] %vm978, %v974
        %986 = vst.msk [vmem:[#allocation3 + $0x38] sm:$0xff] %vm978, %v975
        %987 = vst.msk [vmem:[#allocation3 + $0x40] sm:$0xff] %vm978, %v976
        %988 = vst.msk [vmem:[#allocation3 + $0x48] sm:$0xff] %vm978, %v977
        %vm989 = vsmask.f32 7424
        %v991 = vshrl.u32 %v545, 16
        %v993 = vshll.u32 %v545, 16
        %v995 = vrot.slane %v993, 1
        %v996 = vor.u32 %v991, %v995
        %v998 = vshll.u32 %v449, 16
        %v1000 = vrot.slane %v998, 1
        %v1001 = vsel %vm989, %v996, %v1000
        %v1002 = vshrl.u32 %v449, 16
        %v1004 = vor.u32 %v1002, %v1000
        %v1006 = vshll.u32 %v457, 16
        %v1008 = vrot.slane %v1006, 1
        %v1009 = vsel %vm989, %v1004, %v1008
        %v1010 = vshrl.u32 %v457, 16
        %v1012 = vor.u32 %v1010, %v1008
        %v1014 = vshll.u32 %v465, 16
        %v1016 = vrot.slane %v1014, 1
        %v1017 = vsel %vm989, %v1012, %v1016
        %v1018 = vshrl.u32 %v465, 16
        %v1020 = vor.u32 %v1018, %v1016
        %v1022 = vshll.u32 %v473, 16
        %v1024 = vrot.slane %v1022, 1
        %v1025 = vsel %vm989, %v1020, %v1024
        %v1026 = vshrl.u32 %v473, 16
        %v1028 = vor.u32 %v1026, %v1024
        %v1030 = vshll.u32 %v481, 16
        %v1032 = vrot.slane %v1030, 1
        %v1033 = vsel %vm989, %v1028, %v1032
        %v1034 = vshrl.u32 %v481, 16
        %v1036 = vor.u32 %v1034, %v1032
        %v1038 = vshll.u32 %v489, 16
        %v1040 = vrot.slane %v1038, 1
        %v1041 = vsel %vm989, %v1036, %v1040
        %v1042 = vshrl.u32 %v489, 16
        %v1044 = vor.u32 %v1042, %v1040
        %v1046 = vshll.u32 %v497, 16
        %v1048 = vrot.slane %v1046, 1
        %v1049 = vsel %vm989, %v1044, %v1048
        %v1050 = vshrl.u32 %v497, 16
        %v1052 = vor.u32 %v1050, %v1048
        %v1054 = vshll.u32 %v505, 16
        %v1056 = vrot.slane %v1054, 1
        %v1057 = vsel %vm989, %v1052, %v1056
        %v1058 = vshrl.u32 %v505, 16
        %v1060 = vor.u32 %v1058, %v1056
        %v1062 = vshll.u32 %v513, 16
        %v1064 = vrot.slane %v1062, 1
        %v1065 = vsel %vm989, %v1060, %v1064
        %v1066 = vshrl.u32 %v513, 16
        %v1068 = vor.u32 %v1066, %v1064
        %v1070 = vshll.u32 %v521, 16
        %v1072 = vrot.slane %v1070, 1
        %v1073 = vsel %vm989, %v1068, %v1072
        %1074 = vrot.lane.b32.xlu0 %v1001, 4
        %v1075 = vpop.permute.xlu0 %1074
        %1076 = vrot.lane.b32.xlu0 %v1009, 4
        %v1077 = vpop.permute.xlu0 %1076
        %1078 = vrot.lane.b32.xlu0 %v1017, 4
        %v1079 = vpop.permute.xlu0 %1078
        %1080 = vrot.lane.b32.xlu0 %v1025, 4
        %v1081 = vpop.permute.xlu0 %1080
        %1082 = vrot.lane.b32.xlu0 %v1033, 4
        %v1083 = vpop.permute.xlu0 %1082
        %1084 = vrot.lane.b32.xlu0 %v1041, 4
        %v1085 = vpop.permute.xlu0 %1084
        %1086 = vrot.lane.b32.xlu0 %v1049, 4
        %v1087 = vpop.permute.xlu0 %1086
        %1088 = vrot.lane.b32.xlu0 %v1057, 4
        %v1089 = vpop.permute.xlu0 %1088
        %1090 = vrot.lane.b32.xlu0 %v1065, 4
        %v1091 = vpop.permute.xlu0 %1090
        %1092 = vrot.lane.b32.xlu0 %v1073, 4
        %v1093 = vpop.permute.xlu0 %1092
        %vm1104 = vcmask 64544
        %1105 = vst.msk [vmem:[#allocation3] sm:$0xff] %vm1104, %v1075
        %1106 = vst.msk [vmem:[#allocation3 + $0x8] sm:$0xff] %vm1104, %v1077
        %1107 = vst.msk [vmem:[#allocation3 + $0x10] sm:$0xff] %vm1104, %v1079
        %1108 = vst.msk [vmem:[#allocation3 + $0x18] sm:$0xff] %vm1104, %v1081
        %1109 = vst.msk [vmem:[#allocation3 + $0x20] sm:$0xff] %vm1104, %v1083
        %1110 = vst.msk [vmem:[#allocation3 + $0x28] sm:$0xff] %vm1104, %v1085
        %1111 = vst.msk [vmem:[#allocation3 + $0x30] sm:$0xff] %vm1104, %v1087
        %1112 = vst.msk [vmem:[#allocation3 + $0x38] sm:$0xff] %vm1104, %v1089
        %1113 = vst.msk [vmem:[#allocation3 + $0x40] sm:$0xff] %vm1104, %v1091
        %1114 = vst.msk [vmem:[#allocation3 + $0x48] sm:$0xff] %vm1104, %v1093
        %v1115 = vsel %vm828, 1, 0
        %v1116 = vsel %vm829, 1, 0
        %v1117 = vsel %vm830, 1, 0
        %v1118 = vsel %vm831, 1, 0
        %v1119 = vsel %vm832, 1, 0
        %v1120 = vsel %vm833, 1, 0
        %v1121 = vsel %vm834, 1, 0
        %v1122 = vsel %vm835, 1, 0
        %v1123 = vsel %vm836, 1, 0
        %v1124 = vsel %vm837, 1, 0
        %v1125 = vsel %vm838, 1, 0
        %v1126 = vsel %vm839, 1, 0
        %v1127 = vsel %vm840, 1, 0
        %v1128 = vsel %vm841, 1, 0
        %v1129 = vsel %vm842, 1, 0
        %v1130 = vsel %vm843, 1, 0
        %v1131 = vsel %vm844, 1, 0
        %v1132 = vsel %vm845, 1, 0
        %v1133 = vsel %vm846, 1, 0
        %v1134 = vsel %vm847, 1, 0
        %vm1135 = vcmp.eq.s32.totalorder %v1115, 1
        %vm1136 = vcmp.eq.s32.totalorder %v1116, 1
        %vm1137 = vcmp.eq.s32.totalorder %v1117, 1
        %vm1138 = vcmp.eq.s32.totalorder %v1118, 1
        %vm1139 = vcmp.eq.s32.totalorder %v1119, 1
        %vm1140 = vcmp.eq.s32.totalorder %v1120, 1
        %vm1141 = vcmp.eq.s32.totalorder %v1121, 1
        %vm1142 = vcmp.eq.s32.totalorder %v1122, 1
        %vm1143 = vcmp.eq.s32.totalorder %v1123, 1
        %vm1144 = vcmp.eq.s32.totalorder %v1124, 1
        %vm1145 = vcmp.eq.s32.totalorder %v1125, 1
        %vm1146 = vcmp.eq.s32.totalorder %v1126, 1
        %vm1147 = vcmp.eq.s32.totalorder %v1127, 1
        %vm1148 = vcmp.eq.s32.totalorder %v1128, 1
        %vm1149 = vcmp.eq.s32.totalorder %v1129, 1
        %vm1150 = vcmp.eq.s32.totalorder %v1130, 1
        %vm1151 = vcmp.eq.s32.totalorder %v1131, 1
        %vm1152 = vcmp.eq.s32.totalorder %v1132, 1
        %vm1153 = vcmp.eq.s32.totalorder %v1133, 1
        %vm1154 = vcmp.eq.s32.totalorder %v1134, 1
        %vm1155 = vmpackc.low %vm1135, %vm1135
        %vm1156 = vmpackc.low %vm1136, %vm1136
        %vm1157 = vmpackc.low %vm1137, %vm1137
        %vm1158 = vmpackc.low %vm1138, %vm1138
        %vm1159 = vmpackc.low %vm1139, %vm1139
        %vm1160 = vmpackc.low %vm1140, %vm1140
        %vm1161 = vmpackc.low %vm1141, %vm1141
        %vm1162 = vmpackc.low %vm1142, %vm1142
        %vm1163 = vmpackc.low %vm1143, %vm1143
        %vm1164 = vmpackc.low %vm1144, %vm1144
        %vm1165 = vmpackc.low %vm1145, %vm1145
        %vm1166 = vmpackc.low %vm1146, %vm1146
        %vm1167 = vmpackc.low %vm1147, %vm1147
        %vm1168 = vmpackc.low %vm1148, %vm1148
        %vm1169 = vmpackc.low %vm1149, %vm1149
        %vm1170 = vmpackc.low %vm1150, %vm1150
        %vm1171 = vmpackc.low %vm1151, %vm1151
        %vm1172 = vmpackc.low %vm1152, %vm1152
        %vm1173 = vmpackc.low %vm1153, %vm1153
        %vm1174 = vmpackc.low %vm1154, %vm1154
        %v1175 = vsel %vm1155, 65537, 0
        %v1176 = vsel %vm1156, 65537, 0
        %v1177 = vsel %vm1157, 65537, 0
        %v1178 = vsel %vm1158, 65537, 0
        %v1179 = vsel %vm1159, 65537, 0
        %v1180 = vsel %vm1160, 65537, 0
        %v1181 = vsel %vm1161, 65537, 0
        %v1182 = vsel %vm1162, 65537, 0
        %v1183 = vsel %vm1163, 65537, 0
        %v1184 = vsel %vm1164, 65537, 0
        %v1185 = vsel %vm1165, 65537, 0
        %v1186 = vsel %vm1166, 65537, 0
        %v1187 = vsel %vm1167, 65537, 0
        %v1188 = vsel %vm1168, 65537, 0
        %v1189 = vsel %vm1169, 65537, 0
        %v1190 = vsel %vm1170, 65537, 0
        %v1191 = vsel %vm1171, 65537, 0
        %v1192 = vsel %vm1172, 65537, 0
        %v1193 = vsel %vm1173, 65537, 0
        %v1194 = vsel %vm1174, 65537, 0
        %v1195 = vunpack.c.l.b16 %v1175
        %v1196 = vunpack.c.l.b16 %v1176
        %v1197 = vunpack.c.l.b16 %v1177
        %v1198 = vunpack.c.l.b16 %v1178
        %v1199 = vunpack.c.l.b16 %v1179
        %v1200 = vunpack.c.l.b16 %v1180
        %v1201 = vunpack.c.l.b16 %v1181
        %v1202 = vunpack.c.l.b16 %v1182
        %v1203 = vunpack.c.l.b16 %v1183
        %v1204 = vunpack.c.l.b16 %v1184
        %v1205 = vunpack.c.l.b16 %v1185
        %v1206 = vunpack.c.l.b16 %v1186
        %v1207 = vunpack.c.l.b16 %v1187
        %v1208 = vunpack.c.l.b16 %v1188
        %v1209 = vunpack.c.l.b16 %v1189
        %v1210 = vunpack.c.l.b16 %v1190
        %v1211 = vunpack.c.l.b16 %v1191
        %v1212 = vunpack.c.l.b16 %v1192
        %v1213 = vunpack.c.l.b16 %v1193
        %v1214 = vunpack.c.l.b16 %v1194
        %v1215 = vpack.c.b16 %v1196, %v1195
        %v1216 = vpack.c.b16 %v1198, %v1197
        %v1217 = vpack.c.b16 %v1200, %v1199
        %v1218 = vpack.c.b16 %v1202, %v1201
        %v1219 = vpack.c.b16 %v1204, %v1203
        %v1220 = vpack.c.b16 %v1206, %v1205
        %v1221 = vpack.c.b16 %v1208, %v1207
        %v1222 = vpack.c.b16 %v1210, %v1209
        %v1223 = vpack.c.b16 %v1212, %v1211
        %v1224 = vpack.c.b16 %v1214, %v1213
        %v1225 = vrot.slane %v1215, 7
        %v1226 = vrot.slane %v1216, 7
        %v1227 = vsel %vm543, %v1225, %v1226
        %v1228 = vrot.slane %v1217, 7
        %v1229 = vsel %vm543, %v1226, %v1228
        %v1230 = vrot.slane %v1218, 7
        %v1231 = vsel %vm543, %v1228, %v1230
        %v1232 = vrot.slane %v1219, 7
        %v1233 = vsel %vm543, %v1230, %v1232
        %v1234 = vrot.slane %v1220, 7
        %v1235 = vsel %vm543, %v1232, %v1234
        %v1236 = vrot.slane %v1221, 7
        %v1237 = vsel %vm543, %v1234, %v1236
        %v1238 = vrot.slane %v1222, 7
        %v1239 = vsel %vm543, %v1236, %v1238
        %v1240 = vrot.slane %v1223, 7
        %v1241 = vsel %vm543, %v1238, %v1240
        %v1242 = vrot.slane %v1224, 7
        %v1243 = vsel %vm543, %v1240, %v1242
        %vm1244 = vcmp.ne.s16.totalorder %v1225, 0
        %vm1245 = vcmp.ne.s16.totalorder %v1227, 0
        %vm1246 = vcmp.ne.s16.totalorder %v1229, 0
        %vm1247 = vcmp.ne.s16.totalorder %v1231, 0
        %vm1248 = vcmp.ne.s16.totalorder %v1233, 0
        %vm1249 = vcmp.ne.s16.totalorder %v1235, 0
        %vm1250 = vcmp.ne.s16.totalorder %v1237, 0
        %vm1251 = vcmp.ne.s16.totalorder %v1239, 0
        %vm1252 = vcmp.ne.s16.totalorder %v1241, 0
        %vm1253 = vcmp.ne.s16.totalorder %v1243, 0
        %vm1254 = vcmp.ne.s16.totalorder %v1242, 0
        %v1255 = vsel %vm1244, 0, %v545
        %v1256 = vsel %vm1245, 0, %v449
        %v1257 = vsel %vm1246, 0, %v457
        %v1258 = vsel %vm1247, 0, %v465
        %v1259 = vsel %vm1248, 0, %v473
        %v1260 = vsel %vm1249, 0, %v481
        %v1261 = vsel %vm1250, 0, %v489
        %v1262 = vsel %vm1251, 0, %v497
        %v1263 = vsel %vm1252, 0, %v505
        %v1264 = vsel %vm1253, 0, %v513
        %v1265 = vsel %vm1254, 0, %v521
        %vm1277 = vcmask 1046528
        %v1278 = vrot.slane %v1255, 1
        %v1279 = vrot.slane %v1256, 1
        %v1280 = vsel %vm1277, %v1278, %v1279
        %v1281 = vrot.slane %v1257, 1
        %v1282 = vsel %vm1277, %v1279, %v1281
        %v1283 = vrot.slane %v1258, 1
        %v1284 = vsel %vm1277, %v1281, %v1283
        %v1285 = vrot.slane %v1259, 1
        %v1286 = vsel %vm1277, %v1283, %v1285
        %v1287 = vrot.slane %v1260, 1
        %v1288 = vsel %vm1277, %v1285, %v1287
        %v1289 = vrot.slane %v1261, 1
        %v1290 = vsel %vm1277, %v1287, %v1289
        %v1291 = vrot.slane %v1262, 1
        %v1292 = vsel %vm1277, %v1289, %v1291
        %v1293 = vrot.slane %v1263, 1
        %v1294 = vsel %vm1277, %v1291, %v1293
        %v1295 = vrot.slane %v1264, 1
        %v1296 = vsel %vm1277, %v1293, %v1295
        %v1297 = vrot.slane %v1265, 1
        %v1298 = vsel %vm1277, %v1295, %v1297
        %1299 = vrot.lane.b32.xlu0 %v1280, 8
        %v1300 = vpop.permute.xlu0 %1299
        %1301 = vrot.lane.b32.xlu0 %v1282, 8
        %v1302 = vpop.permute.xlu0 %1301
        %1303 = vrot.lane.b32.xlu0 %v1284, 8
        %v1304 = vpop.permute.xlu0 %1303
        %1305 = vrot.lane.b32.xlu0 %v1286, 8
        %v1306 = vpop.permute.xlu0 %1305
        %1307 = vrot.lane.b32.xlu0 %v1288, 8
        %v1308 = vpop.permute.xlu0 %1307
        %1309 = vrot.lane.b32.xlu0 %v1290, 8
        %v1310 = vpop.permute.xlu0 %1309
        %1311 = vrot.lane.b32.xlu0 %v1292, 8
        %v1312 = vpop.permute.xlu0 %1311
        %1313 = vrot.lane.b32.xlu0 %v1294, 8
        %v1314 = vpop.permute.xlu0 %1313
        %1315 = vrot.lane.b32.xlu0 %v1296, 8
        %v1316 = vpop.permute.xlu0 %1315
        %1317 = vrot.lane.b32.xlu0 %v1298, 8
        %v1318 = vpop.permute.xlu0 %1317
        %vm1329 = vcmask 97344
        %1330 = vst.msk [vmem:[#allocation3] sm:$0xff] %vm1329, %v1300
        %1331 = vst.msk [vmem:[#allocation3 + $0x8] sm:$0xff] %vm1329, %v1302
        %1332 = vst.msk [vmem:[#allocation3 + $0x10] sm:$0xff] %vm1329, %v1304
        %1333 = vst.msk [vmem:[#allocation3 + $0x18] sm:$0xff] %vm1329, %v1306
        %1334 = vst.msk [vmem:[#allocation3 + $0x20] sm:$0xff] %vm1329, %v1308
        %1335 = vst.msk [vmem:[#allocation3 + $0x28] sm:$0xff] %vm1329, %v1310
        %1336 = vst.msk [vmem:[#allocation3 + $0x30] sm:$0xff] %vm1329, %v1312
        %1337 = vst.msk [vmem:[#allocation3 + $0x38] sm:$0xff] %vm1329, %v1314
        %1338 = vst.msk [vmem:[#allocation3 + $0x40] sm:$0xff] %vm1329, %v1316
        %1339 = vst.msk [vmem:[#allocation3 + $0x48] sm:$0xff] %vm1329, %v1318
        %v1340 = vsel %vm958, 0, %v449
        %v1341 = vsel %vm959, 0, %v457
        %v1342 = vsel %vm960, 0, %v465
        %v1343 = vsel %vm961, 0, %v473
        %v1344 = vsel %vm962, 0, %v481
        %v1345 = vsel %vm963, 0, %v489
        %v1346 = vsel %vm964, 0, %v497
        %v1347 = vsel %vm965, 0, %v505
        %v1348 = vsel %vm966, 0, %v513
        %v1349 = vsel %vm967, 0, %v521
        %1360 = vrot.lane.b32.xlu0 %v1340, 12
        %v1361 = vpop.permute.xlu0 %1360
        %1362 = vrot.lane.b32.xlu0 %v1341, 12
        %v1363 = vpop.permute.xlu0 %1362
        %1364 = vrot.lane.b32.xlu0 %v1342, 12
        %v1365 = vpop.permute.xlu0 %1364
        %1366 = vrot.lane.b32.xlu0 %v1343, 12
        %v1367 = vpop.permute.xlu0 %1366
        %1368 = vrot.lane.b32.xlu0 %v1344, 12
        %v1369 = vpop.permute.xlu0 %1368
        %1370 = vrot.lane.b32.xlu0 %v1345, 12
        %v1371 = vpop.permute.xlu0 %1370
        %1372 = vrot.lane.b32.xlu0 %v1346, 12
        %v1373 = vpop.permute.xlu0 %1372
        %1374 = vrot.lane.b32.xlu0 %v1347, 12
        %v1375 = vpop.permute.xlu0 %1374
        %1376 = vrot.lane.b32.xlu0 %v1348, 12
        %v1377 = vpop.permute.xlu0 %1376
        %1378 = vrot.lane.b32.xlu0 %v1349, 12
        %v1379 = vpop.permute.xlu0 %1378
        %vm1390 = vcmask 130144
        %1391 = vst.msk [vmem:[#allocation3] sm:$0xff] %vm1390, %v1361
        %1392 = vst.msk [vmem:[#allocation3 + $0x8] sm:$0xff] %vm1390, %v1363
        %1393 = vst.msk [vmem:[#allocation3 + $0x10] sm:$0xff] %vm1390, %v1365
        %1394 = vst.msk [vmem:[#allocation3 + $0x18] sm:$0xff] %vm1390, %v1367
        %1395 = vst.msk [vmem:[#allocation3 + $0x20] sm:$0xff] %vm1390, %v1369
        %1396 = vst.msk [vmem:[#allocation3 + $0x28] sm:$0xff] %vm1390, %v1371
        %1397 = vst.msk [vmem:[#allocation3 + $0x30] sm:$0xff] %vm1390, %v1373
        %1398 = vst.msk [vmem:[#allocation3 + $0x38] sm:$0xff] %vm1390, %v1375
        %1399 = vst.msk [vmem:[#allocation3 + $0x40] sm:$0xff] %vm1390, %v1377
        %1400 = vst.msk [vmem:[#allocation3 + $0x48] sm:$0xff] %vm1390, %v1379
        %v1401 = vshrl.u32 %v521, 16
        %v1403 = vor.u32 %v1401, %v1072
        %v1405 = vshll.u32 %v529, 16
        %v1407 = vrot.slane %v1405, 1
        %v1408 = vsel %vm989, %v1403, %v1407
        %1409 = vrot.lane.b32.xlu0 %v1009, 16
        %v1410 = vpop.permute.xlu0 %1409
        %1411 = vrot.lane.b32.xlu0 %v1017, 16
        %v1412 = vpop.permute.xlu0 %1411
        %1413 = vrot.lane.b32.xlu0 %v1025, 16
        %v1414 = vpop.permute.xlu0 %1413
        %1415 = vrot.lane.b32.xlu0 %v1033, 16
        %v1416 = vpop.permute.xlu0 %1415
        %1417 = vrot.lane.b32.xlu0 %v1041, 16
        %v1418 = vpop.permute.xlu0 %1417
        %1419 = vrot.lane.b32.xlu0 %v1049, 16
        %v1420 = vpop.permute.xlu0 %1419
        %1421 = vrot.lane.b32.xlu0 %v1057, 16
        %v1422 = vpop.permute.xlu0 %1421
        %1423 = vrot.lane.b32.xlu0 %v1065, 16
        %v1424 = vpop.permute.xlu0 %1423
        %1425 = vrot.lane.b32.xlu0 %v1073, 16
        %v1426 = vpop.permute.xlu0 %1425
        %1427 = vrot.lane.b32.xlu0 %v1408, 16
        %v1428 = vpop.permute.xlu0 %1427
        %vm1439 = vcmask 162944
        %1440 = vst.msk [vmem:[#allocation3] sm:$0xff] %vm1439, %v1410
        %1441 = vst.msk [vmem:[#allocation3 + $0x8] sm:$0xff] %vm1439, %v1412
        %1442 = vst.msk [vmem:[#allocation3 + $0x10] sm:$0xff] %vm1439, %v1414
        %1443 = vst.msk [vmem:[#allocation3 + $0x18] sm:$0xff] %vm1439, %v1416
        %1444 = vst.msk [vmem:[#allocation3 + $0x20] sm:$0xff] %vm1439, %v1418
        %1445 = vst.msk [vmem:[#allocation3 + $0x28] sm:$0xff] %vm1439, %v1420
        %1446 = vst.msk [vmem:[#allocation3 + $0x30] sm:$0xff] %vm1439, %v1422
        %1447 = vst.msk [vmem:[#allocation3 + $0x38] sm:$0xff] %vm1439, %v1424
        %1448 = vst.msk [vmem:[#allocation3 + $0x40] sm:$0xff] %vm1439, %v1426
        %1449 = vst.msk [vmem:[#allocation3 + $0x48] sm:$0xff] %vm1439, %v1428
        %v1450 = vsel %vm1244, 0, %v449
        %v1451 = vsel %vm1245, 0, %v457
        %v1452 = vsel %vm1246, 0, %v465
        %v1453 = vsel %vm1247, 0, %v473
        %v1454 = vsel %vm1248, 0, %v481
        %v1455 = vsel %vm1249, 0, %v489
        %v1456 = vsel %vm1250, 0, %v497
        %v1457 = vsel %vm1251, 0, %v505
        %v1458 = vsel %vm1252, 0, %v513
        %v1459 = vsel %vm1253, 0, %v521
        %v1460 = vsel %vm1254, 0, %v529
        %v1472 = vrot.slane %v1450, 1
        %v1473 = vrot.slane %v1451, 1
        %v1474 = vsel %vm1277, %v1472, %v1473
        %v1475 = vrot.slane %v1452, 1
        %v1476 = vsel %vm1277, %v1473, %v1475
        %v1477 = vrot.slane %v1453, 1
        %v1478 = vsel %vm1277, %v1475, %v1477
        %v1479 = vrot.slane %v1454, 1
        %v1480 = vsel %vm1277, %v1477, %v1479
        %v1481 = vrot.slane %v1455, 1
        %v1482 = vsel %vm1277, %v1479, %v1481
        %v1483 = vrot.slane %v1456, 1
        %v1484 = vsel %vm1277, %v1481, %v1483
        %v1485 = vrot.slane %v1457, 1
        %v1486 = vsel %vm1277, %v1483, %v1485
        %v1487 = vrot.slane %v1458, 1
        %v1488 = vsel %vm1277, %v1485, %v1487
        %v1489 = vrot.slane %v1459, 1
        %v1490 = vsel %vm1277, %v1487, %v1489
        %v1491 = vrot.slane %v1460, 1
        %v1492 = vsel %vm1277, %v1489, %v1491
        %1493 = vrot.lane.b32.xlu0 %v1474, 20
        %v1494 = vpop.permute.xlu0 %1493
        %1495 = vrot.lane.b32.xlu0 %v1476, 20
        %v1496 = vpop.permute.xlu0 %1495
        %1497 = vrot.lane.b32.xlu0 %v1478, 20
        %v1498 = vpop.permute.xlu0 %1497
        %1499 = vrot.lane.b32.xlu0 %v1480, 20
        %v1500 = vpop.permute.xlu0 %1499
        %1501 = vrot.lane.b32.xlu0 %v1482, 20
        %v1502 = vpop.permute.xlu0 %1501
        %1503 = vrot.lane.b32.xlu0 %v1484, 20
        %v1504 = vpop.permute.xlu0 %1503
        %1505 = vrot.lane.b32.xlu0 %v1486, 20
        %v1506 = vpop.permute.xlu0 %1505
        %1507 = vrot.lane.b32.xlu0 %v1488, 20
        %v1508 = vpop.permute.xlu0 %1507
        %1509 = vrot.lane.b32.xlu0 %v1490, 20
        %v1510 = vpop.permute.xlu0 %1509
        %1511 = vrot.lane.b32.xlu0 %v1492, 20
        %v1512 = vpop.permute.xlu0 %1511
        %vm1523 = vcmask 195744
        %1524 = vst.msk [vmem:[#allocation3] sm:$0xff] %vm1523, %v1494
        %1525 = vst.msk [vmem:[#allocation3 + $0x8] sm:$0xff] %vm1523, %v1496
        %1526 = vst.msk [vmem:[#allocation3 + $0x10] sm:$0xff] %vm1523, %v1498
        %1527 = vst.msk [vmem:[#allocation3 + $0x18] sm:$0xff] %vm1523, %v1500
        %1528 = vst.msk [vmem:[#allocation3 + $0x20] sm:$0xff] %vm1523, %v1502
        %1529 = vst.msk [vmem:[#allocation3 + $0x28] sm:$0xff] %vm1523, %v1504
        %1530 = vst.msk [vmem:[#allocation3 + $0x30] sm:$0xff] %vm1523, %v1506
        %1531 = vst.msk [vmem:[#allocation3 + $0x38] sm:$0xff] %vm1523, %v1508
        %1532 = vst.msk [vmem:[#allocation3 + $0x40] sm:$0xff] %vm1523, %v1510
        %1533 = vst.msk [vmem:[#allocation3 + $0x48] sm:$0xff] %vm1523, %v1512
        %v1534 = vsel %vm958, 0, %v457
        %v1535 = vsel %vm959, 0, %v465
        %v1536 = vsel %vm960, 0, %v473
        %v1537 = vsel %vm961, 0, %v481
        %v1538 = vsel %vm962, 0, %v489
        %v1539 = vsel %vm963, 0, %v497
        %v1540 = vsel %vm964, 0, %v505
        %v1541 = vsel %vm965, 0, %v513
        %v1542 = vsel %vm966, 0, %v521
        %v1543 = vsel %vm967, 0, %v529
        %1554 = vrot.lane.b32.xlu0 %v1534, 24
        %v1555 = vpop.permute.xlu0 %1554
        %1556 = vrot.lane.b32.xlu0 %v1535, 24
        %v1557 = vpop.permute.xlu0 %1556
        %1558 = vrot.lane.b32.xlu0 %v1536, 24
        %v1559 = vpop.permute.xlu0 %1558
        %1560 = vrot.lane.b32.xlu0 %v1537, 24
        %v1561 = vpop.permute.xlu0 %1560
        %1562 = vrot.lane.b32.xlu0 %v1538, 24
        %v1563 = vpop.permute.xlu0 %1562
        %1564 = vrot.lane.b32.xlu0 %v1539, 24
        %v1565 = vpop.permute.xlu0 %1564
        %1566 = vrot.lane.b32.xlu0 %v1540, 24
        %v1567 = vpop.permute.xlu0 %1566
        %1568 = vrot.lane.b32.xlu0 %v1541, 24
        %v1569 = vpop.permute.xlu0 %1568
        %1570 = vrot.lane.b32.xlu0 %v1542, 24
        %v1571 = vpop.permute.xlu0 %1570
        %1572 = vrot.lane.b32.xlu0 %v1543, 24
        %v1573 = vpop.permute.xlu0 %1572
        %vm1584 = vcmask 228544
        %1585 = vst.msk [vmem:[#allocation3] sm:$0xff] %vm1584, %v1555
        %1586 = vst.msk [vmem:[#allocation3 + $0x8] sm:$0xff] %vm1584, %v1557
        %1587 = vst.msk [vmem:[#allocation3 + $0x10] sm:$0xff] %vm1584, %v1559
        %1588 = vst.msk [vmem:[#allocation3 + $0x18] sm:$0xff] %vm1584, %v1561
        %1589 = vst.msk [vmem:[#allocation3 + $0x20] sm:$0xff] %vm1584, %v1563
        %1590 = vst.msk [vmem:[#allocation3 + $0x28] sm:$0xff] %vm1584, %v1565
        %1591 = vst.msk [vmem:[#allocation3 + $0x30] sm:$0xff] %vm1584, %v1567
        %1592 = vst.msk [vmem:[#allocation3 + $0x38] sm:$0xff] %vm1584, %v1569
        %1593 = vst.msk [vmem:[#allocation3 + $0x40] sm:$0xff] %vm1584, %v1571
        %1594 = vst.msk [vmem:[#allocation3 + $0x48] sm:$0xff] %vm1584, %v1573
        %v1595 = vshrl.u32 %v529, 16
        %v1597 = vor.u32 %v1595, %v1407
        %v1599 = vshll.u32 %v546, 16
        %v1601 = vrot.slane %v1599, 1
        %v1602 = vsel %vm989, %v1597, %v1601
        %1603 = vrot.lane.b32.xlu0 %v1017, 28
        %v1604 = vpop.permute.xlu0 %1603
        %1605 = vrot.lane.b32.xlu0 %v1025, 28
        %v1606 = vpop.permute.xlu0 %1605
        %1607 = vrot.lane.b32.xlu0 %v1033, 28
        %v1608 = vpop.permute.xlu0 %1607
        %1609 = vrot.lane.b32.xlu0 %v1041, 28
        %v1610 = vpop.permute.xlu0 %1609
        %1611 = vrot.lane.b32.xlu0 %v1049, 28
        %v1612 = vpop.permute.xlu0 %1611
        %1613 = vrot.lane.b32.xlu0 %v1057, 28
        %v1614 = vpop.permute.xlu0 %1613
        %1615 = vrot.lane.b32.xlu0 %v1065, 28
        %v1616 = vpop.permute.xlu0 %1615
        %1617 = vrot.lane.b32.xlu0 %v1073, 28
        %v1618 = vpop.permute.xlu0 %1617
        %1619 = vrot.lane.b32.xlu0 %v1408, 28
        %v1620 = vpop.permute.xlu0 %1619
        %1621 = vrot.lane.b32.xlu0 %v1602, 28
        %v1622 = vpop.permute.xlu0 %1621
        %vm1633 = vcmask 261344
        %1634 = vst.msk [vmem:[#allocation3] sm:$0xff] %vm1633, %v1604
        %1635 = vst.msk [vmem:[#allocation3 + $0x8] sm:$0xff] %vm1633, %v1606
        %1636 = vst.msk [vmem:[#allocation3 + $0x10] sm:$0xff] %vm1633, %v1608
        %1637 = vst.msk [vmem:[#allocation3 + $0x18] sm:$0xff] %vm1633, %v1610
        %1638 = vst.msk [vmem:[#allocation3 + $0x20] sm:$0xff] %vm1633, %v1612
        %1639 = vst.msk [vmem:[#allocation3 + $0x28] sm:$0xff] %vm1633, %v1614
        %1640 = vst.msk [vmem:[#allocation3 + $0x30] sm:$0xff] %vm1633, %v1616
        %1641 = vst.msk [vmem:[#allocation3 + $0x38] sm:$0xff] %vm1633, %v1618
        %1642 = vst.msk [vmem:[#allocation3 + $0x40] sm:$0xff] %vm1633, %v1620
        %1643 = vst.msk [vmem:[#allocation3 + $0x48] sm:$0xff] %vm1633, %v1622
        %v1644 = vsel %vm1244, 0, %v457
        %v1645 = vsel %vm1245, 0, %v465
        %v1646 = vsel %vm1246, 0, %v473
        %v1647 = vsel %vm1247, 0, %v481
        %v1648 = vsel %vm1248, 0, %v489
        %v1649 = vsel %vm1249, 0, %v497
        %v1650 = vsel %vm1250, 0, %v505
        %v1651 = vsel %vm1251, 0, %v513
        %v1652 = vsel %vm1252, 0, %v521
        %v1653 = vsel %vm1253, 0, %v529
        %v1654 = vsel %vm1254, 0, %v546
        %v1666 = vrot.slane %v1644, 1
        %v1667 = vrot.slane %v1645, 1
        %v1668 = vsel %vm1277, %v1666, %v1667
        %v1669 = vrot.slane %v1646, 1
        %v1670 = vsel %vm1277, %v1667, %v1669
        %v1671 = vrot.slane %v1647, 1
        %v1672 = vsel %vm1277, %v1669, %v1671
        %v1673 = vrot.slane %v1648, 1
        %v1674 = vsel %vm1277, %v1671, %v1673
        %v1675 = vrot.slane %v1649, 1
        %v1676 = vsel %vm1277, %v1673, %v1675
        %v1677 = vrot.slane %v1650, 1
        %v1678 = vsel %vm1277, %v1675, %v1677
        %v1679 = vrot.slane %v1651, 1
        %v1680 = vsel %vm1277, %v1677, %v1679
        %v1681 = vrot.slane %v1652, 1
        %v1682 = vsel %vm1277, %v1679, %v1681
        %v1683 = vrot.slane %v1653, 1
        %v1684 = vsel %vm1277, %v1681, %v1683
        %v1685 = vrot.slane %v1654, 1
        %v1686 = vsel %vm1277, %v1683, %v1685
        %1687 = vrot.lane.b32.xlu0 %v1668, 32
        %v1688 = vpop.permute.xlu0 %1687
        %1689 = vrot.lane.b32.xlu0 %v1670, 32
        %v1690 = vpop.permute.xlu0 %1689
        %1691 = vrot.lane.b32.xlu0 %v1672, 32
        %v1692 = vpop.permute.xlu0 %1691
        %1693 = vrot.lane.b32.xlu0 %v1674, 32
        %v1694 = vpop.permute.xlu0 %1693
        %1695 = vrot.lane.b32.xlu0 %v1676, 32
        %v1696 = vpop.permute.xlu0 %1695
        %1697 = vrot.lane.b32.xlu0 %v1678, 32
        %v1698 = vpop.permute.xlu0 %1697
        %1699 = vrot.lane.b32.xlu0 %v1680, 32
        %v1700 = vpop.permute.xlu0 %1699
        %1701 = vrot.lane.b32.xlu0 %v1682, 32
        %v1702 = vpop.permute.xlu0 %1701
        %1703 = vrot.lane.b32.xlu0 %v1684, 32
        %v1704 = vpop.permute.xlu0 %1703
        %1705 = vrot.lane.b32.xlu0 %v1686, 32
        %v1706 = vpop.permute.xlu0 %1705
        %vm1717 = vcmask 294144
        %1718 = vst.msk [vmem:[#allocation3] sm:$0xff] %vm1717, %v1688
        %1719 = vst.msk [vmem:[#allocation3 + $0x8] sm:$0xff] %vm1717, %v1690
        %1720 = vst.msk [vmem:[#allocation3 + $0x10] sm:$0xff] %vm1717, %v1692
        %1721 = vst.msk [vmem:[#allocation3 + $0x18] sm:$0xff] %vm1717, %v1694
        %1722 = vst.msk [vmem:[#allocation3 + $0x20] sm:$0xff] %vm1717, %v1696
        %1723 = vst.msk [vmem:[#allocation3 + $0x28] sm:$0xff] %vm1717, %v1698
        %1724 = vst.msk [vmem:[#allocation3 + $0x30] sm:$0xff] %vm1717, %v1700
        %1725 = vst.msk [vmem:[#allocation3 + $0x38] sm:$0xff] %vm1717, %v1702
        %1726 = vst.msk [vmem:[#allocation3 + $0x40] sm:$0xff] %vm1717, %v1704
        %1727 = vst.msk [vmem:[#allocation3 + $0x48] sm:$0xff] %vm1717, %v1706
        %v1728 = vld [vmem:[#allocation3] sm:$0xff]
        %v1729 = vld [vmem:[#allocation3 + $0x8] sm:$0xff]
        %v1730 = vld [vmem:[#allocation3 + $0x10] sm:$0xff]
        %v1731 = vld [vmem:[#allocation3 + $0x18] sm:$0xff]
        %v1732 = vld [vmem:[#allocation3 + $0x20] sm:$0xff]
        %v1733 = vld [vmem:[#allocation3 + $0x28] sm:$0xff]
        %v1734 = vld [vmem:[#allocation3 + $0x30] sm:$0xff]
        %v1735 = vld [vmem:[#allocation3 + $0x38] sm:$0xff]
        %v1736 = vld [vmem:[#allocation3 + $0x40] sm:$0xff]
        %v1737 = vld [vmem:[#allocation3 + $0x48] sm:$0xff]
        %v1743 = vunpack.c.l.b16 %v429
        %v1744 = vunpack.c.l.b16 %v430
        %v1745 = vunpack.c.l.b16 %v431
        %v1746 = vunpack.c.l.b16 %v432
        %v1747 = vunpack.c.l.b16 %v433
        %v1748 = vpack.c.b16 %v1744, %v1743
        %v1749 = vpack.c.b16 %v1746, %v1745
        %v1750 = vpack.c.b16 %v1747, %v1747
        %vm1753 = vcmask 293888
        %v1755 = vsel %vm1753, %v1728, 0
        %v1758 = vsel %vm1753, %v1729, 0
        %v1761 = vsel %vm1753, %v1730, 0
        %v1764 = vsel %vm1753, %v1731, 0
        %v1767 = vsel %vm1753, %v1732, 0
        %v1770 = vsel %vm1753, %v1733, 0
        %v1773 = vsel %vm1753, %v1734, 0
        %v1776 = vsel %vm1753, %v1735, 0
        %v1779 = vsel %vm1753, %v1736, 0
        %v1782 = vsel %vm1753, %v1737, 0
        %vm1784 = vcmask 1041408
        %v1786 = vsel %vm1784, %v1750, 0
        %1788 = vmatprep.subr.bf16.mxu0 0
        %1789 = vmatpush1.bf16.msra.mxu0 %v1748
        %1790 = vmatprep.subr.bf16.mxu0 0
        %1791 = vmatpush1.bf16.msra.mxu0 %v1749
        %1792 = vmatprep.subr.bf16.mxu0 0
        %1793 = vmatpush1.bf16.msra.mxu0 %v1786
        %1794 = vmatprep.subr.bf16.mxu0 0
        %1795 = vmatpush1.bf16.msra.mxu0 0
        %1796 = vmatprep.subr.bf16.mxu0 0
        %1797 = vmatpush1.bf16.msra.mxu0 0
        %1798 = vmatprep.subr.bf16.mxu0 0
        %1799 = vmatpush1.bf16.msra.mxu0 0
        %1800 = vmatprep.subr.bf16.mxu0 0
        %1801 = vmatpush1.bf16.msra.mxu0 0
        %1802 = vmatprep.subr.bf16.mxu0 0
        %1803 = vmatpush1.bf16.msra.mxu0 0
        %1804 = vmatprep.subr.bf16.mxu0 0
        %1805 = vmatpush1.bf16.msra.mxu0 0
        %1806 = vmatprep.subr.bf16.mxu0 0
        %1807 = vmatpush1.bf16.msra.mxu0 0
        %1808 = vmatprep.subr.bf16.mxu0 0
        %1809 = vmatpush1.bf16.msra.mxu0 0
        %1810 = vmatprep.subr.bf16.mxu0 0
        %1811 = vmatpush1.bf16.msra.mxu0 0
        %1812 = vmatprep.subr.bf16.mxu0 0
        %1813 = vmatpush1.bf16.msra.mxu0 0
        %1814 = vmatprep.subr.bf16.mxu0 0
        %1815 = vmatpush1.bf16.msra.mxu0 0
        %1816 = vmatprep.subr.bf16.mxu0 0
        %1817 = vmatpush1.bf16.msra.mxu0 0
        %1818 = vmatprep.subr.bf16.mxu0 0
        %1819 = vmatpush1.bf16.msra.mxu0 0
        %1820 = vmatprep.mubr.bf16.mxu0 0
        %1821 = vmatmul.mubr.bf16.gmra.mrb[0].mxu0 %v1755
        %v1822 = vpop.f32.mrb[0].mxu0
        %v1823 = vadd.f32 0.0, %v1822
        %v1824 = vpop.f32.mrb[0].mxu0
        %v1825 = vpop.f32.mrb[0].mxu0
        %v1826 = vadd.f32 0.0, %v1825
        %v1827 = vpop.f32.mrb[0].mxu0
        %1828 = vmatprep.mubr.bf16.mxu0 0
        %1829 = vmatmul.mubr.bf16.gmra.mrb[0].mxu0 %v1758
        %v1830 = vpop.f32.mrb[0].mxu0
        %v1831 = vadd.f32 0.0, %v1830
        %v1832 = vpop.f32.mrb[0].mxu0
        %v1833 = vpop.f32.mrb[0].mxu0
        %v1834 = vadd.f32 0.0, %v1833
        %v1835 = vpop.f32.mrb[0].mxu0
        %1836 = vmatprep.mubr.bf16.mxu0 0
        %1837 = vmatmul.mubr.bf16.gmra.mrb[0].mxu0 %v1761
        %v1838 = vpop.f32.mrb[0].mxu0
        %v1839 = vadd.f32 0.0, %v1838
        %v1840 = vpop.f32.mrb[0].mxu0
        %v1841 = vpop.f32.mrb[0].mxu0
        %v1842 = vadd.f32 0.0, %v1841
        %v1843 = vpop.f32.mrb[0].mxu0
        %1844 = vmatprep.mubr.bf16.mxu0 0
        %1845 = vmatmul.mubr.bf16.gmra.mrb[0].mxu0 %v1764
        %v1846 = vpop.f32.mrb[0].mxu0
        %v1847 = vadd.f32 0.0, %v1846
        %v1848 = vpop.f32.mrb[0].mxu0
        %v1849 = vpop.f32.mrb[0].mxu0
        %v1850 = vadd.f32 0.0, %v1849
        %v1851 = vpop.f32.mrb[0].mxu0
        %1852 = vmatprep.mubr.bf16.mxu0 0
        %1853 = vmatmul.mubr.bf16.gmra.mrb[0].mxu0 %v1767
        %v1854 = vpop.f32.mrb[0].mxu0
        %v1855 = vadd.f32 0.0, %v1854
        %v1856 = vpop.f32.mrb[0].mxu0
        %v1857 = vpop.f32.mrb[0].mxu0
        %v1858 = vadd.f32 0.0, %v1857
        %v1859 = vpop.f32.mrb[0].mxu0
        %1860 = vmatprep.mubr.bf16.mxu0 0
        %1861 = vmatmul.mubr.bf16.gmra.mrb[0].mxu0 %v1770
        %v1862 = vpop.f32.mrb[0].mxu0
        %v1863 = vadd.f32 0.0, %v1862
        %v1864 = vpop.f32.mrb[0].mxu0
        %v1865 = vpop.f32.mrb[0].mxu0
        %v1866 = vadd.f32 0.0, %v1865
        %v1867 = vpop.f32.mrb[0].mxu0
        %1868 = vmatprep.mubr.bf16.mxu0 0
        %1869 = vmatmul.mubr.bf16.gmra.mrb[0].mxu0 %v1773
        %v1870 = vpop.f32.mrb[0].mxu0
        %v1871 = vadd.f32 0.0, %v1870
        %v1872 = vpop.f32.mrb[0].mxu0
        %v1873 = vpop.f32.mrb[0].mxu0
        %v1874 = vadd.f32 0.0, %v1873
        %v1875 = vpop.f32.mrb[0].mxu0
        %1876 = vmatprep.mubr.bf16.mxu0 0
        %1877 = vmatmul.mubr.bf16.gmra.mrb[0].mxu0 %v1776
        %v1878 = vpop.f32.mrb[0].mxu0
        %v1879 = vadd.f32 0.0, %v1878
        %v1880 = vpop.f32.mrb[0].mxu0
        %v1881 = vpop.f32.mrb[0].mxu0
        %v1882 = vadd.f32 0.0, %v1881
        %v1883 = vpop.f32.mrb[0].mxu0
        %1884 = vmatprep.mubr.bf16.mxu0 0
        %1885 = vmatmul.mubr.bf16.gmra.mrb[0].mxu0 %v1779
        %v1886 = vpop.f32.mrb[0].mxu0
        %v1887 = vadd.f32 0.0, %v1886
        %v1888 = vpop.f32.mrb[0].mxu0
        %v1889 = vpop.f32.mrb[0].mxu0
        %v1890 = vadd.f32 0.0, %v1889
        %v1891 = vpop.f32.mrb[0].mxu0
        %1892 = vmatprep.mubr.bf16.mxu0 0
        %1893 = vmatmul.mubr.bf16.gmra.mrb[0].mxu0 %v1782
        %v1894 = vpop.f32.mrb[0].mxu0
        %v1895 = vadd.f32 0.0, %v1894
        %v1896 = vpop.f32.mrb[0].mxu0
        %v1897 = vpop.f32.mrb[0].mxu0
        %v1898 = vadd.f32 0.0, %v1897
        %v1899 = vpop.f32.mrb[0].mxu0
        %1900 = vdwg.mxu0
        %v1901 = vld [vmem:[#allocation11] sm:$0x1]
        %v1903 = vlaneseq
        %v1904 = vshrl.u32 %v1903, 7
        %v1905 = vsub.s32 0, %v1904
        %v1906 = vrot.slane %v1901, %v1905
        %v1908 = vmul.f32 %v1823, %v1906
        %v1909 = vmul.f32 %v1826, %v1906
        %v1910 = vmul.f32 %v1831, %v1906
        %v1911 = vmul.f32 %v1834, %v1906
        %v1912 = vmul.f32 %v1839, %v1906
        %v1913 = vmul.f32 %v1842, %v1906
        %v1914 = vmul.f32 %v1847, %v1906
        %v1915 = vmul.f32 %v1850, %v1906
        %v1916 = vmul.f32 %v1855, %v1906
        %v1917 = vmul.f32 %v1858, %v1906
        %v1918 = vmul.f32 %v1863, %v1906
        %v1919 = vmul.f32 %v1866, %v1906
        %v1920 = vmul.f32 %v1871, %v1906
        %v1921 = vmul.f32 %v1874, %v1906
        %v1922 = vmul.f32 %v1879, %v1906
        %v1923 = vmul.f32 %v1882, %v1906
        %v1924 = vmul.f32 %v1887, %v1906
        %v1925 = vmul.f32 %v1890, %v1906
        %v1926 = vmul.f32 %v1895, %v1906
        %v1927 = vmul.f32 %v1898, %v1906
        %v1928 = vld [vmem:[#allocation12] sm:$0x1]
        %v1930 = vlaneseq
        %v1931 = vshrl.u32 %v1930, 7
        %v1932 = vsub.s32 0, %v1931
        %v1933 = vrot.slane %v1928, %v1932
        %v1935 = vadd.f32 %v1908, %v1933
        %v1936 = vadd.f32 %v1909, %v1933
        %v1937 = vadd.f32 %v1910, %v1933
        %v1938 = vadd.f32 %v1911, %v1933
        %v1939 = vadd.f32 %v1912, %v1933
        %v1940 = vadd.f32 %v1913, %v1933
        %v1941 = vadd.f32 %v1914, %v1933
        %v1942 = vadd.f32 %v1915, %v1933
        %v1943 = vadd.f32 %v1916, %v1933
        %v1944 = vadd.f32 %v1917, %v1933
        %v1945 = vadd.f32 %v1918, %v1933
        %v1946 = vadd.f32 %v1919, %v1933
        %v1947 = vadd.f32 %v1920, %v1933
        %v1948 = vadd.f32 %v1921, %v1933
        %v1949 = vadd.f32 %v1922, %v1933
        %v1950 = vadd.f32 %v1923, %v1933
        %v1951 = vadd.f32 %v1924, %v1933
        %v1952 = vadd.f32 %v1925, %v1933
        %v1953 = vadd.f32 %v1926, %v1933
        %v1954 = vadd.f32 %v1927, %v1933
        %v1955 = vmax.f32 %v1935, 0.0
        %v1956 = vmax.f32 %v1936, 0.0
        %v1957 = vmax.f32 %v1937, 0.0
        %v1958 = vmax.f32 %v1938, 0.0
        %v1959 = vmax.f32 %v1939, 0.0
        %v1960 = vmax.f32 %v1940, 0.0
        %v1961 = vmax.f32 %v1941, 0.0
        %v1962 = vmax.f32 %v1942, 0.0
        %v1963 = vmax.f32 %v1943, 0.0
        %v1964 = vmax.f32 %v1944, 0.0
        %v1965 = vmax.f32 %v1945, 0.0
        %v1966 = vmax.f32 %v1946, 0.0
        %v1967 = vmax.f32 %v1947, 0.0
        %v1968 = vmax.f32 %v1948, 0.0
        %v1969 = vmax.f32 %v1949, 0.0
        %v1970 = vmax.f32 %v1950, 0.0
        %v1971 = vmax.f32 %v1951, 0.0
        %v1972 = vmax.f32 %v1952, 0.0
        %v1973 = vmax.f32 %v1953, 0.0
        %v1974 = vmax.f32 %v1954, 0.0
        %vm1975 = vcmp.lt.s32.totalorder %v548, 16
        %vm1976 = vcmp.lt.s32.totalorder %v549, 16
        %vm1977 = vcmp.lt.s32.totalorder %v550, 16
        %vm1978 = vcmp.lt.s32.totalorder %v551, 16
        %vm1979 = vcmp.lt.s32.totalorder %v552, 16
        %vm1980 = vcmp.lt.s32.totalorder %v553, 16
        %vm1981 = vcmp.lt.s32.totalorder %v554, 16
        %vm1982 = vcmp.lt.s32.totalorder %v555, 16
        %vm1983 = vcmp.lt.s32.totalorder %v556, 16
        %vm1984 = vcmp.lt.s32.totalorder %v557, 16
        %vm1985 = vcmp.lt.s32.totalorder %v558, 16
        %vm1986 = vcmp.lt.s32.totalorder %v559, 16
        %vm1987 = vcmp.lt.s32.totalorder %v560, 16
        %vm1988 = vcmp.lt.s32.totalorder %v561, 16
        %vm1989 = vcmp.lt.s32.totalorder %v562, 16
        %vm1990 = vcmp.lt.s32.totalorder %v563, 16
        %vm1991 = vcmp.lt.s32.totalorder %v564, 16
        %vm1992 = vcmp.lt.s32.totalorder %v565, 16
        %vm1993 = vcmp.lt.s32.totalorder %v566, 16
        %vm1994 = vcmp.lt.s32.totalorder %v567, 16
        %s1995 = scalar_select %p373, 1, 0
        %v1996 = vstv %s1995
        %vm1997 = vcmp.eq.s32.totalorder %v1996, 1
        %vm1998 = vmand %vm1997, %vm1975
        %vm1999 = vmand %vm1997, %vm1976
        %vm2000 = vmand %vm1997, %vm1977
        %vm2001 = vmand %vm1997, %vm1978
        %vm2002 = vmand %vm1997, %vm1979
        %vm2003 = vmand %vm1997, %vm1980
        %vm2004 = vmand %vm1997, %vm1981
        %vm2005 = vmand %vm1997, %vm1982
        %vm2006 = vmand %vm1997, %vm1983
        %vm2007 = vmand %vm1997, %vm1984
        %vm2008 = vmand %vm1997, %vm1985
        %vm2009 = vmand %vm1997, %vm1986
        %vm2010 = vmand %vm1997, %vm1987
        %vm2011 = vmand %vm1997, %vm1988
        %vm2012 = vmand %vm1997, %vm1989
        %vm2013 = vmand %vm1997, %vm1990
        %vm2014 = vmand %vm1997, %vm1991
        %vm2015 = vmand %vm1997, %vm1992
        %vm2016 = vmand %vm1997, %vm1993
        %vm2017 = vmand %vm1997, %vm1994
        %vm2018 = vcmp.ge.s32.totalorder %v548, 144
        %vm2019 = vcmp.ge.s32.totalorder %v549, 144
        %vm2020 = vcmp.ge.s32.totalorder %v550, 144
        %vm2021 = vcmp.ge.s32.totalorder %v551, 144
        %vm2022 = vcmp.ge.s32.totalorder %v552, 144
        %vm2023 = vcmp.ge.s32.totalorder %v553, 144
        %vm2024 = vcmp.ge.s32.totalorder %v554, 144
        %vm2025 = vcmp.ge.s32.totalorder %v555, 144
        %vm2026 = vcmp.ge.s32.totalorder %v556, 144
        %vm2027 = vcmp.ge.s32.totalorder %v557, 144
        %vm2028 = vcmp.ge.s32.totalorder %v558, 144
        %vm2029 = vcmp.ge.s32.totalorder %v559, 144
        %vm2030 = vcmp.ge.s32.totalorder %v560, 144
        %vm2031 = vcmp.ge.s32.totalorder %v561, 144
        %vm2032 = vcmp.ge.s32.totalorder %v562, 144
        %vm2033 = vcmp.ge.s32.totalorder %v563, 144
        %vm2034 = vcmp.ge.s32.totalorder %v564, 144
        %vm2035 = vcmp.ge.s32.totalorder %v565, 144
        %vm2036 = vcmp.ge.s32.totalorder %v566, 144
        %vm2037 = vcmp.ge.s32.totalorder %v567, 144
        %s2038 = scalar_select %p406, 1, 0
        %v2039 = vstv %s2038
        %vm2040 = vcmp.eq.s32.totalorder %v2039, 1
        %vm2041 = vmand %vm2040, %vm2018
        %vm2042 = vmand %vm2040, %vm2019
        %vm2043 = vmand %vm2040, %vm2020
        %vm2044 = vmand %vm2040, %vm2021
        %vm2045 = vmand %vm2040, %vm2022
        %vm2046 = vmand %vm2040, %vm2023
        %vm2047 = vmand %vm2040, %vm2024
        %vm2048 = vmand %vm2040, %vm2025
        %vm2049 = vmand %vm2040, %vm2026
        %vm2050 = vmand %vm2040, %vm2027
        %vm2051 = vmand %vm2040, %vm2028
        %vm2052 = vmand %vm2040, %vm2029
        %vm2053 = vmand %vm2040, %vm2030
        %vm2054 = vmand %vm2040, %vm2031
        %vm2055 = vmand %vm2040, %vm2032
        %vm2056 = vmand %vm2040, %vm2033
        %vm2057 = vmand %vm2040, %vm2034
        %vm2058 = vmand %vm2040, %vm2035
        %vm2059 = vmand %vm2040, %vm2036
        %vm2060 = vmand %vm2040, %vm2037
        %vm2061 = vmor %vm1998, %vm2041
        %vm2062 = vmor %vm1999, %vm2042
        %vm2063 = vmor %vm2000, %vm2043
        %vm2064 = vmor %vm2001, %vm2044
        %vm2065 = vmor %vm2002, %vm2045
        %vm2066 = vmor %vm2003, %vm2046
        %vm2067 = vmor %vm2004, %vm2047
        %vm2068 = vmor %vm2005, %vm2048
        %vm2069 = vmor %vm2006, %vm2049
        %vm2070 = vmor %vm2007, %vm2050
        %vm2071 = vmor %vm2008, %vm2051
        %vm2072 = vmor %vm2009, %vm2052
        %vm2073 = vmor %vm2010, %vm2053
        %vm2074 = vmor %vm2011, %vm2054
        %vm2075 = vmor %vm2012, %vm2055
        %vm2076 = vmor %vm2013, %vm2056
        %vm2077 = vmor %vm2014, %vm2057
        %vm2078 = vmor %vm2015, %vm2058
        %vm2079 = vmor %vm2016, %vm2059
        %vm2080 = vmor %vm2017, %vm2060
        %v2081 = vsel %vm2061, 1, 0
        %v2082 = vsel %vm2062, 1, 0
        %v2083 = vsel %vm2063, 1, 0
        %v2084 = vsel %vm2064, 1, 0
        %v2085 = vsel %vm2065, 1, 0
        %v2086 = vsel %vm2066, 1, 0
        %v2087 = vsel %vm2067, 1, 0
        %v2088 = vsel %vm2068, 1, 0
        %v2089 = vsel %vm2069, 1, 0
        %v2090 = vsel %vm2070, 1, 0
        %v2091 = vsel %vm2071, 1, 0
        %v2092 = vsel %vm2072, 1, 0
        %v2093 = vsel %vm2073, 1, 0
        %v2094 = vsel %vm2074, 1, 0
        %v2095 = vsel %vm2075, 1, 0
        %v2096 = vsel %vm2076, 1, 0
        %v2097 = vsel %vm2077, 1, 0
        %v2098 = vsel %vm2078, 1, 0
        %v2099 = vsel %vm2079, 1, 0
        %v2100 = vsel %vm2080, 1, 0
        %vm2101 = vcmp.eq.s32.totalorder %v2081, 1
        %vm2102 = vcmp.eq.s32.totalorder %v2082, 1
        %vm2103 = vcmp.eq.s32.totalorder %v2083, 1
        %vm2104 = vcmp.eq.s32.totalorder %v2084, 1
        %vm2105 = vcmp.eq.s32.totalorder %v2085, 1
        %vm2106 = vcmp.eq.s32.totalorder %v2086, 1
        %vm2107 = vcmp.eq.s32.totalorder %v2087, 1
        %vm2108 = vcmp.eq.s32.totalorder %v2088, 1
        %vm2109 = vcmp.eq.s32.totalorder %v2089, 1
        %vm2110 = vcmp.eq.s32.totalorder %v2090, 1
        %vm2111 = vcmp.eq.s32.totalorder %v2091, 1
        %vm2112 = vcmp.eq.s32.totalorder %v2092, 1
        %vm2113 = vcmp.eq.s32.totalorder %v2093, 1
        %vm2114 = vcmp.eq.s32.totalorder %v2094, 1
        %vm2115 = vcmp.eq.s32.totalorder %v2095, 1
        %vm2116 = vcmp.eq.s32.totalorder %v2096, 1
        %vm2117 = vcmp.eq.s32.totalorder %v2097, 1
        %vm2118 = vcmp.eq.s32.totalorder %v2098, 1
        %vm2119 = vcmp.eq.s32.totalorder %v2099, 1
        %vm2120 = vcmp.eq.s32.totalorder %v2100, 1
        %v2121 = vsel %vm2101, 0.0, %v1955
        %v2122 = vsel %vm2102, 0.0, %v1956
        %v2123 = vsel %vm2103, 0.0, %v1957
        %v2124 = vsel %vm2104, 0.0, %v1958
        %v2125 = vsel %vm2105, 0.0, %v1959
        %v2126 = vsel %vm2106, 0.0, %v1960
        %v2127 = vsel %vm2107, 0.0, %v1961
        %v2128 = vsel %vm2108, 0.0, %v1962
        %v2129 = vsel %vm2109, 0.0, %v1963
        %v2130 = vsel %vm2110, 0.0, %v1964
        %v2131 = vsel %vm2111, 0.0, %v1965
        %v2132 = vsel %vm2112, 0.0, %v1966
        %v2133 = vsel %vm2113, 0.0, %v1967
        %v2134 = vsel %vm2114, 0.0, %v1968
        %v2135 = vsel %vm2115, 0.0, %v1969
        %v2136 = vsel %vm2116, 0.0, %v1970
        %v2137 = vsel %vm2117, 0.0, %v1971
        %v2138 = vsel %vm2118, 0.0, %v1972
        %v2139 = vsel %vm2119, 0.0, %v1973
        %v2140 = vsel %vm2120, 0.0, %v1974
        %v2141 = vpack.c.bf16 %v2122, %v2121
        %v2142 = vpack.c.bf16 %v2124, %v2123
        %v2143 = vpack.c.bf16 %v2126, %v2125
        %v2144 = vpack.c.bf16 %v2128, %v2127
        %v2145 = vpack.c.bf16 %v2130, %v2129
        %v2146 = vpack.c.bf16 %v2132, %v2131
        %v2147 = vpack.c.bf16 %v2134, %v2133
        %v2148 = vpack.c.bf16 %v2136, %v2135
        %v2149 = vpack.c.bf16 %v2138, %v2137
        %v2150 = vpack.c.bf16 %v2140, %v2139
        %v2151 = vld [vmem:[#allocation9] sm:$0xf]
        %v2152 = vld [vmem:[#allocation9 + $0x4] sm:$0xf]
        %v2153 = vld [vmem:[#allocation9 + $0x8] sm:$0xf]
        %v2154 = vld [vmem:[#allocation9 + $0xc] sm:$0xf]
        %v2155 = vld [vmem:[#allocation9 + $0x10] sm:$0x3]
        %v2157 = vshrl.u32 %v2141, 16
        %v2159 = vrot.slane %v2157, 7
        %v2160 = vshll.u32 %v2141, 16
        %v2162 = vor.u32 %v2159, %v2160
        %v2164 = vshrl.u32 %v2142, 16
        %v2166 = vrot.slane %v2164, 7
        %v2167 = vshll.u32 %v2142, 16
        %v2169 = vor.u32 %v2166, %v2167
        %v2170 = vsel %vm434, %v2159, %v2169
        %v2172 = vshrl.u32 %v2143, 16
        %v2174 = vrot.slane %v2172, 7
        %v2175 = vshll.u32 %v2143, 16
        %v2177 = vor.u32 %v2174, %v2175
        %v2178 = vsel %vm434, %v2166, %v2177
        %v2180 = vshrl.u32 %v2144, 16
        %v2182 = vrot.slane %v2180, 7
        %v2183 = vshll.u32 %v2144, 16
        %v2185 = vor.u32 %v2182, %v2183
        %v2186 = vsel %vm434, %v2174, %v2185
        %v2188 = vshrl.u32 %v2145, 16
        %v2190 = vrot.slane %v2188, 7
        %v2191 = vshll.u32 %v2145, 16
        %v2193 = vor.u32 %v2190, %v2191
        %v2194 = vsel %vm434, %v2182, %v2193
        %v2196 = vshrl.u32 %v2146, 16
        %v2198 = vrot.slane %v2196, 7
        %v2199 = vshll.u32 %v2146, 16
        %v2201 = vor.u32 %v2198, %v2199
        %v2202 = vsel %vm434, %v2190, %v2201
        %v2204 = vshrl.u32 %v2147, 16
        %v2206 = vrot.slane %v2204, 7
        %v2207 = vshll.u32 %v2147, 16
        %v2209 = vor.u32 %v2206, %v2207
        %v2210 = vsel %vm434, %v2198, %v2209
        %v2212 = vshrl.u32 %v2148, 16
        %v2214 = vrot.slane %v2212, 7
        %v2215 = vshll.u32 %v2148, 16
        %v2217 = vor.u32 %v2214, %v2215
        %v2218 = vsel %vm434, %v2206, %v2217
        %v2220 = vshrl.u32 %v2149, 16
        %v2222 = vrot.slane %v2220, 7
        %v2223 = vshll.u32 %v2149, 16
        %v2225 = vor.u32 %v2222, %v2223
        %v2226 = vsel %vm434, %v2214, %v2225
        %v2228 = vshrl.u32 %v2150, 16
        %v2230 = vrot.slane %v2228, 7
        %v2231 = vshll.u32 %v2150, 16
        %v2233 = vor.u32 %v2230, %v2231
        %v2234 = vsel %vm434, %v2222, %v2233
        %v2246 = vsel %vm544, 0, %v2162
        %v2247 = vsel %vm544, %v2230, 0
        %v2248 = vsel %vm958, 0, %v2246
        %v2249 = vsel %vm959, 0, %v2170
        %v2250 = vsel %vm960, 0, %v2178
        %v2251 = vsel %vm961, 0, %v2186
        %v2252 = vsel %vm962, 0, %v2194
        %v2253 = vsel %vm963, 0, %v2202
        %v2254 = vsel %vm964, 0, %v2210
        %v2255 = vsel %vm965, 0, %v2218
        %2256 = vst.msk [vmem:[#allocation4] sm:$0xff] %vm978, %v2248
        %2257 = vst.msk [vmem:[#allocation4 + $0x8] sm:$0xff] %vm978, %v2249
        %2258 = vst.msk [vmem:[#allocation4 + $0x10] sm:$0xff] %vm978, %v2250
        %2259 = vst.msk [vmem:[#allocation4 + $0x18] sm:$0xff] %vm978, %v2251
        %2260 = vst.msk [vmem:[#allocation4 + $0x20] sm:$0xff] %vm978, %v2252
        %2261 = vst.msk [vmem:[#allocation4 + $0x28] sm:$0xff] %vm978, %v2253
        %2262 = vst.msk [vmem:[#allocation4 + $0x30] sm:$0xff] %vm978, %v2254
        %2263 = vst.msk [vmem:[#allocation4 + $0x38] sm:$0xff] %vm978, %v2255
        %v2265 = vshrl.u32 %v2246, 16
        %v2267 = vshll.u32 %v2246, 16
        %v2269 = vrot.slane %v2267, 1
        %v2270 = vor.u32 %v2265, %v2269
        %v2272 = vshll.u32 %v2170, 16
        %v2274 = vrot.slane %v2272, 1
        %v2275 = vsel %vm989, %v2270, %v2274
        %v2276 = vshrl.u32 %v2170, 16
        %v2278 = vor.u32 %v2276, %v2274
        %v2280 = vshll.u32 %v2178, 16
        %v2282 = vrot.slane %v2280, 1
        %v2283 = vsel %vm989, %v2278, %v2282
        %v2284 = vshrl.u32 %v2178, 16
        %v2286 = vor.u32 %v2284, %v2282
        %v2288 = vshll.u32 %v2186, 16
        %v2290 = vrot.slane %v2288, 1
        %v2291 = vsel %vm989, %v2286, %v2290
        %v2292 = vshrl.u32 %v2186, 16
        %v2294 = vor.u32 %v2292, %v2290
        %v2296 = vshll.u32 %v2194, 16
        %v2298 = vrot.slane %v2296, 1
        %v2299 = vsel %vm989, %v2294, %v2298
        %v2300 = vshrl.u32 %v2194, 16
        %v2302 = vor.u32 %v2300, %v2298
        %v2304 = vshll.u32 %v2202, 16
        %v2306 = vrot.slane %v2304, 1
        %v2307 = vsel %vm989, %v2302, %v2306
        %v2308 = vshrl.u32 %v2202, 16
        %v2310 = vor.u32 %v2308, %v2306
        %v2312 = vshll.u32 %v2210, 16
        %v2314 = vrot.slane %v2312, 1
        %v2315 = vsel %vm989, %v2310, %v2314
        %v2316 = vshrl.u32 %v2210, 16
        %v2318 = vor.u32 %v2316, %v2314
        %v2320 = vshll.u32 %v2218, 16
        %v2322 = vrot.slane %v2320, 1
        %v2323 = vsel %vm989, %v2318, %v2322
        %v2324 = vshrl.u32 %v2218, 16
        %v2326 = vor.u32 %v2324, %v2322
        %v2328 = vshll.u32 %v2226, 16
        %v2330 = vrot.slane %v2328, 1
        %v2331 = vsel %vm989, %v2326, %v2330
        %2332 = vrot.lane.b32.xlu0 %v2275, 4
        %v2333 = vpop.permute.xlu0 %2332
        %2334 = vrot.lane.b32.xlu0 %v2283, 4
        %v2335 = vpop.permute.xlu0 %2334
        %2336 = vrot.lane.b32.xlu0 %v2291, 4
        %v2337 = vpop.permute.xlu0 %2336
        %2338 = vrot.lane.b32.xlu0 %v2299, 4
        %v2339 = vpop.permute.xlu0 %2338
        %2340 = vrot.lane.b32.xlu0 %v2307, 4
        %v2341 = vpop.permute.xlu0 %2340
        %2342 = vrot.lane.b32.xlu0 %v2315, 4
        %v2343 = vpop.permute.xlu0 %2342
        %2344 = vrot.lane.b32.xlu0 %v2323, 4
        %v2345 = vpop.permute.xlu0 %2344
        %2346 = vrot.lane.b32.xlu0 %v2331, 4
        %v2347 = vpop.permute.xlu0 %2346
        %2356 = vst.msk [vmem:[#allocation4] sm:$0xff] %vm1104, %v2333
        %2357 = vst.msk [vmem:[#allocation4 + $0x8] sm:$0xff] %vm1104, %v2335
        %2358 = vst.msk [vmem:[#allocation4 + $0x10] sm:$0xff] %vm1104, %v2337
        %2359 = vst.msk [vmem:[#allocation4 + $0x18] sm:$0xff] %vm1104, %v2339
        %2360 = vst.msk [vmem:[#allocation4 + $0x20] sm:$0xff] %vm1104, %v2341
        %2361 = vst.msk [vmem:[#allocation4 + $0x28] sm:$0xff] %vm1104, %v2343
        %2362 = vst.msk [vmem:[#allocation4 + $0x30] sm:$0xff] %vm1104, %v2345
        %2363 = vst.msk [vmem:[#allocation4 + $0x38] sm:$0xff] %vm1104, %v2347
        %vm2364 = vcmp.ne.s16.totalorder %v1238, 0
        %v2365 = vsel %vm1244, 0, %v2246
        %v2366 = vsel %vm1245, 0, %v2170
        %v2367 = vsel %vm1246, 0, %v2178
        %v2368 = vsel %vm1247, 0, %v2186
        %v2369 = vsel %vm1248, 0, %v2194
        %v2370 = vsel %vm1249, 0, %v2202
        %v2371 = vsel %vm1250, 0, %v2210
        %v2372 = vsel %vm1251, 0, %v2218
        %v2373 = vsel %vm2364, 0, %v2226
        %v2383 = vrot.slane %v2365, 1
        %v2384 = vrot.slane %v2366, 1
        %v2385 = vsel %vm1277, %v2383, %v2384
        %v2386 = vrot.slane %v2367, 1
        %v2387 = vsel %vm1277, %v2384, %v2386
        %v2388 = vrot.slane %v2368, 1
        %v2389 = vsel %vm1277, %v2386, %v2388
        %v2390 = vrot.slane %v2369, 1
        %v2391 = vsel %vm1277, %v2388, %v2390
        %v2392 = vrot.slane %v2370, 1
        %v2393 = vsel %vm1277, %v2390, %v2392
        %v2394 = vrot.slane %v2371, 1
        %v2395 = vsel %vm1277, %v2392, %v2394
        %v2396 = vrot.slane %v2372, 1
        %v2397 = vsel %vm1277, %v2394, %v2396
        %v2398 = vrot.slane %v2373, 1
        %v2399 = vsel %vm1277, %v2396, %v2398
        %2400 = vrot.lane.b32.xlu0 %v2385, 8
        %v2401 = vpop.permute.xlu0 %2400
        %2402 = vrot.lane.b32.xlu0 %v2387, 8
        %v2403 = vpop.permute.xlu0 %2402
        %2404 = vrot.lane.b32.xlu0 %v2389, 8
        %v2405 = vpop.permute.xlu0 %2404
        %2406 = vrot.lane.b32.xlu0 %v2391, 8
        %v2407 = vpop.permute.xlu0 %2406
        %2408 = vrot.lane.b32.xlu0 %v2393, 8
        %v2409 = vpop.permute.xlu0 %2408
        %2410 = vrot.lane.b32.xlu0 %v2395, 8
        %v2411 = vpop.permute.xlu0 %2410
        %2412 = vrot.lane.b32.xlu0 %v2397, 8
        %v2413 = vpop.permute.xlu0 %2412
        %2414 = vrot.lane.b32.xlu0 %v2399, 8
        %v2415 = vpop.permute.xlu0 %2414
        %2424 = vst.msk [vmem:[#allocation4] sm:$0xff] %vm1329, %v2401
        %2425 = vst.msk [vmem:[#allocation4 + $0x8] sm:$0xff] %vm1329, %v2403
        %2426 = vst.msk [vmem:[#allocation4 + $0x10] sm:$0xff] %vm1329, %v2405
        %2427 = vst.msk [vmem:[#allocation4 + $0x18] sm:$0xff] %vm1329, %v2407
        %2428 = vst.msk [vmem:[#allocation4 + $0x20] sm:$0xff] %vm1329, %v2409
        %2429 = vst.msk [vmem:[#allocation4 + $0x28] sm:$0xff] %vm1329, %v2411
        %2430 = vst.msk [vmem:[#allocation4 + $0x30] sm:$0xff] %vm1329, %v2413
        %2431 = vst.msk [vmem:[#allocation4 + $0x38] sm:$0xff] %vm1329, %v2415
        %v2432 = vsel %vm958, 0, %v2170
        %v2433 = vsel %vm959, 0, %v2178
        %v2434 = vsel %vm960, 0, %v2186
        %v2435 = vsel %vm961, 0, %v2194
        %v2436 = vsel %vm962, 0, %v2202
        %v2437 = vsel %vm963, 0, %v2210
        %v2438 = vsel %vm964, 0, %v2218
        %v2439 = vsel %vm965, 0, %v2226
        %2448 = vrot.lane.b32.xlu0 %v2432, 12
        %v2449 = vpop.permute.xlu0 %2448
        %2450 = vrot.lane.b32.xlu0 %v2433, 12
        %v2451 = vpop.permute.xlu0 %2450
        %2452 = vrot.lane.b32.xlu0 %v2434, 12
        %v2453 = vpop.permute.xlu0 %2452
        %2454 = vrot.lane.b32.xlu0 %v2435, 12
        %v2455 = vpop.permute.xlu0 %2454
        %2456 = vrot.lane.b32.xlu0 %v2436, 12
        %v2457 = vpop.permute.xlu0 %2456
        %2458 = vrot.lane.b32.xlu0 %v2437, 12
        %v2459 = vpop.permute.xlu0 %2458
        %2460 = vrot.lane.b32.xlu0 %v2438, 12
        %v2461 = vpop.permute.xlu0 %2460
        %2462 = vrot.lane.b32.xlu0 %v2439, 12
        %v2463 = vpop.permute.xlu0 %2462
        %2472 = vst.msk [vmem:[#allocation4] sm:$0xff] %vm1390, %v2449
        %2473 = vst.msk [vmem:[#allocation4 + $0x8] sm:$0xff] %vm1390, %v2451
        %2474 = vst.msk [vmem:[#allocation4 + $0x10] sm:$0xff] %vm1390, %v2453
        %2475 = vst.msk [vmem:[#allocation4 + $0x18] sm:$0xff] %vm1390, %v2455
        %2476 = vst.msk [vmem:[#allocation4 + $0x20] sm:$0xff] %vm1390, %v2457
        %2477 = vst.msk [vmem:[#allocation4 + $0x28] sm:$0xff] %vm1390, %v2459
        %2478 = vst.msk [vmem:[#allocation4 + $0x30] sm:$0xff] %vm1390, %v2461
        %2479 = vst.msk [vmem:[#allocation4 + $0x38] sm:$0xff] %vm1390, %v2463
        %v2480 = vshrl.u32 %v2226, 16
        %v2482 = vor.u32 %v2480, %v2330
        %v2484 = vshll.u32 %v2234, 16
        %v2486 = vrot.slane %v2484, 1
        %v2487 = vsel %vm989, %v2482, %v2486
        %2488 = vrot.lane.b32.xlu0 %v2283, 16
        %v2489 = vpop.permute.xlu0 %2488
        %2490 = vrot.lane.b32.xlu0 %v2291, 16
        %v2491 = vpop.permute.xlu0 %2490
        %2492 = vrot.lane.b32.xlu0 %v2299, 16
        %v2493 = vpop.permute.xlu0 %2492
        %2494 = vrot.lane.b32.xlu0 %v2307, 16
        %v2495 = vpop.permute.xlu0 %2494
        %2496 = vrot.lane.b32.xlu0 %v2315, 16
        %v2497 = vpop.permute.xlu0 %2496
        %2498 = vrot.lane.b32.xlu0 %v2323, 16
        %v2499 = vpop.permute.xlu0 %2498
        %2500 = vrot.lane.b32.xlu0 %v2331, 16
        %v2501 = vpop.permute.xlu0 %2500
        %2502 = vrot.lane.b32.xlu0 %v2487, 16
        %v2503 = vpop.permute.xlu0 %2502
        %2512 = vst.msk [vmem:[#allocation4] sm:$0xff] %vm1439, %v2489
        %2513 = vst.msk [vmem:[#allocation4 + $0x8] sm:$0xff] %vm1439, %v2491
        %2514 = vst.msk [vmem:[#allocation4 + $0x10] sm:$0xff] %vm1439, %v2493
        %2515 = vst.msk [vmem:[#allocation4 + $0x18] sm:$0xff] %vm1439, %v2495
        %2516 = vst.msk [vmem:[#allocation4 + $0x20] sm:$0xff] %vm1439, %v2497
        %2517 = vst.msk [vmem:[#allocation4 + $0x28] sm:$0xff] %vm1439, %v2499
        %2518 = vst.msk [vmem:[#allocation4 + $0x30] sm:$0xff] %vm1439, %v2501
        %2519 = vst.msk [vmem:[#allocation4 + $0x38] sm:$0xff] %vm1439, %v2503
        %v2520 = vsel %vm1244, 0, %v2170
        %v2521 = vsel %vm1245, 0, %v2178
        %v2522 = vsel %vm1246, 0, %v2186
        %v2523 = vsel %vm1247, 0, %v2194
        %v2524 = vsel %vm1248, 0, %v2202
        %v2525 = vsel %vm1249, 0, %v2210
        %v2526 = vsel %vm1250, 0, %v2218
        %v2527 = vsel %vm1251, 0, %v2226
        %v2528 = vsel %vm2364, 0, %v2234
        %v2538 = vrot.slane %v2520, 1
        %v2539 = vrot.slane %v2521, 1
        %v2540 = vsel %vm1277, %v2538, %v2539
        %v2541 = vrot.slane %v2522, 1
        %v2542 = vsel %vm1277, %v2539, %v2541
        %v2543 = vrot.slane %v2523, 1
        %v2544 = vsel %vm1277, %v2541, %v2543
        %v2545 = vrot.slane %v2524, 1
        %v2546 = vsel %vm1277, %v2543, %v2545
        %v2547 = vrot.slane %v2525, 1
        %v2548 = vsel %vm1277, %v2545, %v2547
        %v2549 = vrot.slane %v2526, 1
        %v2550 = vsel %vm1277, %v2547, %v2549
        %v2551 = vrot.slane %v2527, 1
        %v2552 = vsel %vm1277, %v2549, %v2551
        %v2553 = vrot.slane %v2528, 1
        %v2554 = vsel %vm1277, %v2551, %v2553
        %2555 = vrot.lane.b32.xlu0 %v2540, 20
        %v2556 = vpop.permute.xlu0 %2555
        %2557 = vrot.lane.b32.xlu0 %v2542, 20
        %v2558 = vpop.permute.xlu0 %2557
        %2559 = vrot.lane.b32.xlu0 %v2544, 20
        %v2560 = vpop.permute.xlu0 %2559
        %2561 = vrot.lane.b32.xlu0 %v2546, 20
        %v2562 = vpop.permute.xlu0 %2561
        %2563 = vrot.lane.b32.xlu0 %v2548, 20
        %v2564 = vpop.permute.xlu0 %2563
        %2565 = vrot.lane.b32.xlu0 %v2550, 20
        %v2566 = vpop.permute.xlu0 %2565
        %2567 = vrot.lane.b32.xlu0 %v2552, 20
        %v2568 = vpop.permute.xlu0 %2567
        %2569 = vrot.lane.b32.xlu0 %v2554, 20
        %v2570 = vpop.permute.xlu0 %2569
        %2579 = vst.msk [vmem:[#allocation4] sm:$0xff] %vm1523, %v2556
        %2580 = vst.msk [vmem:[#allocation4 + $0x8] sm:$0xff] %vm1523, %v2558
        %2581 = vst.msk [vmem:[#allocation4 + $0x10] sm:$0xff] %vm1523, %v2560
        %2582 = vst.msk [vmem:[#allocation4 + $0x18] sm:$0xff] %vm1523, %v2562
        %2583 = vst.msk [vmem:[#allocation4 + $0x20] sm:$0xff] %vm1523, %v2564
        %2584 = vst.msk [vmem:[#allocation4 + $0x28] sm:$0xff] %vm1523, %v2566
        %2585 = vst.msk [vmem:[#allocation4 + $0x30] sm:$0xff] %vm1523, %v2568
        %2586 = vst.msk [vmem:[#allocation4 + $0x38] sm:$0xff] %vm1523, %v2570
        %v2587 = vsel %vm958, 0, %v2178
        %v2588 = vsel %vm959, 0, %v2186
        %v2589 = vsel %vm960, 0, %v2194
        %v2590 = vsel %vm961, 0, %v2202
        %v2591 = vsel %vm962, 0, %v2210
        %v2592 = vsel %vm963, 0, %v2218
        %v2593 = vsel %vm964, 0, %v2226
        %v2594 = vsel %vm965, 0, %v2234
        %2603 = vrot.lane.b32.xlu0 %v2587, 24
        %v2604 = vpop.permute.xlu0 %2603
        %2605 = vrot.lane.b32.xlu0 %v2588, 24
        %v2606 = vpop.permute.xlu0 %2605
        %2607 = vrot.lane.b32.xlu0 %v2589, 24
        %v2608 = vpop.permute.xlu0 %2607
        %2609 = vrot.lane.b32.xlu0 %v2590, 24
        %v2610 = vpop.permute.xlu0 %2609
        %2611 = vrot.lane.b32.xlu0 %v2591, 24
        %v2612 = vpop.permute.xlu0 %2611
        %2613 = vrot.lane.b32.xlu0 %v2592, 24
        %v2614 = vpop.permute.xlu0 %2613
        %2615 = vrot.lane.b32.xlu0 %v2593, 24
        %v2616 = vpop.permute.xlu0 %2615
        %2617 = vrot.lane.b32.xlu0 %v2594, 24
        %v2618 = vpop.permute.xlu0 %2617
        %2627 = vst.msk [vmem:[#allocation4] sm:$0xff] %vm1584, %v2604
        %2628 = vst.msk [vmem:[#allocation4 + $0x8] sm:$0xff] %vm1584, %v2606
        %2629 = vst.msk [vmem:[#allocation4 + $0x10] sm:$0xff] %vm1584, %v2608
        %2630 = vst.msk [vmem:[#allocation4 + $0x18] sm:$0xff] %vm1584, %v2610
        %2631 = vst.msk [vmem:[#allocation4 + $0x20] sm:$0xff] %vm1584, %v2612
        %2632 = vst.msk [vmem:[#allocation4 + $0x28] sm:$0xff] %vm1584, %v2614
        %2633 = vst.msk [vmem:[#allocation4 + $0x30] sm:$0xff] %vm1584, %v2616
        %2634 = vst.msk [vmem:[#allocation4 + $0x38] sm:$0xff] %vm1584, %v2618
        %v2635 = vshrl.u32 %v2234, 16
        %v2637 = vor.u32 %v2635, %v2486
        %v2639 = vshll.u32 %v2247, 16
        %v2641 = vrot.slane %v2639, 1
        %v2642 = vsel %vm989, %v2637, %v2641
        %2643 = vrot.lane.b32.xlu0 %v2291, 28
        %v2644 = vpop.permute.xlu0 %2643
        %2645 = vrot.lane.b32.xlu0 %v2299, 28
        %v2646 = vpop.permute.xlu0 %2645
        %2647 = vrot.lane.b32.xlu0 %v2307, 28
        %v2648 = vpop.permute.xlu0 %2647
        %2649 = vrot.lane.b32.xlu0 %v2315, 28
        %v2650 = vpop.permute.xlu0 %2649
        %2651 = vrot.lane.b32.xlu0 %v2323, 28
        %v2652 = vpop.permute.xlu0 %2651
        %2653 = vrot.lane.b32.xlu0 %v2331, 28
        %v2654 = vpop.permute.xlu0 %2653
        %2655 = vrot.lane.b32.xlu0 %v2487, 28
        %v2656 = vpop.permute.xlu0 %2655
        %2657 = vrot.lane.b32.xlu0 %v2642, 28
        %v2658 = vpop.permute.xlu0 %2657
        %2667 = vst.msk [vmem:[#allocation4] sm:$0xff] %vm1633, %v2644
        %2668 = vst.msk [vmem:[#allocation4 + $0x8] sm:$0xff] %vm1633, %v2646
        %2669 = vst.msk [vmem:[#allocation4 + $0x10] sm:$0xff] %vm1633, %v2648
        %2670 = vst.msk [vmem:[#allocation4 + $0x18] sm:$0xff] %vm1633, %v2650
        %2671 = vst.msk [vmem:[#allocation4 + $0x20] sm:$0xff] %vm1633, %v2652
        %2672 = vst.msk [vmem:[#allocation4 + $0x28] sm:$0xff] %vm1633, %v2654
        %2673 = vst.msk [vmem:[#allocation4 + $0x30] sm:$0xff] %vm1633, %v2656
        %2674 = vst.msk [vmem:[#allocation4 + $0x38] sm:$0xff] %vm1633, %v2658
        %v2675 = vsel %vm1244, 0, %v2178
        %v2676 = vsel %vm1245, 0, %v2186
        %v2677 = vsel %vm1246, 0, %v2194
        %v2678 = vsel %vm1247, 0, %v2202
        %v2679 = vsel %vm1248, 0, %v2210
        %v2680 = vsel %vm1249, 0, %v2218
        %v2681 = vsel %vm1250, 0, %v2226
        %v2682 = vsel %vm1251, 0, %v2234
        %v2683 = vsel %vm2364, 0, %v2247
        %v2693 = vrot.slane %v2675, 1
        %v2694 = vrot.slane %v2676, 1
        %v2695 = vsel %vm1277, %v2693, %v2694
        %v2696 = vrot.slane %v2677, 1
        %v2697 = vsel %vm1277, %v2694, %v2696
        %v2698 = vrot.slane %v2678, 1
        %v2699 = vsel %vm1277, %v2696, %v2698
        %v2700 = vrot.slane %v2679, 1
        %v2701 = vsel %vm1277, %v2698, %v2700
        %v2702 = vrot.slane %v2680, 1
        %v2703 = vsel %vm1277, %v2700, %v2702
        %v2704 = vrot.slane %v2681, 1
        %v2705 = vsel %vm1277, %v2702, %v2704
        %v2706 = vrot.slane %v2682, 1
        %v2707 = vsel %vm1277, %v2704, %v2706
        %v2708 = vrot.slane %v2683, 1
        %v2709 = vsel %vm1277, %v2706, %v2708
        %2710 = vrot.lane.b32.xlu0 %v2695, 32
        %v2711 = vpop.permute.xlu0 %2710
        %2712 = vrot.lane.b32.xlu0 %v2697, 32
        %v2713 = vpop.permute.xlu0 %2712
        %2714 = vrot.lane.b32.xlu0 %v2699, 32
        %v2715 = vpop.permute.xlu0 %2714
        %2716 = vrot.lane.b32.xlu0 %v2701, 32
        %v2717 = vpop.permute.xlu0 %2716
        %2718 = vrot.lane.b32.xlu0 %v2703, 32
        %v2719 = vpop.permute.xlu0 %2718
        %2720 = vrot.lane.b32.xlu0 %v2705, 32
        %v2721 = vpop.permute.xlu0 %2720
        %2722 = vrot.lane.b32.xlu0 %v2707, 32
        %v2723 = vpop.permute.xlu0 %2722
        %2724 = vrot.lane.b32.xlu0 %v2709, 32
        %v2725 = vpop.permute.xlu0 %2724
        %2734 = vst.msk [vmem:[#allocation4] sm:$0xff] %vm1717, %v2711
        %2735 = vst.msk [vmem:[#allocation4 + $0x8] sm:$0xff] %vm1717, %v2713
        %2736 = vst.msk [vmem:[#allocation4 + $0x10] sm:$0xff] %vm1717, %v2715
        %2737 = vst.msk [vmem:[#allocation4 + $0x18] sm:$0xff] %vm1717, %v2717
        %2738 = vst.msk [vmem:[#allocation4 + $0x20] sm:$0xff] %vm1717, %v2719
        %2739 = vst.msk [vmem:[#allocation4 + $0x28] sm:$0xff] %vm1717, %v2721
        %2740 = vst.msk [vmem:[#allocation4 + $0x30] sm:$0xff] %vm1717, %v2723
        %2741 = vst.msk [vmem:[#allocation4 + $0x38] sm:$0xff] %vm1717, %v2725
        %v2742 = vld [vmem:[#allocation4] sm:$0xff]
        %v2743 = vld [vmem:[#allocation4 + $0x8] sm:$0xff]
        %v2744 = vld [vmem:[#allocation4 + $0x10] sm:$0xff]
        %v2745 = vld [vmem:[#allocation4 + $0x18] sm:$0xff]
        %v2746 = vld [vmem:[#allocation4 + $0x20] sm:$0xff]
        %v2747 = vld [vmem:[#allocation4 + $0x28] sm:$0xff]
        %v2748 = vld [vmem:[#allocation4 + $0x30] sm:$0xff]
        %v2749 = vld [vmem:[#allocation4 + $0x38] sm:$0xff]
        %v2755 = vunpack.c.l.b16 %v2151
        %v2756 = vunpack.c.l.b16 %v2152
        %v2757 = vunpack.c.l.b16 %v2153
        %v2758 = vunpack.c.l.b16 %v2154
        %v2759 = vunpack.c.l.b16 %v2155
        %v2760 = vpack.c.b16 %v2756, %v2755
        %v2761 = vpack.c.b16 %v2758, %v2757
        %v2762 = vpack.c.b16 %v2759, %v2759
        %v2766 = vsel %vm1753, %v2742, 0
        %v2769 = vsel %vm1753, %v2743, 0
        %v2772 = vsel %vm1753, %v2744, 0
        %v2775 = vsel %vm1753, %v2745, 0
        %v2778 = vsel %vm1753, %v2746, 0
        %v2781 = vsel %vm1753, %v2747, 0
        %v2784 = vsel %vm1753, %v2748, 0
        %v2787 = vsel %vm1753, %v2749, 0
        %v2790 = vsel %vm1784, %v2762, 0
        %2792 = vmatprep.subr.bf16.mxu0 0
        %2793 = vmatpush1.bf16.msra.mxu0 %v2760
        %2794 = vmatprep.subr.bf16.mxu0 0
        %2795 = vmatpush1.bf16.msra.mxu0 %v2761
        %2796 = vmatprep.subr.bf16.mxu0 0
        %2797 = vmatpush1.bf16.msra.mxu0 %v2790
        %2798 = vmatprep.subr.bf16.mxu0 0
        %2799 = vmatpush1.bf16.msra.mxu0 0
        %2800 = vmatprep.subr.bf16.mxu0 0
        %2801 = vmatpush1.bf16.msra.mxu0 0
        %2802 = vmatprep.subr.bf16.mxu0 0
        %2803 = vmatpush1.bf16.msra.mxu0 0
        %2804 = vmatprep.subr.bf16.mxu0 0
        %2805 = vmatpush1.bf16.msra.mxu0 0
        %2806 = vmatprep.subr.bf16.mxu0 0
        %2807 = vmatpush1.bf16.msra.mxu0 0
        %2808 = vmatprep.subr.bf16.mxu0 0
        %2809 = vmatpush1.bf16.msra.mxu0 0
        %2810 = vmatprep.subr.bf16.mxu0 0
        %2811 = vmatpush1.bf16.msra.mxu0 0
        %2812 = vmatprep.subr.bf16.mxu0 0
        %2813 = vmatpush1.bf16.msra.mxu0 0
        %2814 = vmatprep.subr.bf16.mxu0 0
        %2815 = vmatpush1.bf16.msra.mxu0 0
        %2816 = vmatprep.subr.bf16.mxu0 0
        %2817 = vmatpush1.bf16.msra.mxu0 0
        %2818 = vmatprep.subr.bf16.mxu0 0
        %2819 = vmatpush1.bf16.msra.mxu0 0
        %2820 = vmatprep.subr.bf16.mxu0 0
        %2821 = vmatpush1.bf16.msra.mxu0 0
        %2822 = vmatprep.subr.bf16.mxu0 0
        %2823 = vmatpush1.bf16.msra.mxu0 0
        %2824 = vmatprep.mubr.bf16.mxu0 0
        %2825 = vmatmul.mubr.bf16.gmra.mrb[0].mxu0 %v2766
        %v2826 = vpop.f32.mrb[0].mxu0
        %v2827 = vadd.f32 0.0, %v2826
        %v2828 = vpop.f32.mrb[0].mxu0
        %v2829 = vpop.f32.mrb[0].mxu0
        %v2830 = vadd.f32 0.0, %v2829
        %v2831 = vpop.f32.mrb[0].mxu0
        %2832 = vmatprep.mubr.bf16.mxu0 0
        %2833 = vmatmul.mubr.bf16.gmra.mrb[0].mxu0 %v2769
        %v2834 = vpop.f32.mrb[0].mxu0
        %v2835 = vadd.f32 0.0, %v2834
        %v2836 = vpop.f32.mrb[0].mxu0
        %v2837 = vpop.f32.mrb[0].mxu0
        %v2838 = vadd.f32 0.0, %v2837
        %v2839 = vpop.f32.mrb[0].mxu0
        %2840 = vmatprep.mubr.bf16.mxu0 0
        %2841 = vmatmul.mubr.bf16.gmra.mrb[0].mxu0 %v2772
        %v2842 = vpop.f32.mrb[0].mxu0
        %v2843 = vadd.f32 0.0, %v2842
        %v2844 = vpop.f32.mrb[0].mxu0
        %v2845 = vpop.f32.mrb[0].mxu0
        %v2846 = vadd.f32 0.0, %v2845
        %v2847 = vpop.f32.mrb[0].mxu0
        %2848 = vmatprep.mubr.bf16.mxu0 0
        %2849 = vmatmul.mubr.bf16.gmra.mrb[0].mxu0 %v2775
        %v2850 = vpop.f32.mrb[0].mxu0
        %v2851 = vadd.f32 0.0, %v2850
        %v2852 = vpop.f32.mrb[0].mxu0
        %v2853 = vpop.f32.mrb[0].mxu0
        %v2854 = vadd.f32 0.0, %v2853
        %v2855 = vpop.f32.mrb[0].mxu0
        %2856 = vmatprep.mubr.bf16.mxu0 0
        %2857 = vmatmul.mubr.bf16.gmra.mrb[0].mxu0 %v2778
        %v2858 = vpop.f32.mrb[0].mxu0
        %v2859 = vadd.f32 0.0, %v2858
        %v2860 = vpop.f32.mrb[0].mxu0
        %v2861 = vpop.f32.mrb[0].mxu0
        %v2862 = vadd.f32 0.0, %v2861
        %v2863 = vpop.f32.mrb[0].mxu0
        %2864 = vmatprep.mubr.bf16.mxu0 0
        %2865 = vmatmul.mubr.bf16.gmra.mrb[0].mxu0 %v2781
        %v2866 = vpop.f32.mrb[0].mxu0
        %v2867 = vadd.f32 0.0, %v2866
        %v2868 = vpop.f32.mrb[0].mxu0
        %v2869 = vpop.f32.mrb[0].mxu0
        %v2870 = vadd.f32 0.0, %v2869
        %v2871 = vpop.f32.mrb[0].mxu0
        %2872 = vmatprep.mubr.bf16.mxu0 0
        %2873 = vmatmul.mubr.bf16.gmra.mrb[0].mxu0 %v2784
        %v2874 = vpop.f32.mrb[0].mxu0
        %v2875 = vadd.f32 0.0, %v2874
        %v2876 = vpop.f32.mrb[0].mxu0
        %v2877 = vpop.f32.mrb[0].mxu0
        %v2878 = vadd.f32 0.0, %v2877
        %v2879 = vpop.f32.mrb[0].mxu0
        %2880 = vmatprep.mubr.bf16.mxu0 0
        %2881 = vmatmul.mubr.bf16.gmra.mrb[0].mxu0 %v2787
        %v2882 = vpop.f32.mrb[0].mxu0
        %v2883 = vadd.f32 0.0, %v2882
        %v2884 = vpop.f32.mrb[0].mxu0
        %v2885 = vpop.f32.mrb[0].mxu0
        %v2886 = vadd.f32 0.0, %v2885
        %v2887 = vpop.f32.mrb[0].mxu0
        %2888 = vdwg.mxu0
        %v2889 = vunpack.c.l.bf16 %v419
        %v2890 = vunpack.c.h.bf16 %v419
        %v2891 = vunpack.c.l.bf16 %v420
        %v2892 = vunpack.c.h.bf16 %v420
        %v2893 = vunpack.c.l.bf16 %v421
        %v2894 = vunpack.c.h.bf16 %v421
        %v2895 = vunpack.c.l.bf16 %v422
        %v2896 = vunpack.c.h.bf16 %v422
        %v2897 = vunpack.c.l.bf16 %v423
        %v2898 = vunpack.c.h.bf16 %v423
        %v2899 = vunpack.c.l.bf16 %v424
        %v2900 = vunpack.c.h.bf16 %v424
        %v2901 = vunpack.c.l.bf16 %v425
        %v2902 = vunpack.c.h.bf16 %v425
        %v2903 = vunpack.c.l.bf16 %v426
        %v2904 = vunpack.c.h.bf16 %v426
        %v2905 = vld [vmem:[#allocation14] sm:$0x1]
        %v2907 = vlaneseq
        %v2908 = vshrl.u32 %v2907, 7
        %v2909 = vsub.s32 0, %v2908
        %v2910 = vrot.slane %v2905, %v2909
        %v2912 = vmul.f32 %v2827, %v2910
        %v2913 = vmul.f32 %v2830, %v2910
        %v2914 = vmul.f32 %v2835, %v2910
        %v2915 = vmul.f32 %v2838, %v2910
        %v2916 = vmul.f32 %v2843, %v2910
        %v2917 = vmul.f32 %v2846, %v2910
        %v2918 = vmul.f32 %v2851, %v2910
        %v2919 = vmul.f32 %v2854, %v2910
        %v2920 = vmul.f32 %v2859, %v2910
        %v2921 = vmul.f32 %v2862, %v2910
        %v2922 = vmul.f32 %v2867, %v2910
        %v2923 = vmul.f32 %v2870, %v2910
        %v2924 = vmul.f32 %v2875, %v2910
        %v2925 = vmul.f32 %v2878, %v2910
        %v2926 = vmul.f32 %v2883, %v2910
        %v2927 = vmul.f32 %v2886, %v2910
        %v2928 = vld [vmem:[#allocation15] sm:$0x1]
        %v2930 = vlaneseq
        %v2931 = vshrl.u32 %v2930, 7
        %v2932 = vsub.s32 0, %v2931
        %v2933 = vrot.slane %v2928, %v2932
        %v2935 = vadd.f32 %v2912, %v2933
        %v2936 = vadd.f32 %v2913, %v2933
        %v2937 = vadd.f32 %v2914, %v2933
        %v2938 = vadd.f32 %v2915, %v2933
        %v2939 = vadd.f32 %v2916, %v2933
        %v2940 = vadd.f32 %v2917, %v2933
        %v2941 = vadd.f32 %v2918, %v2933
        %v2942 = vadd.f32 %v2919, %v2933
        %v2943 = vadd.f32 %v2920, %v2933
        %v2944 = vadd.f32 %v2921, %v2933
        %v2945 = vadd.f32 %v2922, %v2933
        %v2946 = vadd.f32 %v2923, %v2933
        %v2947 = vadd.f32 %v2924, %v2933
        %v2948 = vadd.f32 %v2925, %v2933
        %v2949 = vadd.f32 %v2926, %v2933
        %v2950 = vadd.f32 %v2927, %v2933
        %v2951 = vadd.f32 %v2935, %v2889
        %v2952 = vadd.f32 %v2936, %v2890
        %v2953 = vadd.f32 %v2937, %v2891
        %v2954 = vadd.f32 %v2938, %v2892
        %v2955 = vadd.f32 %v2939, %v2893
        %v2956 = vadd.f32 %v2940, %v2894
        %v2957 = vadd.f32 %v2941, %v2895
        %v2958 = vadd.f32 %v2942, %v2896
        %v2959 = vadd.f32 %v2943, %v2897
        %v2960 = vadd.f32 %v2944, %v2898
        %v2961 = vadd.f32 %v2945, %v2899
        %v2962 = vadd.f32 %v2946, %v2900
        %v2963 = vadd.f32 %v2947, %v2901
        %v2964 = vadd.f32 %v2948, %v2902
        %v2965 = vadd.f32 %v2949, %v2903
        %v2966 = vadd.f32 %v2950, %v2904
        %v2967 = vmax.f32 %v2951, 0.0
        %v2968 = vmax.f32 %v2952, 0.0
        %v2969 = vmax.f32 %v2953, 0.0
        %v2970 = vmax.f32 %v2954, 0.0
        %v2971 = vmax.f32 %v2955, 0.0
        %v2972 = vmax.f32 %v2956, 0.0
        %v2973 = vmax.f32 %v2957, 0.0
        %v2974 = vmax.f32 %v2958, 0.0
        %v2975 = vmax.f32 %v2959, 0.0
        %v2976 = vmax.f32 %v2960, 0.0
        %v2977 = vmax.f32 %v2961, 0.0
        %v2978 = vmax.f32 %v2962, 0.0
        %v2979 = vmax.f32 %v2963, 0.0
        %v2980 = vmax.f32 %v2964, 0.0
        %v2981 = vmax.f32 %v2965, 0.0
        %v2982 = vmax.f32 %v2966, 0.0
        %v2983 = vpack.c.bf16 %v2968, %v2967
        %v2984 = vpack.c.bf16 %v2970, %v2969
        %v2985 = vpack.c.bf16 %v2972, %v2971
        %v2986 = vpack.c.bf16 %v2974, %v2973
        %v2987 = vpack.c.bf16 %v2976, %v2975
        %v2988 = vpack.c.bf16 %v2978, %v2977
        %v2989 = vpack.c.bf16 %v2980, %v2979
        %v2990 = vpack.c.bf16 %v2982, %v2981
        %v2999 = vunpack.c.l.b16 %v2983
        %v3000 = vunpack.c.h.b16 %v2983
        %v3001 = vunpack.c.l.b16 %v2984
        %v3002 = vunpack.c.h.b16 %v2984
        %v3003 = vunpack.c.l.b16 %v2985
        %v3004 = vunpack.c.h.b16 %v2985
        %v3005 = vunpack.c.l.b16 %v2986
        %v3006 = vunpack.c.h.b16 %v2986
        %v3007 = vunpack.c.l.b16 %v2987
        %v3008 = vunpack.c.h.b16 %v2987
        %v3009 = vunpack.c.l.b16 %v2988
        %v3010 = vunpack.c.h.b16 %v2988
        %v3011 = vunpack.c.l.b16 %v2989
        %v3012 = vunpack.c.h.b16 %v2989
        %v3013 = vunpack.c.l.b16 %v2990
        %v3014 = vunpack.c.h.b16 %v2990
        %v3015 = vpack.c.b16 %v2999, %v2999
        %v3016 = vpack.c.b16 %v3000, %v3000
        %v3017 = vpack.c.b16 %v3001, %v3001
        %v3018 = vpack.c.b16 %v3002, %v3002
        %v3019 = vpack.c.b16 %v3003, %v3003
        %v3020 = vpack.c.b16 %v3004, %v3004
        %v3021 = vpack.c.b16 %v3005, %v3005
        %v3022 = vpack.c.b16 %v3006, %v3006
        %v3023 = vpack.c.b16 %v3007, %v3007
        %v3024 = vpack.c.b16 %v3008, %v3008
        %v3025 = vpack.c.b16 %v3009, %v3009
        %v3026 = vpack.c.b16 %v3010, %v3010
        %v3027 = vpack.c.b16 %v3011, %v3011
        %v3028 = vpack.c.b16 %v3012, %v3012
        %v3029 = vpack.c.b16 %v3013, %v3013
        %v3030 = vpack.c.b16 %v3014, %v3014
        %vm3047 = vcmask 27648
        %3048 = vst.msk [vmem:[%s324] sm:$0xf] %vm3047, %v3015
        %3049 = vst.msk [vmem:[%s324 + $0x4] sm:$0xf] %vm3047, %v3016
        %3050 = vst.msk [vmem:[%s324 + $0x8] sm:$0xf] %vm3047, %v3017
        %3051 = vst.msk [vmem:[%s324 + $0xc] sm:$0xf] %vm3047, %v3018
        %3052 = vst.msk [vmem:[%s324 + $0x10] sm:$0xf] %vm3047, %v3019
        %3053 = vst.msk [vmem:[%s324 + $0x14] sm:$0xf] %vm3047, %v3020
        %3054 = vst.msk [vmem:[%s324 + $0x18] sm:$0xf] %vm3047, %v3021
        %3055 = vst.msk [vmem:[%s324 + $0x1c] sm:$0xf] %vm3047, %v3022
        %3056 = vst.msk [vmem:[%s324 + $0x20] sm:$0xf] %vm3047, %v3023
        %3057 = vst.msk [vmem:[%s324 + $0x24] sm:$0xf] %vm3047, %v3024
        %3058 = vst.msk [vmem:[%s324 + $0x28] sm:$0xf] %vm3047, %v3025
        %3059 = vst.msk [vmem:[%s324 + $0x2c] sm:$0xf] %vm3047, %v3026
        %3060 = vst.msk [vmem:[%s324 + $0x30] sm:$0xf] %vm3047, %v3027
        %3061 = vst.msk [vmem:[%s324 + $0x34] sm:$0xf] %vm3047, %v3028
        %3062 = vst.msk [vmem:[%s324 + $0x38] sm:$0xf] %vm3047, %v3029
        %3063 = vst.msk [vmem:[%s324 + $0x3c] sm:$0xf] %vm3047, %v3030
        %s3064 = sand.u32 %s173, 1
        %s3065 = scalar_lea.sflag [#allocation8], %s3064
        %s3066 = sand.u32 %s173, 1
        %s3067 = smul.addr %s3066, 64
        %s3068 = scalar_lea.vmem [#allocation17], %s3067
        // Predicated region
        $region97: #{basic_block_forward.1} parent=43 // pred_check
          %p3069 = pneg %p183
        $region98: #{basic_block_forward.1} parent=43 // pred_check_branch
          %3071 = sbr.rel (%p3069) target = $region100
        $region99: #{basic_block_forward.1} parent=43 // pred_region
          %s3072 = smul.u32 16, %s30
          %s3074 = ssub.s32 1024, 1024
          %3075 = vsyncadd %s3065, %s3074
          %s3076 = smul.addr %s29, 32
          %s3077 = sadd.s32 %s3072, %s3076
          %s3078 = smul.addr %s3077, 64
          %s3079 = scalar_lea.hbm %s7, %s3078
          %s3080 = sshll.u32 %s3068, 4
          %s3081 = int_to_ptr.vmem [resolvable:$true] %s3080
          %3086 = dma.vmem_to_hbm [thread:$0]  %s3081, 1024, %s3079, %s3065, 64, 64, 4
        $region100: #{basic_block_forward.1} parent=43 // pred_fallthru
          _
      $region44: #{basic_block_forward.1} parent=5 // pred_fallthru
        _
      %p3087 = scmp.le.s32.totalorder 2, %s20
      // Predicated region
      $region101: #{basic_block_forward.1} parent=5 // pred_check
        %p3088 = pneg %p3087
      $region102: #{basic_block_forward.1} parent=5 // pred_check_branch
        %3090 = sbr.rel (%p3088) target = $region104
      $region103: #{basic_block_forward.1} parent=5 // pred_region
        %s3091 = ssub.s32 %s20, 2
        // Predicated region
        $region105: #{basic_block_forward.1} parent=103 // pred_check
          %p3092 = pneg %p189
        $region106: #{basic_block_forward.1} parent=103 // pred_check_branch
          %3094 = sbr.rel (%p3092) target = $region108
        $region107: #{basic_block_forward.1} parent=103 // pred_region
          %s3095 = sand.u32 %s174, 1
          %s3096 = scalar_lea.sflag [#allocation8], %s3095
          %s3097 = sand.u32 %s174, 1
          %s3098 = smul.addr %s3097, 64
          %s3099 = scalar_lea.vmem [#allocation17], %s3098
          %3100 = dma.done %s3096, 1024
        $region108: #{basic_block_forward.1} parent=103 // pred_fallthru
          _
      $region104: #{basic_block_forward.1} parent=5 // pred_fallthru
        _
    $region6: #{basic_block_forward.1} parent=1 // loop_footer
      %s24 = sadd.s32 1, %s20
    $region7: #{basic_block_forward.1} parent=1 // loop_footer_branch
      %19 = sbr.rel target = $region3
    $region8: #{basic_block_forward.1} parent=1 // loop_exit
      _
    %3101 = vsyncpa [#allocation7], 1
    %s3102 = scalar_lea.sflag [#allocation7], 1
    %3103 = vsyncpa %s3102, 1
    %3104 = vsyncpa [#allocation10], 1
    %3105 = vsyncpa [#allocation13], 1
    %3106 = vsyncpa [#allocation16], 1
    %3107 = vsyncpa [#allocation8], 1
    %s3108 = scalar_lea.sflag [#allocation8], 1
    %3109 = vsyncpa %s3108, 1
  %3110 = vsyncmov [#allocation5]
  %s3111 = vpop.sfrf %3110
  %p3112 = scmp.eq.s32.totalorder %s3111, 0
  %p3113 = pneg %p3112
  %3115 = shalt.err (%p3113)
  %s3116 = scalar_lea.sflag [#allocation5], 1
  %3117 = vsyncmov %s3116
  %s3118 = vpop.sfrf %3117
  %p3119 = scmp.eq.s32.totalorder %s3118, 0
  %p3120 = pneg %p3119
  %3122 = shalt.err (%p3120)
  %s3123 = scalar_lea.sflag [#allocation5], 2
  %3124 = vsyncmov %s3123
  %s3125 = vpop.sfrf %3124
  %p3126 = scmp.eq.s32.totalorder %s3125, 0
  %p3127 = pneg %p3126
  %3129 = shalt.err (%p3127)

</llo_original>
